<compile_context>
chip_gen: v5e
topology: v5e:2x2
jax: 0.10.0
libtpu: 0.0.40
codegen_flags: <defaults>
</compile_context>

<pallas_src>
import functools

import jax
import jax.numpy as jnp
import numpy as np
from jax.experimental import pallas as pl
from jax.experimental.pallas import tpu as pltpu

INPUT_SIZE = 32
HIDDEN = 256
NUM_CLASSES = 24
CHUNK_T = 256            # timesteps per grid chunk (bounds VMEM for long T)


def lstm_chunk_kernel(x_ref, wih_ref, whh_ref, wfc_ref, bfc_ref,
                      out_ref, gx_ref, h_ref, c_ref, *,
                      total_t, needs_mask):
    """One time-chunk of the LSTM per grid step.

    x_ref   : (TC*Bp, I+1)  time-major rows for this chunk (ones col appended)
    wih_ref : (I+1, 4H)     [W_ih^T ; (b_ih + b_hh)]
    whh_ref : (H, 4H)       W_hh^T
    wfc_ref : (H, Cp)       W_fc^T lane-padded to a multiple of 128
    bfc_ref : (1, Cp)       b_fc lane-padded
    out_ref : (Bp, Cp)      padded fc output (written on the last chunk)
    gx_ref  : (TC*Bp, 4H)   scratch: per-chunk precomputed input projection
    h_ref, c_ref : (Bp, H)  persistent LSTM state across chunks
    """
    chunk = pl.program_id(0)
    n_chunks = pl.num_programs(0)
    Bp = out_ref.shape[0]
    H = whh_ref.shape[0]
    TC = gx_ref.shape[0] // Bp

    @pl.when(chunk == 0)
    def _():
        h_ref[...] = jnp.zeros_like(h_ref)
        c_ref[...] = jnp.zeros_like(c_ref)

    # Phase 1: batched input projection for all timesteps of this chunk in
    # one MXU matmul.  Bias is folded in via the ones column / bias row.
    gx_ref[...] = jnp.dot(x_ref[...], wih_ref[...],
                          preferred_element_type=jnp.float32)

    whh = whh_ref[...]
    t_base = chunk * TC

    # Phase 2: serial recurrence — only h @ W_hh is on the critical path.
    def step(t, carry):
        h, c = carry
        row = pl.multiple_of(t * Bp, Bp)
        gates = gx_ref[pl.ds(row, Bp), :] + jnp.dot(
            h, whh, preferred_element_type=jnp.float32)          # (Bp, 4H)
        # PyTorch gate order: [i, f, g, o]
        i_g = jax.nn.sigmoid(gates[:, 0 * H:1 * H])
        f_g = jax.nn.sigmoid(gates[:, 1 * H:2 * H])
        g_g = jnp.tanh(gates[:, 2 * H:3 * H])
        o_g = jax.nn.sigmoid(gates[:, 3 * H:4 * H])
        c_new = f_g * c + i_g * g_g
        h_new = o_g * jnp.tanh(c_new)
        if needs_mask:
            # Last chunk may contain padded timesteps; keep state unchanged.
            valid = (t_base + t) < total_t
            h_new = jnp.where(valid, h_new, h)
            c_new = jnp.where(valid, c_new, c)
        return (h_new, c_new)

    # Unroll for every T (full unroll for short chunks, 8 otherwise) so the
    # LLO scheduler sees across step boundaries.
    unroll = TC if TC <= 16 else 8
    h_last, c_last = jax.lax.fori_loop(0, TC, step, (h_ref[...], c_ref[...]),
                                       unroll=unroll)
    h_ref[...] = h_last
    c_ref[...] = c_last

    # Phase 3: fc on the last hidden state, lane-dense (Cp multiple of 128).
    @pl.when(chunk == n_chunks - 1)
    def _():
        out_ref[...] = (
            jnp.dot(h_last, wfc_ref[...], preferred_element_type=jnp.float32)
            + bfc_ref[...]).astype(out_ref.dtype)


def prepare_params(w_ih, w_hh, b_ih, b_hh, w_fc, b_fc):
    """One-time parameter relayout (hoisted out of the per-call wrapper)."""
    H = w_hh.shape[1]
    C = w_fc.shape[0]
    Cp = ((C + 127) // 128) * 128
    # W_ih^T with the combined LSTM bias appended as an extra contraction row.
    wih_aug = jnp.concatenate(
        [jnp.transpose(w_ih, (1, 0)),
         (b_ih + b_hh).reshape(1, 4 * H)], axis=0).astype(jnp.float32)
    whh_t = jnp.transpose(w_hh, (1, 0)).astype(jnp.float32)        # (H, 4H)
    wfc_t = jnp.zeros((H, Cp), jnp.float32).at[:, :C].set(
        jnp.transpose(w_fc, (1, 0)))                               # (H, Cp)
    bfc = jnp.zeros((1, Cp), jnp.float32).at[:, :C].set(
        b_fc.reshape(1, C))                                        # (1, Cp)
    return wih_aug, whh_t, wfc_t, bfc


def lstm_alpha_classifier(x, params, num_classes=NUM_CLASSES):
    """x: (B, T, I) float32.  Returns (B, num_classes) float32."""
    wih_aug, whh_t, wfc_t, bfc = params
    B, T, I = x.shape
    H = whh_t.shape[0]
    Cp = wfc_t.shape[1]
    assert I == INPUT_SIZE and H == HIDDEN and wih_aug.shape[0] == I + 1

    Bp = max(8, ((B + 7) // 8) * 8)       # sublane-pad batch (f32 -> 8 rows)
    TC = min(T, CHUNK_T)                  # timesteps per chunk
    n_chunks = (T + TC - 1) // TC
    Tp = n_chunks * TC

    # Zero-pad batch and time, append the ones column (bias fold), go
    # time-major and flatten to rows for the chunked phase-1 matmuls.
    x_pad = jnp.zeros((Bp, Tp, I + 1), jnp.float32)
    x_pad = x_pad.at[:B, :T, :I].set(x)
    x_pad = x_pad.at[:, :, I].set(1.0)
    x_flat = jnp.transpose(x_pad, (1, 0, 2)).reshape(Tp * Bp, I + 1)

    # VMEM budget sized to the actual resident set (+ headroom); the scoped
    # default (16/32 MiB) is far too small for long sequences.
    f32 = 4
    resident = (
        2 * TC * Bp * (I + 1) * f32            # x chunk (double-buffered)
        + TC * Bp * 4 * H * f32                # gx scratch
        + 2 * ((I + 1) * 4 * H + H * 4 * H + H * Cp + Cp) * f32   # weights
        + 2 * Bp * Cp * f32                    # output block
        + 2 * Bp * H * f32)                    # h, c state
    vmem_limit = int(min(max(2 * resident + (2 << 20), 32 << 20), 120 << 20))

    cost = pl.CostEstimate(
        flops=int(2 * Tp * Bp * (I + 1) * 4 * H
                  + 2 * Tp * Bp * H * 4 * H
                  + 2 * Bp * H * Cp),
        transcendentals=int(5 * Tp * Bp * H),
        bytes_accessed=int((x_flat.size + wih_aug.size + whh_t.size
                            + wfc_t.size + bfc.size + Bp * Cp) * f32),
    )

    kernel = functools.partial(lstm_chunk_kernel,
                               total_t=T, needs_mask=(Tp != T))

    grid_spec = pltpu.PrefetchScalarGridSpec(
        num_scalar_prefetch=0,
        grid=(n_chunks,),
        in_specs=[
            pl.BlockSpec((TC * Bp, I + 1), lambda c: (c, 0)),   # x chunk
            pl.BlockSpec((I + 1, 4 * H), lambda c: (0, 0)),     # W_ih^T+bias
            pl.BlockSpec((H, 4 * H), lambda c: (0, 0)),         # W_hh^T
            pl.BlockSpec((H, Cp), lambda c: (0, 0)),            # W_fc^T
            pl.BlockSpec((1, Cp), lambda c: (0, 0)),            # b_fc
        ],
        out_specs=pl.BlockSpec((Bp, Cp), lambda c: (0, 0)),
        scratch_shapes=[
            pltpu.VMEM((TC * Bp, 4 * H), jnp.float32),   # gates_x per chunk
            pltpu.VMEM((Bp, H), jnp.float32),            # h (persistent)
            pltpu.VMEM((Bp, H), jnp.float32),            # c (persistent)
        ],
    )

    out = pl.pallas_call(
        kernel,
        out_shape=jax.ShapeDtypeStruct((Bp, Cp), jnp.float32),
        grid_spec=grid_spec,
        compiler_params=pltpu.CompilerParams(
            dimension_semantics=("arbitrary",),
            vmem_limit_bytes=vmem_limit),
        cost_estimate=cost,
    )(x_flat, wih_aug, whh_t, wfc_t, bfc)

    return out[:B, :NUM_CLASSES]


def reference_forward(x, w_ih, w_hh, b_ih, b_hh, w_fc, b_fc):
    """Pure-JAX reference matching torch.nn.LSTM (batch_first) + Linear."""
    B, T, I = x.shape
    H = HIDDEN

    def step(carry, x_t):
        h, c = carry
        gates = x_t @ w_ih.T + b_ih + h @ w_hh.T + b_hh
        i = jax.nn.sigmoid(gates[:, 0 * H:1 * H])
        f = jax.nn.sigmoid(gates[:, 1 * H:2 * H])
        g = jnp.tanh(gates[:, 2 * H:3 * H])
        o = jax.nn.sigmoid(gates[:, 3 * H:4 * H])
        c = f * c + i * g
        h = o * jnp.tanh(c)
        return (h, c), None

    h0 = jnp.zeros((B, H), jnp.float32)
    c0 = jnp.zeros((B, H), jnp.float32)
    (h_last, _), _ = jax.lax.scan(step, (h0, c0), jnp.transpose(x, (1, 0, 2)))
    return h_last @ w_fc.T + b_fc


if __name__ == "__main__":
    B, T, I, H, C = 2, 8, INPUT_SIZE, HIDDEN, NUM_CLASSES

    key = jax.random.PRNGKey(0)
    kx, k1, k2, k3, k4, k5, k6 = jax.random.split(key, 7)

    x = jax.random.normal(kx, (B, T, I), dtype=jnp.float32)

    # PyTorch-style uniform(-1/sqrt(H), 1/sqrt(H)) init.
    s = 1.0 / np.sqrt(H)
    w_ih = jax.random.uniform(k1, (4 * H, I), jnp.float32, -s, s)
    w_hh = jax.random.uniform(k2, (4 * H, H), jnp.float32, -s, s)
    b_ih = jax.random.uniform(k3, (4 * H,), jnp.float32, -s, s)
    b_hh = jax.random.uniform(k4, (4 * H,), jnp.float32, -s, s)
    w_fc = jax.random.uniform(k5, (C, H), jnp.float32, -s, s)
    b_fc = jax.random.uniform(k6, (C,), jnp.float32, -s, s)

    # One-time parameter relayout (hoisted out of the forward call).
    params = prepare_params(w_ih, w_hh, b_ih, b_hh, w_fc, b_fc)

    out = lstm_alpha_classifier(x, params)
    out = jax.block_until_ready(out)

    ref = jax.block_until_ready(
        reference_forward(x, w_ih, w_hh, b_ih, b_hh, w_fc, b_fc))

    assert out.shape == (B, C), out.shape
    np.testing.assert_allclose(np.asarray(out), np.asarray(ref),
                               rtol=1e-4, atol=1e-4)
    print("KERNEL_OK")
</pallas_src>

<mosaic_0001>
module attributes {stable_mosaic.version = 11 : i64} {
  func.func @lstm_chunk_kernel(%arg0: i32, %arg1: memref<64x33xf32, #tpu.memory_space<vmem>>, %arg2: memref<33x1024xf32, #tpu.memory_space<vmem>>, %arg3: memref<256x1024xf32, #tpu.memory_space<vmem>>, %arg4: memref<256x128xf32, #tpu.memory_space<vmem>>, %arg5: memref<1x128xf32, #tpu.memory_space<vmem>>, %arg6: memref<8x128xf32, #tpu.memory_space<vmem>>, %arg7: memref<64x1024xf32, #tpu.memory_space<vmem>>, %arg8: memref<8x256xf32, #tpu.memory_space<vmem>>, %arg9: memref<8x256xf32, #tpu.memory_space<vmem>>) attributes {dimension_semantics = [#tpu.dimension_semantics<arbitrary>], iteration_bounds = array<i64: 1>, scalar_prefetch = 0 : i64, scratch_operands = 3 : i64, tpu.core_type = #tpu.core_type<tc>, window_params = [{transform_indices = @transform_0, window_bounds = array<i64: 64, 33>}, {pipeline_mode = #tpu.pipeline_mode<synchronous>, transform_indices = @transform_1, window_bounds = array<i64: 33, 1024>}, {pipeline_mode = #tpu.pipeline_mode<synchronous>, transform_indices = @transform_2, window_bounds = array<i64: 256, 1024>}, {pipeline_mode = #tpu.pipeline_mode<synchronous>, transform_indices = @transform_3, window_bounds = array<i64: 256, 128>}, {pipeline_mode = #tpu.pipeline_mode<synchronous>, transform_indices = @transform_4, window_bounds = array<i64: 1, 128>}, {pipeline_mode = #tpu.pipeline_mode<synchronous>, transform_indices = @transform_5, window_bounds = array<i64: 8, 128>}]} {
    %c0_i32 = arith.constant 0 : i32
    %0 = arith.cmpi eq, %arg0, %c0_i32 : i32
    %1 = arith.extui %0 : i1 to i32
    %c0_i32_0 = arith.constant 0 : i32
    %2 = arith.cmpi ne, %1, %c0_i32_0 : i32
    scf.if %2 {
      %cst_67 = arith.constant 0.000000e+00 : f32
      %263 = vector.broadcast %cst_67 : f32 to vector<8x256xf32>
      %c0_68 = arith.constant 0 : index
      %c0_69 = arith.constant 0 : index
      %264 = vector.load %arg8[%c0_68, %c0_69] : memref<8x256xf32, #tpu.memory_space<vmem>>, vector<8x256xf32>
      tpu.vector_store %arg8[%c0_68, %c0_69], %263 {strides = array<i32>} : memref<8x256xf32, #tpu.memory_space<vmem>>, vector<8x256xf32>,
      %cst_70 = arith.constant 0.000000e+00 : f32
      %265 = vector.broadcast %cst_70 : f32 to vector<8x256xf32>
      %c0_71 = arith.constant 0 : index
      %c0_72 = arith.constant 0 : index
      %266 = vector.load %arg9[%c0_71, %c0_72] : memref<8x256xf32, #tpu.memory_space<vmem>>, vector<8x256xf32>
      tpu.vector_store %arg9[%c0_71, %c0_72], %265 {strides = array<i32>} : memref<8x256xf32, #tpu.memory_space<vmem>>, vector<8x256xf32>,
    } else {
    }
    %c0 = arith.constant 0 : index
    %c0_1 = arith.constant 0 : index
    %3 = vector.load %arg1[%c0, %c0_1] : memref<64x33xf32, #tpu.memory_space<vmem>>, vector<64x33xf32>
    %c0_2 = arith.constant 0 : index
    %c0_3 = arith.constant 0 : index
    %4 = vector.load %arg2[%c0_2, %c0_3] : memref<33x1024xf32, #tpu.memory_space<vmem>>, vector<33x1024xf32>
    %cst = arith.constant dense<0.000000e+00> : vector<64x1024xf32>
    %5 = tpu.matmul %3, %4, %cst {dimension_numbers = #tpu.dot_dimension_numbers<[1], [0], [0], [1], [0, 0, 1, 1], [], []>} : vector<64x33xf32>, vector<33x1024xf32>, vector<64x1024xf32> -> vector<64x1024xf32>
    %c0_4 = arith.constant 0 : index
    %c0_5 = arith.constant 0 : index
    %6 = vector.load %arg7[%c0_4, %c0_5] : memref<64x1024xf32, #tpu.memory_space<vmem>>, vector<64x1024xf32>
    tpu.vector_store %arg7[%c0_4, %c0_5], %5 {strides = array<i32>} : memref<64x1024xf32, #tpu.memory_space<vmem>>, vector<64x1024xf32>,
    %c0_6 = arith.constant 0 : index
    %c0_7 = arith.constant 0 : index
    %7 = vector.load %arg3[%c0_6, %c0_7] : memref<256x1024xf32, #tpu.memory_space<vmem>>, vector<256x1024xf32>
    %c0_8 = arith.constant 0 : index
    %c0_9 = arith.constant 0 : index
    %8 = vector.load %arg8[%c0_8, %c0_9] : memref<8x256xf32, #tpu.memory_space<vmem>>, vector<8x256xf32>
    %c0_10 = arith.constant 0 : index
    %c0_11 = arith.constant 0 : index
    %9 = vector.load %arg9[%c0_10, %c0_11] : memref<8x256xf32, #tpu.memory_space<vmem>>, vector<8x256xf32>
    %c0_i32_12 = arith.constant 0 : i32
    %c8_i32 = arith.constant 8 : i32
    %10 = arith.muli %c0_i32_12, %c8_i32 : i32
    %11 = tpu.assume_multiple %10, 8 : i32
    %12 = arith.index_cast %11 : i32 to index
    %c0_13 = arith.constant 0 : index
    %13 = vector.load %arg7[%12, %c0_13] : memref<64x1024xf32, #tpu.memory_space<vmem>>, vector<8x1024xf32>
    %cst_14 = arith.constant dense<0.000000e+00> : vector<8x1024xf32>
    %14 = tpu.matmul %8, %7, %cst_14 {dimension_numbers = #tpu.dot_dimension_numbers<[1], [0], [0], [1], [0, 0, 1, 1], [], []>} : vector<8x256xf32>, vector<256x1024xf32>, vector<8x1024xf32> -> vector<8x1024xf32>
    %15 = arith.addf %13, %14 : vector<8x1024xf32>
    %16 = vector.extract_strided_slice %15 {offsets = [0, 0], sizes = [8, 256], strides = [1, 1]} : vector<8x1024xf32> to vector<8x256xf32>
    %17 = arith.negf %16 : vector<8x256xf32>
    %18 = math.exp %17 : vector<8x256xf32>
    %cst_15 = arith.constant 1.000000e+00 : f32
    %19 = vector.broadcast %cst_15 : f32 to vector<8x256xf32>
    %20 = arith.addf %19, %18 : vector<8x256xf32>
    %21 = arith.divf %19, %20 : vector<8x256xf32>
    %22 = vector.extract_strided_slice %15 {offsets = [0, 256], sizes = [8, 256], strides = [1, 1]} : vector<8x1024xf32> to vector<8x256xf32>
    %23 = arith.negf %22 : vector<8x256xf32>
    %24 = math.exp %23 : vector<8x256xf32>
    %cst_16 = arith.constant 1.000000e+00 : f32
    %25 = vector.broadcast %cst_16 : f32 to vector<8x256xf32>
    %26 = arith.addf %25, %24 : vector<8x256xf32>
    %27 = arith.divf %25, %26 : vector<8x256xf32>
    %28 = vector.extract_strided_slice %15 {offsets = [0, 512], sizes = [8, 256], strides = [1, 1]} : vector<8x1024xf32> to vector<8x256xf32>
    %29 = math.tanh %28 : vector<8x256xf32>
    %30 = vector.extract_strided_slice %15 {offsets = [0, 768], sizes = [8, 256], strides = [1, 1]} : vector<8x1024xf32> to vector<8x256xf32>
    %31 = arith.negf %30 : vector<8x256xf32>
    %32 = math.exp %31 : vector<8x256xf32>
    %cst_17 = arith.constant 1.000000e+00 : f32
    %33 = vector.broadcast %cst_17 : f32 to vector<8x256xf32>
    %34 = arith.addf %33, %32 : vector<8x256xf32>
    %35 = arith.divf %33, %34 : vector<8x256xf32>
    %36 = arith.mulf %27, %9 : vector<8x256xf32>
    %37 = arith.mulf %21, %29 : vector<8x256xf32>
    %38 = arith.addf %36, %37 : vector<8x256xf32>
    %39 = math.tanh %38 : vector<8x256xf32>
    %40 = arith.mulf %35, %39 : vector<8x256xf32>
    %c1_i32 = arith.constant 1 : i32
    %c8_i32_18 = arith.constant 8 : i32
    %41 = arith.muli %c1_i32, %c8_i32_18 : i32
    %42 = tpu.assume_multiple %41, 8 : i32
    %43 = arith.index_cast %42 : i32 to index
    %c0_19 = arith.constant 0 : index
    %44 = vector.load %arg7[%43, %c0_19] : memref<64x1024xf32, #tpu.memory_space<vmem>>, vector<8x1024xf32>
    %cst_20 = arith.constant dense<0.000000e+00> : vector<8x1024xf32>
    %45 = tpu.matmul %40, %7, %cst_20 {dimension_numbers = #tpu.dot_dimension_numbers<[1], [0], [0], [1], [0, 0, 1, 1], [], []>} : vector<8x256xf32>, vector<256x1024xf32>, vector<8x1024xf32> -> vector<8x1024xf32>
    %46 = arith.addf %44, %45 : vector<8x1024xf32>
    %47 = vector.extract_strided_slice %46 {offsets = [0, 0], sizes = [8, 256], strides = [1, 1]} : vector<8x1024xf32> to vector<8x256xf32>
    %48 = arith.negf %47 : vector<8x256xf32>
    %49 = math.exp %48 : vector<8x256xf32>
    %cst_21 = arith.constant 1.000000e+00 : f32
    %50 = vector.broadcast %cst_21 : f32 to vector<8x256xf32>
    %51 = arith.addf %50, %49 : vector<8x256xf32>
    %52 = arith.divf %50, %51 : vector<8x256xf32>
    %53 = vector.extract_strided_slice %46 {offsets = [0, 256], sizes = [8, 256], strides = [1, 1]} : vector<8x1024xf32> to vector<8x256xf32>
    %54 = arith.negf %53 : vector<8x256xf32>
    %55 = math.exp %54 : vector<8x256xf32>
    %cst_22 = arith.constant 1.000000e+00 : f32
    %56 = vector.broadcast %cst_22 : f32 to vector<8x256xf32>
    %57 = arith.addf %56, %55 : vector<8x256xf32>
    %58 = arith.divf %56, %57 : vector<8x256xf32>
    %59 = vector.extract_strided_slice %46 {offsets = [0, 512], sizes = [8, 256], strides = [1, 1]} : vector<8x1024xf32> to vector<8x256xf32>
    %60 = math.tanh %59 : vector<8x256xf32>
    %61 = vector.extract_strided_slice %46 {offsets = [0, 768], sizes = [8, 256], strides = [1, 1]} : vector<8x1024xf32> to vector<8x256xf32>
    %62 = arith.negf %61 : vector<8x256xf32>
    %63 = math.exp %62 : vector<8x256xf32>
    %cst_23 = arith.constant 1.000000e+00 : f32
    %64 = vector.broadcast %cst_23 : f32 to vector<8x256xf32>
    %65 = arith.addf %64, %63 : vector<8x256xf32>
    %66 = arith.divf %64, %65 : vector<8x256xf32>
    %67 = arith.mulf %58, %38 : vector<8x256xf32>
    %68 = arith.mulf %52, %60 : vector<8x256xf32>
    %69 = arith.addf %67, %68 : vector<8x256xf32>
    %70 = math.tanh %69 : vector<8x256xf32>
    %71 = arith.mulf %66, %70 : vector<8x256xf32>
    %c2_i32 = arith.constant 2 : i32
    %c8_i32_24 = arith.constant 8 : i32
    %72 = arith.muli %c2_i32, %c8_i32_24 : i32
    %73 = tpu.assume_multiple %72, 8 : i32
    %74 = arith.index_cast %73 : i32 to index
    %c0_25 = arith.constant 0 : index
    %75 = vector.load %arg7[%74, %c0_25] : memref<64x1024xf32, #tpu.memory_space<vmem>>, vector<8x1024xf32>
    %cst_26 = arith.constant dense<0.000000e+00> : vector<8x1024xf32>
    %76 = tpu.matmul %71, %7, %cst_26 {dimension_numbers = #tpu.dot_dimension_numbers<[1], [0], [0], [1], [0, 0, 1, 1], [], []>} : vector<8x256xf32>, vector<256x1024xf32>, vector<8x1024xf32> -> vector<8x1024xf32>
    %77 = arith.addf %75, %76 : vector<8x1024xf32>
    %78 = vector.extract_strided_slice %77 {offsets = [0, 0], sizes = [8, 256], strides = [1, 1]} : vector<8x1024xf32> to vector<8x256xf32>
    %79 = arith.negf %78 : vector<8x256xf32>
    %80 = math.exp %79 : vector<8x256xf32>
    %cst_27 = arith.constant 1.000000e+00 : f32
    %81 = vector.broadcast %cst_27 : f32 to vector<8x256xf32>
    %82 = arith.addf %81, %80 : vector<8x256xf32>
    %83 = arith.divf %81, %82 : vector<8x256xf32>
    %84 = vector.extract_strided_slice %77 {offsets = [0, 256], sizes = [8, 256], strides = [1, 1]} : vector<8x1024xf32> to vector<8x256xf32>
    %85 = arith.negf %84 : vector<8x256xf32>
    %86 = math.exp %85 : vector<8x256xf32>
    %cst_28 = arith.constant 1.000000e+00 : f32
    %87 = vector.broadcast %cst_28 : f32 to vector<8x256xf32>
    %88 = arith.addf %87, %86 : vector<8x256xf32>
    %89 = arith.divf %87, %88 : vector<8x256xf32>
    %90 = vector.extract_strided_slice %77 {offsets = [0, 512], sizes = [8, 256], strides = [1, 1]} : vector<8x1024xf32> to vector<8x256xf32>
    %91 = math.tanh %90 : vector<8x256xf32>
    %92 = vector.extract_strided_slice %77 {offsets = [0, 768], sizes = [8, 256], strides = [1, 1]} : vector<8x1024xf32> to vector<8x256xf32>
    %93 = arith.negf %92 : vector<8x256xf32>
    %94 = math.exp %93 : vector<8x256xf32>
    %cst_29 = arith.constant 1.000000e+00 : f32
    %95 = vector.broadcast %cst_29 : f32 to vector<8x256xf32>
    %96 = arith.addf %95, %94 : vector<8x256xf32>
    %97 = arith.divf %95, %96 : vector<8x256xf32>
    %98 = arith.mulf %89, %69 : vector<8x256xf32>
    %99 = arith.mulf %83, %91 : vector<8x256xf32>
    %100 = arith.addf %98, %99 : vector<8x256xf32>
    %101 = math.tanh %100 : vector<8x256xf32>
    %102 = arith.mulf %97, %101 : vector<8x256xf32>
    %c3_i32 = arith.constant 3 : i32
    %c8_i32_30 = arith.constant 8 : i32
    %103 = arith.muli %c3_i32, %c8_i32_30 : i32
    %104 = tpu.assume_multiple %103, 8 : i32
    %105 = arith.index_cast %104 : i32 to index
    %c0_31 = arith.constant 0 : index
    %106 = vector.load %arg7[%105, %c0_31] : memref<64x1024xf32, #tpu.memory_space<vmem>>, vector<8x1024xf32>
    %cst_32 = arith.constant dense<0.000000e+00> : vector<8x1024xf32>
    %107 = tpu.matmul %102, %7, %cst_32 {dimension_numbers = #tpu.dot_dimension_numbers<[1], [0], [0], [1], [0, 0, 1, 1], [], []>} : vector<8x256xf32>, vector<256x1024xf32>, vector<8x1024xf32> -> vector<8x1024xf32>
    %108 = arith.addf %106, %107 : vector<8x1024xf32>
    %109 = vector.extract_strided_slice %108 {offsets = [0, 0], sizes = [8, 256], strides = [1, 1]} : vector<8x1024xf32> to vector<8x256xf32>
    %110 = arith.negf %109 : vector<8x256xf32>
    %111 = math.exp %110 : vector<8x256xf32>
    %cst_33 = arith.constant 1.000000e+00 : f32
    %112 = vector.broadcast %cst_33 : f32 to vector<8x256xf32>
    %113 = arith.addf %112, %111 : vector<8x256xf32>
    %114 = arith.divf %112, %113 : vector<8x256xf32>
    %115 = vector.extract_strided_slice %108 {offsets = [0, 256], sizes = [8, 256], strides = [1, 1]} : vector<8x1024xf32> to vector<8x256xf32>
    %116 = arith.negf %115 : vector<8x256xf32>
    %117 = math.exp %116 : vector<8x256xf32>
    %cst_34 = arith.constant 1.000000e+00 : f32
    %118 = vector.broadcast %cst_34 : f32 to vector<8x256xf32>
    %119 = arith.addf %118, %117 : vector<8x256xf32>
    %120 = arith.divf %118, %119 : vector<8x256xf32>
    %121 = vector.extract_strided_slice %108 {offsets = [0, 512], sizes = [8, 256], strides = [1, 1]} : vector<8x1024xf32> to vector<8x256xf32>
    %122 = math.tanh %121 : vector<8x256xf32>
    %123 = vector.extract_strided_slice %108 {offsets = [0, 768], sizes = [8, 256], strides = [1, 1]} : vector<8x1024xf32> to vector<8x256xf32>
    %124 = arith.negf %123 : vector<8x256xf32>
    %125 = math.exp %124 : vector<8x256xf32>
    %cst_35 = arith.constant 1.000000e+00 : f32
    %126 = vector.broadcast %cst_35 : f32 to vector<8x256xf32>
    %127 = arith.addf %126, %125 : vector<8x256xf32>
    %128 = arith.divf %126, %127 : vector<8x256xf32>
    %129 = arith.mulf %120, %100 : vector<8x256xf32>
    %130 = arith.mulf %114, %122 : vector<8x256xf32>
    %131 = arith.addf %129, %130 : vector<8x256xf32>
    %132 = math.tanh %131 : vector<8x256xf32>
    %133 = arith.mulf %128, %132 : vector<8x256xf32>
    %c4_i32 = arith.constant 4 : i32
    %c8_i32_36 = arith.constant 8 : i32
    %134 = arith.muli %c4_i32, %c8_i32_36 : i32
    %135 = tpu.assume_multiple %134, 8 : i32
    %136 = arith.index_cast %135 : i32 to index
    %c0_37 = arith.constant 0 : index
    %137 = vector.load %arg7[%136, %c0_37] : memref<64x1024xf32, #tpu.memory_space<vmem>>, vector<8x1024xf32>
    %cst_38 = arith.constant dense<0.000000e+00> : vector<8x1024xf32>
    %138 = tpu.matmul %133, %7, %cst_38 {dimension_numbers = #tpu.dot_dimension_numbers<[1], [0], [0], [1], [0, 0, 1, 1], [], []>} : vector<8x256xf32>, vector<256x1024xf32>, vector<8x1024xf32> -> vector<8x1024xf32>
    %139 = arith.addf %137, %138 : vector<8x1024xf32>
    %140 = vector.extract_strided_slice %139 {offsets = [0, 0], sizes = [8, 256], strides = [1, 1]} : vector<8x1024xf32> to vector<8x256xf32>
    %141 = arith.negf %140 : vector<8x256xf32>
    %142 = math.exp %141 : vector<8x256xf32>
    %cst_39 = arith.constant 1.000000e+00 : f32
    %143 = vector.broadcast %cst_39 : f32 to vector<8x256xf32>
    %144 = arith.addf %143, %142 : vector<8x256xf32>
    %145 = arith.divf %143, %144 : vector<8x256xf32>
    %146 = vector.extract_strided_slice %139 {offsets = [0, 256], sizes = [8, 256], strides = [1, 1]} : vector<8x1024xf32> to vector<8x256xf32>
    %147 = arith.negf %146 : vector<8x256xf32>
    %148 = math.exp %147 : vector<8x256xf32>
    %cst_40 = arith.constant 1.000000e+00 : f32
    %149 = vector.broadcast %cst_40 : f32 to vector<8x256xf32>
    %150 = arith.addf %149, %148 : vector<8x256xf32>
    %151 = arith.divf %149, %150 : vector<8x256xf32>
    %152 = vector.extract_strided_slice %139 {offsets = [0, 512], sizes = [8, 256], strides = [1, 1]} : vector<8x1024xf32> to vector<8x256xf32>
    %153 = math.tanh %152 : vector<8x256xf32>
    %154 = vector.extract_strided_slice %139 {offsets = [0, 768], sizes = [8, 256], strides = [1, 1]} : vector<8x1024xf32> to vector<8x256xf32>
    %155 = arith.negf %154 : vector<8x256xf32>
    %156 = math.exp %155 : vector<8x256xf32>
    %cst_41 = arith.constant 1.000000e+00 : f32
    %157 = vector.broadcast %cst_41 : f32 to vector<8x256xf32>
    %158 = arith.addf %157, %156 : vector<8x256xf32>
    %159 = arith.divf %157, %158 : vector<8x256xf32>
    %160 = arith.mulf %151, %131 : vector<8x256xf32>
    %161 = arith.mulf %145, %153 : vector<8x256xf32>
    %162 = arith.addf %160, %161 : vector<8x256xf32>
    %163 = math.tanh %162 : vector<8x256xf32>
    %164 = arith.mulf %159, %163 : vector<8x256xf32>
    %c5_i32 = arith.constant 5 : i32
    %c8_i32_42 = arith.constant 8 : i32
    %165 = arith.muli %c5_i32, %c8_i32_42 : i32
    %166 = tpu.assume_multiple %165, 8 : i32
    %167 = arith.index_cast %166 : i32 to index
    %c0_43 = arith.constant 0 : index
    %168 = vector.load %arg7[%167, %c0_43] : memref<64x1024xf32, #tpu.memory_space<vmem>>, vector<8x1024xf32>
    %cst_44 = arith.constant dense<0.000000e+00> : vector<8x1024xf32>
    %169 = tpu.matmul %164, %7, %cst_44 {dimension_numbers = #tpu.dot_dimension_numbers<[1], [0], [0], [1], [0, 0, 1, 1], [], []>} : vector<8x256xf32>, vector<256x1024xf32>, vector<8x1024xf32> -> vector<8x1024xf32>
    %170 = arith.addf %168, %169 : vector<8x1024xf32>
    %171 = vector.extract_strided_slice %170 {offsets = [0, 0], sizes = [8, 256], strides = [1, 1]} : vector<8x1024xf32> to vector<8x256xf32>
    %172 = arith.negf %171 : vector<8x256xf32>
    %173 = math.exp %172 : vector<8x256xf32>
    %cst_45 = arith.constant 1.000000e+00 : f32
    %174 = vector.broadcast %cst_45 : f32 to vector<8x256xf32>
    %175 = arith.addf %174, %173 : vector<8x256xf32>
    %176 = arith.divf %174, %175 : vector<8x256xf32>
    %177 = vector.extract_strided_slice %170 {offsets = [0, 256], sizes = [8, 256], strides = [1, 1]} : vector<8x1024xf32> to vector<8x256xf32>
    %178 = arith.negf %177 : vector<8x256xf32>
    %179 = math.exp %178 : vector<8x256xf32>
    %cst_46 = arith.constant 1.000000e+00 : f32
    %180 = vector.broadcast %cst_46 : f32 to vector<8x256xf32>
    %181 = arith.addf %180, %179 : vector<8x256xf32>
    %182 = arith.divf %180, %181 : vector<8x256xf32>
    %183 = vector.extract_strided_slice %170 {offsets = [0, 512], sizes = [8, 256], strides = [1, 1]} : vector<8x1024xf32> to vector<8x256xf32>
    %184 = math.tanh %183 : vector<8x256xf32>
    %185 = vector.extract_strided_slice %170 {offsets = [0, 768], sizes = [8, 256], strides = [1, 1]} : vector<8x1024xf32> to vector<8x256xf32>
    %186 = arith.negf %185 : vector<8x256xf32>
    %187 = math.exp %186 : vector<8x256xf32>
    %cst_47 = arith.constant 1.000000e+00 : f32
    %188 = vector.broadcast %cst_47 : f32 to vector<8x256xf32>
    %189 = arith.addf %188, %187 : vector<8x256xf32>
    %190 = arith.divf %188, %189 : vector<8x256xf32>
    %191 = arith.mulf %182, %162 : vector<8x256xf32>
    %192 = arith.mulf %176, %184 : vector<8x256xf32>
    %193 = arith.addf %191, %192 : vector<8x256xf32>
    %194 = math.tanh %193 : vector<8x256xf32>
    %195 = arith.mulf %190, %194 : vector<8x256xf32>
    %c6_i32 = arith.constant 6 : i32
    %c8_i32_48 = arith.constant 8 : i32
    %196 = arith.muli %c6_i32, %c8_i32_48 : i32
    %197 = tpu.assume_multiple %196, 8 : i32
    %198 = arith.index_cast %197 : i32 to index
    %c0_49 = arith.constant 0 : index
    %199 = vector.load %arg7[%198, %c0_49] : memref<64x1024xf32, #tpu.memory_space<vmem>>, vector<8x1024xf32>
    %cst_50 = arith.constant dense<0.000000e+00> : vector<8x1024xf32>
    %200 = tpu.matmul %195, %7, %cst_50 {dimension_numbers = #tpu.dot_dimension_numbers<[1], [0], [0], [1], [0, 0, 1, 1], [], []>} : vector<8x256xf32>, vector<256x1024xf32>, vector<8x1024xf32> -> vector<8x1024xf32>
    %201 = arith.addf %199, %200 : vector<8x1024xf32>
    %202 = vector.extract_strided_slice %201 {offsets = [0, 0], sizes = [8, 256], strides = [1, 1]} : vector<8x1024xf32> to vector<8x256xf32>
    %203 = arith.negf %202 : vector<8x256xf32>
    %204 = math.exp %203 : vector<8x256xf32>
    %cst_51 = arith.constant 1.000000e+00 : f32
    %205 = vector.broadcast %cst_51 : f32 to vector<8x256xf32>
    %206 = arith.addf %205, %204 : vector<8x256xf32>
    %207 = arith.divf %205, %206 : vector<8x256xf32>
    %208 = vector.extract_strided_slice %201 {offsets = [0, 256], sizes = [8, 256], strides = [1, 1]} : vector<8x1024xf32> to vector<8x256xf32>
    %209 = arith.negf %208 : vector<8x256xf32>
    %210 = math.exp %209 : vector<8x256xf32>
    %cst_52 = arith.constant 1.000000e+00 : f32
    %211 = vector.broadcast %cst_52 : f32 to vector<8x256xf32>
    %212 = arith.addf %211, %210 : vector<8x256xf32>
    %213 = arith.divf %211, %212 : vector<8x256xf32>
    %214 = vector.extract_strided_slice %201 {offsets = [0, 512], sizes = [8, 256], strides = [1, 1]} : vector<8x1024xf32> to vector<8x256xf32>
    %215 = math.tanh %214 : vector<8x256xf32>
    %216 = vector.extract_strided_slice %201 {offsets = [0, 768], sizes = [8, 256], strides = [1, 1]} : vector<8x1024xf32> to vector<8x256xf32>
    %217 = arith.negf %216 : vector<8x256xf32>
    %218 = math.exp %217 : vector<8x256xf32>
    %cst_53 = arith.constant 1.000000e+00 : f32
    %219 = vector.broadcast %cst_53 : f32 to vector<8x256xf32>
    %220 = arith.addf %219, %218 : vector<8x256xf32>
    %221 = arith.divf %219, %220 : vector<8x256xf32>
    %222 = arith.mulf %213, %193 : vector<8x256xf32>
    %223 = arith.mulf %207, %215 : vector<8x256xf32>
    %224 = arith.addf %222, %223 : vector<8x256xf32>
    %225 = math.tanh %224 : vector<8x256xf32>
    %226 = arith.mulf %221, %225 : vector<8x256xf32>
    %c7_i32 = arith.constant 7 : i32
    %c8_i32_54 = arith.constant 8 : i32
    %227 = arith.muli %c7_i32, %c8_i32_54 : i32
    %228 = tpu.assume_multiple %227, 8 : i32
    %229 = arith.index_cast %228 : i32 to index
    %c0_55 = arith.constant 0 : index
    %230 = vector.load %arg7[%229, %c0_55] : memref<64x1024xf32, #tpu.memory_space<vmem>>, vector<8x1024xf32>
    %cst_56 = arith.constant dense<0.000000e+00> : vector<8x1024xf32>
    %231 = tpu.matmul %226, %7, %cst_56 {dimension_numbers = #tpu.dot_dimension_numbers<[1], [0], [0], [1], [0, 0, 1, 1], [], []>} : vector<8x256xf32>, vector<256x1024xf32>, vector<8x1024xf32> -> vector<8x1024xf32>
    %232 = arith.addf %230, %231 : vector<8x1024xf32>
    %233 = vector.extract_strided_slice %232 {offsets = [0, 0], sizes = [8, 256], strides = [1, 1]} : vector<8x1024xf32> to vector<8x256xf32>
    %234 = arith.negf %233 : vector<8x256xf32>
    %235 = math.exp %234 : vector<8x256xf32>
    %cst_57 = arith.constant 1.000000e+00 : f32
    %236 = vector.broadcast %cst_57 : f32 to vector<8x256xf32>
    %237 = arith.addf %236, %235 : vector<8x256xf32>
    %238 = arith.divf %236, %237 : vector<8x256xf32>
    %239 = vector.extract_strided_slice %232 {offsets = [0, 256], sizes = [8, 256], strides = [1, 1]} : vector<8x1024xf32> to vector<8x256xf32>
    %240 = arith.negf %239 : vector<8x256xf32>
    %241 = math.exp %240 : vector<8x256xf32>
    %cst_58 = arith.constant 1.000000e+00 : f32
    %242 = vector.broadcast %cst_58 : f32 to vector<8x256xf32>
    %243 = arith.addf %242, %241 : vector<8x256xf32>
    %244 = arith.divf %242, %243 : vector<8x256xf32>
    %245 = vector.extract_strided_slice %232 {offsets = [0, 512], sizes = [8, 256], strides = [1, 1]} : vector<8x1024xf32> to vector<8x256xf32>
    %246 = math.tanh %245 : vector<8x256xf32>
    %247 = vector.extract_strided_slice %232 {offsets = [0, 768], sizes = [8, 256], strides = [1, 1]} : vector<8x1024xf32> to vector<8x256xf32>
    %248 = arith.negf %247 : vector<8x256xf32>
    %249 = math.exp %248 : vector<8x256xf32>
    %cst_59 = arith.constant 1.000000e+00 : f32
    %250 = vector.broadcast %cst_59 : f32 to vector<8x256xf32>
    %251 = arith.addf %250, %249 : vector<8x256xf32>
    %252 = arith.divf %250, %251 : vector<8x256xf32>
    %253 = arith.mulf %244, %224 : vector<8x256xf32>
    %254 = arith.mulf %238, %246 : vector<8x256xf32>
    %255 = arith.addf %253, %254 : vector<8x256xf32>
    %256 = math.tanh %255 : vector<8x256xf32>
    %257 = arith.mulf %252, %256 : vector<8x256xf32>
    %c8_i32_60 = arith.constant 8 : i32
    %c0_61 = arith.constant 0 : index
    %c0_62 = arith.constant 0 : index
    %258 = vector.load %arg8[%c0_61, %c0_62] : memref<8x256xf32, #tpu.memory_space<vmem>>, vector<8x256xf32>
    tpu.vector_store %arg8[%c0_61, %c0_62], %257 {strides = array<i32>} : memref<8x256xf32, #tpu.memory_space<vmem>>, vector<8x256xf32>,
    %c0_63 = arith.constant 0 : index
    %c0_64 = arith.constant 0 : index
    %259 = vector.load %arg9[%c0_63, %c0_64] : memref<8x256xf32, #tpu.memory_space<vmem>>, vector<8x256xf32>
    tpu.vector_store %arg9[%c0_63, %c0_64], %255 {strides = array<i32>} : memref<8x256xf32, #tpu.memory_space<vmem>>, vector<8x256xf32>,
    %c0_i32_65 = arith.constant 0 : i32
    %260 = arith.cmpi eq, %arg0, %c0_i32_65 : i32
    %261 = arith.extui %260 : i1 to i32
    %c0_i32_66 = arith.constant 0 : i32
    %262 = arith.cmpi ne, %261, %c0_i32_66 : i32
    scf.if %262 {
      %c0_67 = arith.constant 0 : index
      %c0_68 = arith.constant 0 : index
      %263 = vector.load %arg4[%c0_67, %c0_68] : memref<256x128xf32, #tpu.memory_space<vmem>>, vector<256x128xf32>
      %cst_69 = arith.constant dense<0.000000e+00> : vector<8x128xf32>
      %264 = tpu.matmul %257, %263, %cst_69 {dimension_numbers = #tpu.dot_dimension_numbers<[1], [0], [0], [1], [0, 0, 1, 1], [], []>} : vector<8x256xf32>, vector<256x128xf32>, vector<8x128xf32> -> vector<8x128xf32>
      %c0_70 = arith.constant 0 : index
      %c0_71 = arith.constant 0 : index
      %265 = vector.load %arg5[%c0_70, %c0_71] : memref<1x128xf32, #tpu.memory_space<vmem>>, vector<1x128xf32>
      %266 = vector.broadcast %265 : vector<1x128xf32> to vector<8x128xf32>
      %267 = arith.addf %264, %266 : vector<8x128xf32>
      %c0_72 = arith.constant 0 : index
      %c0_73 = arith.constant 0 : index
      %268 = vector.load %arg6[%c0_72, %c0_73] : memref<8x128xf32, #tpu.memory_space<vmem>>, vector<8x128xf32>
      tpu.vector_store %arg6[%c0_72, %c0_73], %267 {strides = array<i32>} : memref<8x128xf32, #tpu.memory_space<vmem>>, vector<8x128xf32>,
    } else {
    }
    return
  }
  func.func @transform_0(%arg0: i32) -> (i32, i32) {
    %c0_i32 = arith.constant 0 : i32
    %c0_i32_0 = arith.constant 0 : i32
    return %arg0, %c0_i32 : i32, i32
  }
  func.func @transform_1(%arg0: i32) -> (i32, i32) {
    %c0_i32 = arith.constant 0 : i32
    %c0_i32_0 = arith.constant 0 : i32
    %c0_i32_1 = arith.constant 0 : i32
    return %c0_i32, %c0_i32_0 : i32, i32
  }
  func.func @transform_2(%arg0: i32) -> (i32, i32) {
    %c0_i32 = arith.constant 0 : i32
    %c0_i32_0 = arith.constant 0 : i32
    %c0_i32_1 = arith.constant 0 : i32
    return %c0_i32, %c0_i32_0 : i32, i32
  }
  func.func @transform_3(%arg0: i32) -> (i32, i32) {
    %c0_i32 = arith.constant 0 : i32
    %c0_i32_0 = arith.constant 0 : i32
    %c0_i32_1 = arith.constant 0 : i32
    return %c0_i32, %c0_i32_0 : i32, i32
  }
  func.func @transform_4(%arg0: i32) -> (i32, i32) {
    %c0_i32 = arith.constant 0 : i32
    %c0_i32_0 = arith.constant 0 : i32
    %c0_i32_1 = arith.constant 0 : i32
    return %c0_i32, %c0_i32_0 : i32, i32
  }
  func.func @transform_5(%arg0: i32) -> (i32, i32) {
    %c0_i32 = arith.constant 0 : i32
    %c0_i32_0 = arith.constant 0 : i32
    %c0_i32_1 = arith.constant 0 : i32
    return %c0_i32, %c0_i32_0 : i32, i32
  }
}

</mosaic_0001>

<llo_original>
// kernel: tpu_custom_call.1
$region0: #{tpu_custom_call.1}
  #allocation0 [shape = 'u32[]', space=smem, size = 0x4, offset = 0x4, fixed_abs, tag = 'smem constant byte address 0x4 - core index']
  #allocation1 [shape = 'u32[72,128]{1,0:T(1,128)}', space=vmem, size = 0x9000, scoped, tag = 'internal scratch']
  #allocation2 [shape = 'f32[64,1024]{1,0:T(8,128)}', space=vmem, size = 0x40000, scoped, tag = 'scratch operand']
  #allocation3 [shape = 'f32[8,256]{1,0:T(8,128)}', space=vmem, size = 0x2000, scoped, tag = 'scratch operand']
  #allocation4 [shape = 'f32[8,256]{1,0:T(8,128)}', space=vmem, size = 0x2000, scoped, tag = 'scratch operand']
  %s0 = inlined_call_operand.vmem [shape: f32[64,33], index: 0, kind: input, shape index: {}]
  %s1 = inlined_call_operand.hbm [shape: f32[33,1024], index: 1, kind: input, shape index: {}]
  %s2 = inlined_call_operand.hbm [shape: f32[256,1024], index: 2, kind: input, shape index: {}]
  %s3 = inlined_call_operand.hbm [shape: f32[256,128], index: 3, kind: input, shape index: {}]
  %s4 = inlined_call_operand.vmem [shape: f32[1,128], index: 4, kind: input, shape index: {}]
  %s5 = inlined_call_operand.hbm [shape: f32[8,128], index: 5, kind: output, shape index: {}]
  %s6 = sld [smem:[#allocation0]]
  $region50: #{tpu_custom_call.1} parent=0
    _
  %s8 = ssub.s32 1, %s6
  %s9 = scalar_select 0, %s8, %s6
  $region1: #{tpu_custom_call.1} parent=0
    #allocation5 [shape = 'u8[163840]{0}', space=vmem, size = 0x28000, scoped, tag = 'input window, operand 1, single buffered']
    #allocation6 [shape = 's32[1]{0}', space=sflag, size = 0x4, scoped, tag = 'scoped memory for tpu_custom_call.1']
    #allocation7 [shape = 's32[1]{0}', space=sflag, size = 0x4, scoped, tag = 'scoped memory for tpu_custom_call.1']
    #allocation8 [shape = 'u8[1048576]{0}', space=vmem, size = 0x100000, scoped, tag = 'input window, operand 2, single buffered']
    #allocation9 [shape = 's32[1]{0}', space=sflag, size = 0x4, scoped, tag = 'scoped memory for tpu_custom_call.1']
    #allocation10 [shape = 'u8[131072]{0}', space=vmem, size = 0x20000, scoped, tag = 'input window, operand 3, single buffered']
    #allocation11 [shape = 'u8[4096]{0}', space=vmem, size = 0x1000, scoped, tag = 'output window, operand 0, single buffered']
    %10 = vsyncpa [#allocation6], 0
    %11 = vsyncpa [#allocation9], 0
    %12 = vsyncpa [#allocation7], 0
    // Predicated region
    $region2: #{tpu_custom_call.1} parent=1 // pred_check
      _
    $region3: #{tpu_custom_call.1} parent=1 // pred_check_branch
      %14 = sbr.rel (0) target = $region5
    $region4: #{tpu_custom_call.1} parent=1 // pred_region
      _
    $region5: #{tpu_custom_call.1} parent=1 // pred_fallthru
      _
    // Predicated region
    $region6: #{tpu_custom_call.1} parent=1 // pred_check
      _
    $region7: #{tpu_custom_call.1} parent=1 // pred_check_branch
      %16 = sbr.rel (0) target = $region9
    $region8: #{tpu_custom_call.1} parent=1 // pred_region
      %18 = vsyncadd [#allocation6], 0
      %s19 = sshll.u32 %s1, 4
      %s20 = int_to_ptr.hbm [resolvable:$true] %s19
      %s21 = sshll.u32 [#allocation5], 4
      %s22 = int_to_ptr.vmem [resolvable:$true] %s21
      %27 = dma.hbm_to_vmem [thread:$0]  %s20, 5120, %s22, [#allocation6], 1024, 1024, 64
    $region9: #{tpu_custom_call.1} parent=1 // pred_fallthru
      _
    // Predicated region
    $region10: #{tpu_custom_call.1} parent=1 // pred_check
      _
    $region11: #{tpu_custom_call.1} parent=1 // pred_check_branch
      %29 = sbr.rel (0) target = $region13
    $region12: #{tpu_custom_call.1} parent=1 // pred_region
      %31 = vsyncadd [#allocation9], 0
      %s32 = sshll.u32 %s2, 4
      %s33 = int_to_ptr.hbm [resolvable:$true] %s32
      %s34 = sshll.u32 [#allocation8], 4
      %s35 = int_to_ptr.vmem [resolvable:$true] %s34
      %40 = dma.hbm_to_vmem [thread:$0]  %s33, 32768, %s35, [#allocation9], 1024, 1024, 64
    $region13: #{tpu_custom_call.1} parent=1 // pred_fallthru
      _
    // Predicated region
    $region14: #{tpu_custom_call.1} parent=1 // pred_check
      _
    $region15: #{tpu_custom_call.1} parent=1 // pred_check_branch
      %42 = sbr.rel (0) target = $region17
    $region16: #{tpu_custom_call.1} parent=1 // pred_region
      %44 = vsyncadd [#allocation9], 0
      %s45 = sshll.u32 %s3, 4
      %s46 = int_to_ptr.hbm [resolvable:$true] %s45
      %s47 = sshll.u32 [#allocation10], 4
      %s48 = int_to_ptr.vmem [resolvable:$true] %s47
      %53 = dma.hbm_to_vmem [thread:$0]  %s46, 4096, %s48, [#allocation9], 128, 128, 8
    $region17: #{tpu_custom_call.1} parent=1 // pred_fallthru
      _
    // Predicated region
    $region18: #{tpu_custom_call.1} parent=1 // pred_check
      _
    $region19: #{tpu_custom_call.1} parent=1 // pred_check_branch
      %55 = sbr.rel (0) target = $region21
    $region20: #{tpu_custom_call.1} parent=1 // pred_region
      _
    $region21: #{tpu_custom_call.1} parent=1 // pred_fallthru
      _
    // Predicated region
    $region22: #{tpu_custom_call.1} parent=1 // pred_check
      _
    $region23: #{tpu_custom_call.1} parent=1 // pred_check_branch
      %57 = sbr.rel (0) target = $region25
    $region24: #{tpu_custom_call.1} parent=1 // pred_region
      %59 = dma.done [#allocation6], 5120
    $region25: #{tpu_custom_call.1} parent=1 // pred_fallthru
      _
    // Predicated region
    $region26: #{tpu_custom_call.1} parent=1 // pred_check
      _
    $region27: #{tpu_custom_call.1} parent=1 // pred_check_branch
      %61 = sbr.rel (0) target = $region29
    $region28: #{tpu_custom_call.1} parent=1 // pred_region
      %63 = dma.done [#allocation9], 32768
    $region29: #{tpu_custom_call.1} parent=1 // pred_fallthru
      _
    // Predicated region
    $region30: #{tpu_custom_call.1} parent=1 // pred_check
      _
    $region31: #{tpu_custom_call.1} parent=1 // pred_check_branch
      %65 = sbr.rel (0) target = $region33
    $region32: #{tpu_custom_call.1} parent=1 // pred_region
      %67 = dma.done [#allocation9], 4096
    $region33: #{tpu_custom_call.1} parent=1 // pred_fallthru
      _
    %p68 = scmp.eq.s32.totalorder 0, 0
    // Predicated region
    $region34: #{tpu_custom_call.1} parent=1 // pred_check
      %p69 = pneg %p68
    $region35: #{tpu_custom_call.1} parent=1 // pred_check_branch
      %71 = sbr.rel (%p69) target = $region37
    $region36: #{tpu_custom_call.1} parent=1 // pred_region
      %72 = vst [vmem:[#allocation3] sm:$0xff] 0.0
      %73 = vst [vmem:[#allocation3 + $0x8] sm:$0xff] 0.0
      %74 = vst [vmem:[#allocation4] sm:$0xff] 0.0
      %75 = vst [vmem:[#allocation4 + $0x8] sm:$0xff] 0.0
    $region37: #{tpu_custom_call.1} parent=1 // pred_fallthru
      _
    %v76 = vld [vmem:[%s0] sm:$0xff]
    %v77 = vld [vmem:[%s0 + $0x8] sm:$0xff]
    %v78 = vld [vmem:[%s0 + $0x10] sm:$0xff]
    %v79 = vld [vmem:[%s0 + $0x18] sm:$0xff]
    %v80 = vld [vmem:[%s0 + $0x20] sm:$0xff]
    %v81 = vld [vmem:[%s0 + $0x28] sm:$0xff]
    %v82 = vld [vmem:[%s0 + $0x30] sm:$0xff]
    %v83 = vld [vmem:[%s0 + $0x38] sm:$0xff]
    %v84 = vld [vmem:[#allocation5] sm:$0xff]
    %v85 = vld [vmem:[#allocation5 + $0x8] sm:$0xff]
    %v86 = vld [vmem:[#allocation5 + $0x10] sm:$0xff]
    %v87 = vld [vmem:[#allocation5 + $0x18] sm:$0xff]
    %v88 = vld [vmem:[#allocation5 + $0x20] sm:$0xff]
    %v89 = vld [vmem:[#allocation5 + $0x28] sm:$0xff]
    %v90 = vld [vmem:[#allocation5 + $0x30] sm:$0xff]
    %v91 = vld [vmem:[#allocation5 + $0x38] sm:$0xff]
    %v92 = vld [vmem:[#allocation5 + $0x40] sm:$0xff]
    %v93 = vld [vmem:[#allocation5 + $0x48] sm:$0xff]
    %v94 = vld [vmem:[#allocation5 + $0x50] sm:$0xff]
    %v95 = vld [vmem:[#allocation5 + $0x58] sm:$0xff]
    %v96 = vld [vmem:[#allocation5 + $0x60] sm:$0xff]
    %v97 = vld [vmem:[#allocation5 + $0x68] sm:$0xff]
    %v98 = vld [vmem:[#allocation5 + $0x70] sm:$0xff]
    %v99 = vld [vmem:[#allocation5 + $0x78] sm:$0xff]
    %v100 = vld [vmem:[#allocation5 + $0x80] sm:$0xff]
    %v101 = vld [vmem:[#allocation5 + $0x88] sm:$0xff]
    %v102 = vld [vmem:[#allocation5 + $0x90] sm:$0xff]
    %v103 = vld [vmem:[#allocation5 + $0x98] sm:$0xff]
    %v104 = vld [vmem:[#allocation5 + $0xa0] sm:$0xff]
    %v105 = vld [vmem:[#allocation5 + $0xa8] sm:$0xff]
    %v106 = vld [vmem:[#allocation5 + $0xb0] sm:$0xff]
    %v107 = vld [vmem:[#allocation5 + $0xb8] sm:$0xff]
    %v108 = vld [vmem:[#allocation5 + $0xc0] sm:$0xff]
    %v109 = vld [vmem:[#allocation5 + $0xc8] sm:$0xff]
    %v110 = vld [vmem:[#allocation5 + $0xd0] sm:$0xff]
    %v111 = vld [vmem:[#allocation5 + $0xd8] sm:$0xff]
    %v112 = vld [vmem:[#allocation5 + $0xe0] sm:$0xff]
    %v113 = vld [vmem:[#allocation5 + $0xe8] sm:$0xff]
    %v114 = vld [vmem:[#allocation5 + $0xf0] sm:$0xff]
    %v115 = vld [vmem:[#allocation5 + $0xf8] sm:$0xff]
    %v116 = vld [vmem:[#allocation5 + $0x100] sm:$0x1]
    %v117 = vld [vmem:[#allocation5 + $0x108] sm:$0x1]
    %v118 = vld [vmem:[#allocation5 + $0x110] sm:$0x1]
    %v119 = vld [vmem:[#allocation5 + $0x118] sm:$0x1]
    %v120 = vld [vmem:[#allocation5 + $0x120] sm:$0x1]
    %v121 = vld [vmem:[#allocation5 + $0x128] sm:$0x1]
    %v122 = vld [vmem:[#allocation5 + $0x130] sm:$0x1]
    %v123 = vld [vmem:[#allocation5 + $0x138] sm:$0x1]
    %vm124 = vcmask 269312
    %v126 = vsel %vm124, %v76, 0
    %v129 = vsel %vm124, %v77, 0
    %v132 = vsel %vm124, %v78, 0
    %v135 = vsel %vm124, %v79, 0
    %v138 = vsel %vm124, %v80, 0
    %v141 = vsel %vm124, %v81, 0
    %v144 = vsel %vm124, %v82, 0
    %v147 = vsel %vm124, %v83, 0
    %vm149 = vcmask 1040384
    %v151 = vsel %vm149, %v116, 0
    %v154 = vsel %vm149, %v117, 0
    %v157 = vsel %vm149, %v118, 0
    %v160 = vsel %vm149, %v119, 0
    %v163 = vsel %vm149, %v120, 0
    %v166 = vsel %vm149, %v121, 0
    %v169 = vsel %vm149, %v122, 0
    %v172 = vsel %vm149, %v123, 0
    %174 = vmatpush.msra.mxu0 0.0
    %175 = vmatpush.msra.mxu0 0.0
    %176 = vmatpush.msra.mxu0 0.0
    %177 = vmatpush.msra.mxu0 0.0
    %178 = vmatpush.msra.mxu0 0.0
    %179 = vmatpush.msra.mxu0 0.0
    %180 = vmatpush.msra.mxu0 0.0
    %181 = vmatpush.msra.mxu0 0.0
    %182 = vmatpush.msra.mxu0 0.0
    %183 = vmatpush.msra.mxu0 0.0
    %184 = vmatpush.msra.mxu0 0.0
    %185 = vmatpush.msra.mxu0 %v151
    %186 = vmatpush.msra.mxu0 %v108
    %187 = vmatpush.msra.mxu0 %v100
    %188 = vmatpush.msra.mxu0 %v92
    %189 = vmatpush.msra.mxu0 %v84
    %190 = vmatmul.f32.gmra.mxu0 %v126
    %v191 = vpop.f32.mrf.mxu0
    %v192 = vadd.f32 0.0, %v191
    %193 = vmatmul.f32.gmra.mxu0 %v129
    %v194 = vpop.f32.mrf.mxu0
    %v195 = vadd.f32 0.0, %v194
    %196 = vmatmul.f32.gmra.mxu0 %v132
    %v197 = vpop.f32.mrf.mxu0
    %v198 = vadd.f32 0.0, %v197
    %199 = vmatmul.f32.gmra.mxu0 %v135
    %v200 = vpop.f32.mrf.mxu0
    %v201 = vadd.f32 0.0, %v200
    %202 = vmatmul.f32.gmra.mxu0 %v138
    %v203 = vpop.f32.mrf.mxu0
    %v204 = vadd.f32 0.0, %v203
    %205 = vmatmul.f32.gmra.mxu0 %v141
    %v206 = vpop.f32.mrf.mxu0
    %v207 = vadd.f32 0.0, %v206
    %208 = vmatmul.f32.gmra.mxu0 %v144
    %v209 = vpop.f32.mrf.mxu0
    %v210 = vadd.f32 0.0, %v209
    %211 = vmatmul.f32.gmra.mxu0 %v147
    %v212 = vpop.f32.mrf.mxu0
    %v213 = vadd.f32 0.0, %v212
    %214 = vdwg.mxu0
    %215 = vmatpush.msra.mxu0 0.0
    %216 = vmatpush.msra.mxu0 0.0
    %217 = vmatpush.msra.mxu0 0.0
    %218 = vmatpush.msra.mxu0 0.0
    %219 = vmatpush.msra.mxu0 0.0
    %220 = vmatpush.msra.mxu0 0.0
    %221 = vmatpush.msra.mxu0 0.0
    %222 = vmatpush.msra.mxu0 0.0
    %223 = vmatpush.msra.mxu0 0.0
    %224 = vmatpush.msra.mxu0 0.0
    %225 = vmatpush.msra.mxu0 0.0
    %226 = vmatpush.msra.mxu0 %v154
    %227 = vmatpush.msra.mxu0 %v109
    %228 = vmatpush.msra.mxu0 %v101
    %229 = vmatpush.msra.mxu0 %v93
    %230 = vmatpush.msra.mxu0 %v85
    %231 = vmatmul.f32.gmra.mxu0 %v126
    %v232 = vpop.f32.mrf.mxu0
    %v233 = vadd.f32 0.0, %v232
    %234 = vmatmul.f32.gmra.mxu0 %v129
    %v235 = vpop.f32.mrf.mxu0
    %v236 = vadd.f32 0.0, %v235
    %237 = vmatmul.f32.gmra.mxu0 %v132
    %v238 = vpop.f32.mrf.mxu0
    %v239 = vadd.f32 0.0, %v238
    %240 = vmatmul.f32.gmra.mxu0 %v135
    %v241 = vpop.f32.mrf.mxu0
    %v242 = vadd.f32 0.0, %v241
    %243 = vmatmul.f32.gmra.mxu0 %v138
    %v244 = vpop.f32.mrf.mxu0
    %v245 = vadd.f32 0.0, %v244
    %246 = vmatmul.f32.gmra.mxu0 %v141
    %v247 = vpop.f32.mrf.mxu0
    %v248 = vadd.f32 0.0, %v247
    %249 = vmatmul.f32.gmra.mxu0 %v144
    %v250 = vpop.f32.mrf.mxu0
    %v251 = vadd.f32 0.0, %v250
    %252 = vmatmul.f32.gmra.mxu0 %v147
    %v253 = vpop.f32.mrf.mxu0
    %v254 = vadd.f32 0.0, %v253
    %255 = vdwg.mxu0
    %256 = vmatpush.msra.mxu0 0.0
    %257 = vmatpush.msra.mxu0 0.0
    %258 = vmatpush.msra.mxu0 0.0
    %259 = vmatpush.msra.mxu0 0.0
    %260 = vmatpush.msra.mxu0 0.0
    %261 = vmatpush.msra.mxu0 0.0
    %262 = vmatpush.msra.mxu0 0.0
    %263 = vmatpush.msra.mxu0 0.0
    %264 = vmatpush.msra.mxu0 0.0
    %265 = vmatpush.msra.mxu0 0.0
    %266 = vmatpush.msra.mxu0 0.0
    %267 = vmatpush.msra.mxu0 %v157
    %268 = vmatpush.msra.mxu0 %v110
    %269 = vmatpush.msra.mxu0 %v102
    %270 = vmatpush.msra.mxu0 %v94
    %271 = vmatpush.msra.mxu0 %v86
    %272 = vmatmul.f32.gmra.mxu0 %v126
    %v273 = vpop.f32.mrf.mxu0
    %v274 = vadd.f32 0.0, %v273
    %275 = vmatmul.f32.gmra.mxu0 %v129
    %v276 = vpop.f32.mrf.mxu0
    %v277 = vadd.f32 0.0, %v276
    %278 = vmatmul.f32.gmra.mxu0 %v132
    %v279 = vpop.f32.mrf.mxu0
    %v280 = vadd.f32 0.0, %v279
    %281 = vmatmul.f32.gmra.mxu0 %v135
    %v282 = vpop.f32.mrf.mxu0
    %v283 = vadd.f32 0.0, %v282
    %284 = vmatmul.f32.gmra.mxu0 %v138
    %v285 = vpop.f32.mrf.mxu0
    %v286 = vadd.f32 0.0, %v285
    %287 = vmatmul.f32.gmra.mxu0 %v141
    %v288 = vpop.f32.mrf.mxu0
    %v289 = vadd.f32 0.0, %v288
    %290 = vmatmul.f32.gmra.mxu0 %v144
    %v291 = vpop.f32.mrf.mxu0
    %v292 = vadd.f32 0.0, %v291
    %293 = vmatmul.f32.gmra.mxu0 %v147
    %v294 = vpop.f32.mrf.mxu0
    %v295 = vadd.f32 0.0, %v294
    %296 = vdwg.mxu0
    %297 = vmatpush.msra.mxu0 0.0
    %298 = vmatpush.msra.mxu0 0.0
    %299 = vmatpush.msra.mxu0 0.0
    %300 = vmatpush.msra.mxu0 0.0
    %301 = vmatpush.msra.mxu0 0.0
    %302 = vmatpush.msra.mxu0 0.0
    %303 = vmatpush.msra.mxu0 0.0
    %304 = vmatpush.msra.mxu0 0.0
    %305 = vmatpush.msra.mxu0 0.0
    %306 = vmatpush.msra.mxu0 0.0
    %307 = vmatpush.msra.mxu0 0.0
    %308 = vmatpush.msra.mxu0 %v160
    %309 = vmatpush.msra.mxu0 %v111
    %310 = vmatpush.msra.mxu0 %v103
    %311 = vmatpush.msra.mxu0 %v95
    %312 = vmatpush.msra.mxu0 %v87
    %313 = vmatmul.f32.gmra.mxu0 %v126
    %v314 = vpop.f32.mrf.mxu0
    %v315 = vadd.f32 0.0, %v314
    %316 = vmatmul.f32.gmra.mxu0 %v129
    %v317 = vpop.f32.mrf.mxu0
    %v318 = vadd.f32 0.0, %v317
    %319 = vmatmul.f32.gmra.mxu0 %v132
    %v320 = vpop.f32.mrf.mxu0
    %v321 = vadd.f32 0.0, %v320
    %322 = vmatmul.f32.gmra.mxu0 %v135
    %v323 = vpop.f32.mrf.mxu0
    %v324 = vadd.f32 0.0, %v323
    %325 = vmatmul.f32.gmra.mxu0 %v138
    %v326 = vpop.f32.mrf.mxu0
    %v327 = vadd.f32 0.0, %v326
    %328 = vmatmul.f32.gmra.mxu0 %v141
    %v329 = vpop.f32.mrf.mxu0
    %v330 = vadd.f32 0.0, %v329
    %331 = vmatmul.f32.gmra.mxu0 %v144
    %v332 = vpop.f32.mrf.mxu0
    %v333 = vadd.f32 0.0, %v332
    %334 = vmatmul.f32.gmra.mxu0 %v147
    %v335 = vpop.f32.mrf.mxu0
    %v336 = vadd.f32 0.0, %v335
    %337 = vdwg.mxu0
    %338 = vmatpush.msra.mxu0 0.0
    %339 = vmatpush.msra.mxu0 0.0
    %340 = vmatpush.msra.mxu0 0.0
    %341 = vmatpush.msra.mxu0 0.0
    %342 = vmatpush.msra.mxu0 0.0
    %343 = vmatpush.msra.mxu0 0.0
    %344 = vmatpush.msra.mxu0 0.0
    %345 = vmatpush.msra.mxu0 0.0
    %346 = vmatpush.msra.mxu0 0.0
    %347 = vmatpush.msra.mxu0 0.0
    %348 = vmatpush.msra.mxu0 0.0
    %349 = vmatpush.msra.mxu0 %v163
    %350 = vmatpush.msra.mxu0 %v112
    %351 = vmatpush.msra.mxu0 %v104
    %352 = vmatpush.msra.mxu0 %v96
    %353 = vmatpush.msra.mxu0 %v88
    %354 = vmatmul.f32.gmra.mxu0 %v126
    %v355 = vpop.f32.mrf.mxu0
    %v356 = vadd.f32 0.0, %v355
    %357 = vmatmul.f32.gmra.mxu0 %v129
    %v358 = vpop.f32.mrf.mxu0
    %v359 = vadd.f32 0.0, %v358
    %360 = vmatmul.f32.gmra.mxu0 %v132
    %v361 = vpop.f32.mrf.mxu0
    %v362 = vadd.f32 0.0, %v361
    %363 = vmatmul.f32.gmra.mxu0 %v135
    %v364 = vpop.f32.mrf.mxu0
    %v365 = vadd.f32 0.0, %v364
    %366 = vmatmul.f32.gmra.mxu0 %v138
    %v367 = vpop.f32.mrf.mxu0
    %v368 = vadd.f32 0.0, %v367
    %369 = vmatmul.f32.gmra.mxu0 %v141
    %v370 = vpop.f32.mrf.mxu0
    %v371 = vadd.f32 0.0, %v370
    %372 = vmatmul.f32.gmra.mxu0 %v144
    %v373 = vpop.f32.mrf.mxu0
    %v374 = vadd.f32 0.0, %v373
    %375 = vmatmul.f32.gmra.mxu0 %v147
    %v376 = vpop.f32.mrf.mxu0
    %v377 = vadd.f32 0.0, %v376
    %378 = vdwg.mxu0
    %379 = vmatpush.msra.mxu0 0.0
    %380 = vmatpush.msra.mxu0 0.0
    %381 = vmatpush.msra.mxu0 0.0
    %382 = vmatpush.msra.mxu0 0.0
    %383 = vmatpush.msra.mxu0 0.0
    %384 = vmatpush.msra.mxu0 0.0
    %385 = vmatpush.msra.mxu0 0.0
    %386 = vmatpush.msra.mxu0 0.0
    %387 = vmatpush.msra.mxu0 0.0
    %388 = vmatpush.msra.mxu0 0.0
    %389 = vmatpush.msra.mxu0 0.0
    %390 = vmatpush.msra.mxu0 %v166
    %391 = vmatpush.msra.mxu0 %v113
    %392 = vmatpush.msra.mxu0 %v105
    %393 = vmatpush.msra.mxu0 %v97
    %394 = vmatpush.msra.mxu0 %v89
    %395 = vmatmul.f32.gmra.mxu0 %v126
    %v396 = vpop.f32.mrf.mxu0
    %v397 = vadd.f32 0.0, %v396
    %398 = vmatmul.f32.gmra.mxu0 %v129
    %v399 = vpop.f32.mrf.mxu0
    %v400 = vadd.f32 0.0, %v399
    %401 = vmatmul.f32.gmra.mxu0 %v132
    %v402 = vpop.f32.mrf.mxu0
    %v403 = vadd.f32 0.0, %v402
    %404 = vmatmul.f32.gmra.mxu0 %v135
    %v405 = vpop.f32.mrf.mxu0
    %v406 = vadd.f32 0.0, %v405
    %407 = vmatmul.f32.gmra.mxu0 %v138
    %v408 = vpop.f32.mrf.mxu0
    %v409 = vadd.f32 0.0, %v408
    %410 = vmatmul.f32.gmra.mxu0 %v141
    %v411 = vpop.f32.mrf.mxu0
    %v412 = vadd.f32 0.0, %v411
    %413 = vmatmul.f32.gmra.mxu0 %v144
    %v414 = vpop.f32.mrf.mxu0
    %v415 = vadd.f32 0.0, %v414
    %416 = vmatmul.f32.gmra.mxu0 %v147
    %v417 = vpop.f32.mrf.mxu0
    %v418 = vadd.f32 0.0, %v417
    %419 = vdwg.mxu0
    %420 = vmatpush.msra.mxu0 0.0
    %421 = vmatpush.msra.mxu0 0.0
    %422 = vmatpush.msra.mxu0 0.0
    %423 = vmatpush.msra.mxu0 0.0
    %424 = vmatpush.msra.mxu0 0.0
    %425 = vmatpush.msra.mxu0 0.0
    %426 = vmatpush.msra.mxu0 0.0
    %427 = vmatpush.msra.mxu0 0.0
    %428 = vmatpush.msra.mxu0 0.0
    %429 = vmatpush.msra.mxu0 0.0
    %430 = vmatpush.msra.mxu0 0.0
    %431 = vmatpush.msra.mxu0 %v169
    %432 = vmatpush.msra.mxu0 %v114
    %433 = vmatpush.msra.mxu0 %v106
    %434 = vmatpush.msra.mxu0 %v98
    %435 = vmatpush.msra.mxu0 %v90
    %436 = vmatmul.f32.gmra.mxu0 %v126
    %v437 = vpop.f32.mrf.mxu0
    %v438 = vadd.f32 0.0, %v437
    %439 = vmatmul.f32.gmra.mxu0 %v129
    %v440 = vpop.f32.mrf.mxu0
    %v441 = vadd.f32 0.0, %v440
    %442 = vmatmul.f32.gmra.mxu0 %v132
    %v443 = vpop.f32.mrf.mxu0
    %v444 = vadd.f32 0.0, %v443
    %445 = vmatmul.f32.gmra.mxu0 %v135
    %v446 = vpop.f32.mrf.mxu0
    %v447 = vadd.f32 0.0, %v446
    %448 = vmatmul.f32.gmra.mxu0 %v138
    %v449 = vpop.f32.mrf.mxu0
    %v450 = vadd.f32 0.0, %v449
    %451 = vmatmul.f32.gmra.mxu0 %v141
    %v452 = vpop.f32.mrf.mxu0
    %v453 = vadd.f32 0.0, %v452
    %454 = vmatmul.f32.gmra.mxu0 %v144
    %v455 = vpop.f32.mrf.mxu0
    %v456 = vadd.f32 0.0, %v455
    %457 = vmatmul.f32.gmra.mxu0 %v147
    %v458 = vpop.f32.mrf.mxu0
    %v459 = vadd.f32 0.0, %v458
    %460 = vdwg.mxu0
    %461 = vmatpush.msra.mxu0 0.0
    %462 = vmatpush.msra.mxu0 0.0
    %463 = vmatpush.msra.mxu0 0.0
    %464 = vmatpush.msra.mxu0 0.0
    %465 = vmatpush.msra.mxu0 0.0
    %466 = vmatpush.msra.mxu0 0.0
    %467 = vmatpush.msra.mxu0 0.0
    %468 = vmatpush.msra.mxu0 0.0
    %469 = vmatpush.msra.mxu0 0.0
    %470 = vmatpush.msra.mxu0 0.0
    %471 = vmatpush.msra.mxu0 0.0
    %472 = vmatpush.msra.mxu0 %v172
    %473 = vmatpush.msra.mxu0 %v115
    %474 = vmatpush.msra.mxu0 %v107
    %475 = vmatpush.msra.mxu0 %v99
    %476 = vmatpush.msra.mxu0 %v91
    %477 = vmatmul.f32.gmra.mxu0 %v126
    %v478 = vpop.f32.mrf.mxu0
    %v479 = vadd.f32 0.0, %v478
    %480 = vmatmul.f32.gmra.mxu0 %v129
    %v481 = vpop.f32.mrf.mxu0
    %v482 = vadd.f32 0.0, %v481
    %483 = vmatmul.f32.gmra.mxu0 %v132
    %v484 = vpop.f32.mrf.mxu0
    %v485 = vadd.f32 0.0, %v484
    %486 = vmatmul.f32.gmra.mxu0 %v135
    %v487 = vpop.f32.mrf.mxu0
    %v488 = vadd.f32 0.0, %v487
    %489 = vmatmul.f32.gmra.mxu0 %v138
    %v490 = vpop.f32.mrf.mxu0
    %v491 = vadd.f32 0.0, %v490
    %492 = vmatmul.f32.gmra.mxu0 %v141
    %v493 = vpop.f32.mrf.mxu0
    %v494 = vadd.f32 0.0, %v493
    %495 = vmatmul.f32.gmra.mxu0 %v144
    %v496 = vpop.f32.mrf.mxu0
    %v497 = vadd.f32 0.0, %v496
    %498 = vmatmul.f32.gmra.mxu0 %v147
    %v499 = vpop.f32.mrf.mxu0
    %v500 = vadd.f32 0.0, %v499
    %501 = vdwg.mxu0
    %502 = vst [vmem:[#allocation2] sm:$0xff] %v192
    %503 = vst [vmem:[#allocation2 + $0x8] sm:$0xff] %v233
    %504 = vst [vmem:[#allocation2 + $0x10] sm:$0xff] %v274
    %505 = vst [vmem:[#allocation2 + $0x18] sm:$0xff] %v315
    %506 = vst [vmem:[#allocation2 + $0x20] sm:$0xff] %v356
    %507 = vst [vmem:[#allocation2 + $0x28] sm:$0xff] %v397
    %508 = vst [vmem:[#allocation2 + $0x30] sm:$0xff] %v438
    %509 = vst [vmem:[#allocation2 + $0x38] sm:$0xff] %v479
    %510 = vst [vmem:[#allocation2 + $0x40] sm:$0xff] %v195
    %511 = vst [vmem:[#allocation2 + $0x48] sm:$0xff] %v236
    %512 = vst [vmem:[#allocation2 + $0x50] sm:$0xff] %v277
    %513 = vst [vmem:[#allocation2 + $0x58] sm:$0xff] %v318
    %514 = vst [vmem:[#allocation2 + $0x60] sm:$0xff] %v359
    %515 = vst [vmem:[#allocation2 + $0x68] sm:$0xff] %v400
    %516 = vst [vmem:[#allocation2 + $0x70] sm:$0xff] %v441
    %517 = vst [vmem:[#allocation2 + $0x78] sm:$0xff] %v482
    %518 = vst [vmem:[#allocation2 + $0x80] sm:$0xff] %v198
    %519 = vst [vmem:[#allocation2 + $0x88] sm:$0xff] %v239
    %520 = vst [vmem:[#allocation2 + $0x90] sm:$0xff] %v280
    %521 = vst [vmem:[#allocation2 + $0x98] sm:$0xff] %v321
    %522 = vst [vmem:[#allocation2 + $0xa0] sm:$0xff] %v362
    %523 = vst [vmem:[#allocation2 + $0xa8] sm:$0xff] %v403
    %524 = vst [vmem:[#allocation2 + $0xb0] sm:$0xff] %v444
    %525 = vst [vmem:[#allocation2 + $0xb8] sm:$0xff] %v485
    %526 = vst [vmem:[#allocation2 + $0xc0] sm:$0xff] %v201
    %527 = vst [vmem:[#allocation2 + $0xc8] sm:$0xff] %v242
    %528 = vst [vmem:[#allocation2 + $0xd0] sm:$0xff] %v283
    %529 = vst [vmem:[#allocation2 + $0xd8] sm:$0xff] %v324
    %530 = vst [vmem:[#allocation2 + $0xe0] sm:$0xff] %v365
    %531 = vst [vmem:[#allocation2 + $0xe8] sm:$0xff] %v406
    %532 = vst [vmem:[#allocation2 + $0xf0] sm:$0xff] %v447
    %533 = vst [vmem:[#allocation2 + $0xf8] sm:$0xff] %v488
    %534 = vst [vmem:[#allocation2 + $0x100] sm:$0xff] %v204
    %535 = vst [vmem:[#allocation2 + $0x108] sm:$0xff] %v245
    %536 = vst [vmem:[#allocation2 + $0x110] sm:$0xff] %v286
    %537 = vst [vmem:[#allocation2 + $0x118] sm:$0xff] %v327
    %538 = vst [vmem:[#allocation2 + $0x120] sm:$0xff] %v368
    %539 = vst [vmem:[#allocation2 + $0x128] sm:$0xff] %v409
    %540 = vst [vmem:[#allocation2 + $0x130] sm:$0xff] %v450
    %541 = vst [vmem:[#allocation2 + $0x138] sm:$0xff] %v491
    %542 = vst [vmem:[#allocation2 + $0x140] sm:$0xff] %v207
    %543 = vst [vmem:[#allocation2 + $0x148] sm:$0xff] %v248
    %544 = vst [vmem:[#allocation2 + $0x150] sm:$0xff] %v289
    %545 = vst [vmem:[#allocation2 + $0x158] sm:$0xff] %v330
    %546 = vst [vmem:[#allocation2 + $0x160] sm:$0xff] %v371
    %547 = vst [vmem:[#allocation2 + $0x168] sm:$0xff] %v412
    %548 = vst [vmem:[#allocation2 + $0x170] sm:$0xff] %v453
    %549 = vst [vmem:[#allocation2 + $0x178] sm:$0xff] %v494
    %550 = vst [vmem:[#allocation2 + $0x180] sm:$0xff] %v210
    %551 = vst [vmem:[#allocation2 + $0x188] sm:$0xff] %v251
    %552 = vst [vmem:[#allocation2 + $0x190] sm:$0xff] %v292
    %553 = vst [vmem:[#allocation2 + $0x198] sm:$0xff] %v333
    %554 = vst [vmem:[#allocation2 + $0x1a0] sm:$0xff] %v374
    %555 = vst [vmem:[#allocation2 + $0x1a8] sm:$0xff] %v415
    %556 = vst [vmem:[#allocation2 + $0x1b0] sm:$0xff] %v456
    %557 = vst [vmem:[#allocation2 + $0x1b8] sm:$0xff] %v497
    %558 = vst [vmem:[#allocation2 + $0x1c0] sm:$0xff] %v213
    %559 = vst [vmem:[#allocation2 + $0x1c8] sm:$0xff] %v254
    %560 = vst [vmem:[#allocation2 + $0x1d0] sm:$0xff] %v295
    %561 = vst [vmem:[#allocation2 + $0x1d8] sm:$0xff] %v336
    %562 = vst [vmem:[#allocation2 + $0x1e0] sm:$0xff] %v377
    %563 = vst [vmem:[#allocation2 + $0x1e8] sm:$0xff] %v418
    %564 = vst [vmem:[#allocation2 + $0x1f0] sm:$0xff] %v459
    %565 = vst [vmem:[#allocation2 + $0x1f8] sm:$0xff] %v500
    %v566 = vld [vmem:[#allocation8] sm:$0xff]
    %v567 = vld [vmem:[#allocation8 + $0x8] sm:$0xff]
    %v568 = vld [vmem:[#allocation8 + $0x10] sm:$0xff]
    %v569 = vld [vmem:[#allocation8 + $0x18] sm:$0xff]
    %v570 = vld [vmem:[#allocation8 + $0x20] sm:$0xff]
    %v571 = vld [vmem:[#allocation8 + $0x28] sm:$0xff]
    %v572 = vld [vmem:[#allocation8 + $0x30] sm:$0xff]
    %v573 = vld [vmem:[#allocation8 + $0x38] sm:$0xff]
    %v574 = vld [vmem:[#allocation8 + $0x40] sm:$0xff]
    %v575 = vld [vmem:[#allocation8 + $0x48] sm:$0xff]
    %v576 = vld [vmem:[#allocation8 + $0x50] sm:$0xff]
    %v577 = vld [vmem:[#allocation8 + $0x58] sm:$0xff]
    %v578 = vld [vmem:[#allocation8 + $0x60] sm:$0xff]
    %v579 = vld [vmem:[#allocation8 + $0x68] sm:$0xff]
    %v580 = vld [vmem:[#allocation8 + $0x70] sm:$0xff]
    %v581 = vld [vmem:[#allocation8 + $0x78] sm:$0xff]
    %v582 = vld [vmem:[#allocation8 + $0x80] sm:$0xff]
    %v583 = vld [vmem:[#allocation8 + $0x88] sm:$0xff]
    %v584 = vld [vmem:[#allocation8 + $0x90] sm:$0xff]
    %v585 = vld [vmem:[#allocation8 + $0x98] sm:$0xff]
    %v586 = vld [vmem:[#allocation8 + $0xa0] sm:$0xff]
    %v587 = vld [vmem:[#allocation8 + $0xa8] sm:$0xff]
    %v588 = vld [vmem:[#allocation8 + $0xb0] sm:$0xff]
    %v589 = vld [vmem:[#allocation8 + $0xb8] sm:$0xff]
    %v590 = vld [vmem:[#allocation8 + $0xc0] sm:$0xff]
    %v591 = vld [vmem:[#allocation8 + $0xc8] sm:$0xff]
    %v592 = vld [vmem:[#allocation8 + $0xd0] sm:$0xff]
    %v593 = vld [vmem:[#allocation8 + $0xd8] sm:$0xff]
    %v594 = vld [vmem:[#allocation8 + $0xe0] sm:$0xff]
    %v595 = vld [vmem:[#allocation8 + $0xe8] sm:$0xff]
    %v596 = vld [vmem:[#allocation8 + $0xf0] sm:$0xff]
    %v597 = vld [vmem:[#allocation8 + $0xf8] sm:$0xff]
    %v598 = vld [vmem:[#allocation8 + $0x100] sm:$0xff]
    %v599 = vld [vmem:[#allocation8 + $0x108] sm:$0xff]
    %v600 = vld [vmem:[#allocation8 + $0x110] sm:$0xff]
    %v601 = vld [vmem:[#allocation8 + $0x118] sm:$0xff]
    %v602 = vld [vmem:[#allocation8 + $0x120] sm:$0xff]
    %v603 = vld [vmem:[#allocation8 + $0x128] sm:$0xff]
    %v604 = vld [vmem:[#allocation8 + $0x130] sm:$0xff]
    %v605 = vld [vmem:[#allocation8 + $0x138] sm:$0xff]
    %v606 = vld [vmem:[#allocation8 + $0x140] sm:$0xff]
    %v607 = vld [vmem:[#allocation8 + $0x148] sm:$0xff]
    %v608 = vld [vmem:[#allocation8 + $0x150] sm:$0xff]
    %v609 = vld [vmem:[#allocation8 + $0x158] sm:$0xff]
    %v610 = vld [vmem:[#allocation8 + $0x160] sm:$0xff]
    %v611 = vld [vmem:[#allocation8 + $0x168] sm:$0xff]
    %v612 = vld [vmem:[#allocation8 + $0x170] sm:$0xff]
    %v613 = vld [vmem:[#allocation8 + $0x178] sm:$0xff]
    %v614 = vld [vmem:[#allocation8 + $0x180] sm:$0xff]
    %v615 = vld [vmem:[#allocation8 + $0x188] sm:$0xff]
    %v616 = vld [vmem:[#allocation8 + $0x190] sm:$0xff]
    %v617 = vld [vmem:[#allocation8 + $0x198] sm:$0xff]
    %v618 = vld [vmem:[#allocation8 + $0x1a0] sm:$0xff]
    %v619 = vld [vmem:[#allocation8 + $0x1a8] sm:$0xff]
    %v620 = vld [vmem:[#allocation8 + $0x1b0] sm:$0xff]
    %v621 = vld [vmem:[#allocation8 + $0x1b8] sm:$0xff]
    %v622 = vld [vmem:[#allocation8 + $0x1c0] sm:$0xff]
    %v623 = vld [vmem:[#allocation8 + $0x1c8] sm:$0xff]
    %v624 = vld [vmem:[#allocation8 + $0x1d0] sm:$0xff]
    %v625 = vld [vmem:[#allocation8 + $0x1d8] sm:$0xff]
    %v626 = vld [vmem:[#allocation8 + $0x1e0] sm:$0xff]
    %v627 = vld [vmem:[#allocation8 + $0x1e8] sm:$0xff]
    %v628 = vld [vmem:[#allocation8 + $0x1f0] sm:$0xff]
    %v629 = vld [vmem:[#allocation8 + $0x1f8] sm:$0xff]
    %v630 = vld [vmem:[#allocation8 + $0x200] sm:$0xff]
    %v631 = vld [vmem:[#allocation8 + $0x208] sm:$0xff]
    %v632 = vld [vmem:[#allocation8 + $0x210] sm:$0xff]
    %v633 = vld [vmem:[#allocation8 + $0x218] sm:$0xff]
    %v634 = vld [vmem:[#allocation8 + $0x220] sm:$0xff]
    %v635 = vld [vmem:[#allocation8 + $0x228] sm:$0xff]
    %v636 = vld [vmem:[#allocation8 + $0x230] sm:$0xff]
    %v637 = vld [vmem:[#allocation8 + $0x238] sm:$0xff]
    %v638 = vld [vmem:[#allocation8 + $0x240] sm:$0xff]
    %v639 = vld [vmem:[#allocation8 + $0x248] sm:$0xff]
    %v640 = vld [vmem:[#allocation8 + $0x250] sm:$0xff]
    %v641 = vld [vmem:[#allocation8 + $0x258] sm:$0xff]
    %v642 = vld [vmem:[#allocation8 + $0x260] sm:$0xff]
    %v643 = vld [vmem:[#allocation8 + $0x268] sm:$0xff]
    %v644 = vld [vmem:[#allocation8 + $0x270] sm:$0xff]
    %v645 = vld [vmem:[#allocation8 + $0x278] sm:$0xff]
    %v646 = vld [vmem:[#allocation8 + $0x280] sm:$0xff]
    %v647 = vld [vmem:[#allocation8 + $0x288] sm:$0xff]
    %v648 = vld [vmem:[#allocation8 + $0x290] sm:$0xff]
    %v649 = vld [vmem:[#allocation8 + $0x298] sm:$0xff]
    %v650 = vld [vmem:[#allocation8 + $0x2a0] sm:$0xff]
    %v651 = vld [vmem:[#allocation8 + $0x2a8] sm:$0xff]
    %v652 = vld [vmem:[#allocation8 + $0x2b0] sm:$0xff]
    %v653 = vld [vmem:[#allocation8 + $0x2b8] sm:$0xff]
    %v654 = vld [vmem:[#allocation8 + $0x2c0] sm:$0xff]
    %v655 = vld [vmem:[#allocation8 + $0x2c8] sm:$0xff]
    %v656 = vld [vmem:[#allocation8 + $0x2d0] sm:$0xff]
    %v657 = vld [vmem:[#allocation8 + $0x2d8] sm:$0xff]
    %v658 = vld [vmem:[#allocation8 + $0x2e0] sm:$0xff]
    %v659 = vld [vmem:[#allocation8 + $0x2e8] sm:$0xff]
    %v660 = vld [vmem:[#allocation8 + $0x2f0] sm:$0xff]
    %v661 = vld [vmem:[#allocation8 + $0x2f8] sm:$0xff]
    %v662 = vld [vmem:[#allocation8 + $0x300] sm:$0xff]
    %v663 = vld [vmem:[#allocation8 + $0x308] sm:$0xff]
    %v664 = vld [vmem:[#allocation8 + $0x310] sm:$0xff]
    %v665 = vld [vmem:[#allocation8 + $0x318] sm:$0xff]
    %v666 = vld [vmem:[#allocation8 + $0x320] sm:$0xff]
    %v667 = vld [vmem:[#allocation8 + $0x328] sm:$0xff]
    %v668 = vld [vmem:[#allocation8 + $0x330] sm:$0xff]
    %v669 = vld [vmem:[#allocation8 + $0x338] sm:$0xff]
    %v670 = vld [vmem:[#allocation8 + $0x340] sm:$0xff]
    %v671 = vld [vmem:[#allocation8 + $0x348] sm:$0xff]
    %v672 = vld [vmem:[#allocation8 + $0x350] sm:$0xff]
    %v673 = vld [vmem:[#allocation8 + $0x358] sm:$0xff]
    %v674 = vld [vmem:[#allocation8 + $0x360] sm:$0xff]
    %v675 = vld [vmem:[#allocation8 + $0x368] sm:$0xff]
    %v676 = vld [vmem:[#allocation8 + $0x370] sm:$0xff]
    %v677 = vld [vmem:[#allocation8 + $0x378] sm:$0xff]
    %v678 = vld [vmem:[#allocation8 + $0x380] sm:$0xff]
    %v679 = vld [vmem:[#allocation8 + $0x388] sm:$0xff]
    %v680 = vld [vmem:[#allocation8 + $0x390] sm:$0xff]
    %v681 = vld [vmem:[#allocation8 + $0x398] sm:$0xff]
    %v682 = vld [vmem:[#allocation8 + $0x3a0] sm:$0xff]
    %v683 = vld [vmem:[#allocation8 + $0x3a8] sm:$0xff]
    %v684 = vld [vmem:[#allocation8 + $0x3b0] sm:$0xff]
    %v685 = vld [vmem:[#allocation8 + $0x3b8] sm:$0xff]
    %v686 = vld [vmem:[#allocation8 + $0x3c0] sm:$0xff]
    %v687 = vld [vmem:[#allocation8 + $0x3c8] sm:$0xff]
    %v688 = vld [vmem:[#allocation8 + $0x3d0] sm:$0xff]
    %v689 = vld [vmem:[#allocation8 + $0x3d8] sm:$0xff]
    %v690 = vld [vmem:[#allocation8 + $0x3e0] sm:$0xff]
    %v691 = vld [vmem:[#allocation8 + $0x3e8] sm:$0xff]
    %v692 = vld [vmem:[#allocation8 + $0x3f0] sm:$0xff]
    %v693 = vld [vmem:[#allocation8 + $0x3f8] sm:$0xff]
    %v694 = vld [vmem:[#allocation8 + $0x400] sm:$0xff]
    %v695 = vld [vmem:[#allocation8 + $0x408] sm:$0xff]
    %v696 = vld [vmem:[#allocation8 + $0x410] sm:$0xff]
    %v697 = vld [vmem:[#allocation8 + $0x418] sm:$0xff]
    %v698 = vld [vmem:[#allocation8 + $0x420] sm:$0xff]
    %v699 = vld [vmem:[#allocation8 + $0x428] sm:$0xff]
    %v700 = vld [vmem:[#allocation8 + $0x430] sm:$0xff]
    %v701 = vld [vmem:[#allocation8 + $0x438] sm:$0xff]
    %v702 = vld [vmem:[#allocation8 + $0x440] sm:$0xff]
    %v703 = vld [vmem:[#allocation8 + $0x448] sm:$0xff]
    %v704 = vld [vmem:[#allocation8 + $0x450] sm:$0xff]
    %v705 = vld [vmem:[#allocation8 + $0x458] sm:$0xff]
    %v706 = vld [vmem:[#allocation8 + $0x460] sm:$0xff]
    %v707 = vld [vmem:[#allocation8 + $0x468] sm:$0xff]
    %v708 = vld [vmem:[#allocation8 + $0x470] sm:$0xff]
    %v709 = vld [vmem:[#allocation8 + $0x478] sm:$0xff]
    %v710 = vld [vmem:[#allocation8 + $0x480] sm:$0xff]
    %v711 = vld [vmem:[#allocation8 + $0x488] sm:$0xff]
    %v712 = vld [vmem:[#allocation8 + $0x490] sm:$0xff]
    %v713 = vld [vmem:[#allocation8 + $0x498] sm:$0xff]
    %v714 = vld [vmem:[#allocation8 + $0x4a0] sm:$0xff]
    %v715 = vld [vmem:[#allocation8 + $0x4a8] sm:$0xff]
    %v716 = vld [vmem:[#allocation8 + $0x4b0] sm:$0xff]
    %v717 = vld [vmem:[#allocation8 + $0x4b8] sm:$0xff]
    %v718 = vld [vmem:[#allocation8 + $0x4c0] sm:$0xff]
    %v719 = vld [vmem:[#allocation8 + $0x4c8] sm:$0xff]
    %v720 = vld [vmem:[#allocation8 + $0x4d0] sm:$0xff]
    %v721 = vld [vmem:[#allocation8 + $0x4d8] sm:$0xff]
    %v722 = vld [vmem:[#allocation8 + $0x4e0] sm:$0xff]
    %v723 = vld [vmem:[#allocation8 + $0x4e8] sm:$0xff]
    %v724 = vld [vmem:[#allocation8 + $0x4f0] sm:$0xff]
    %v725 = vld [vmem:[#allocation8 + $0x4f8] sm:$0xff]
    %v726 = vld [vmem:[#allocation8 + $0x500] sm:$0xff]
    %v727 = vld [vmem:[#allocation8 + $0x508] sm:$0xff]
    %v728 = vld [vmem:[#allocation8 + $0x510] sm:$0xff]
    %v729 = vld [vmem:[#allocation8 + $0x518] sm:$0xff]
    %v730 = vld [vmem:[#allocation8 + $0x520] sm:$0xff]
    %v731 = vld [vmem:[#allocation8 + $0x528] sm:$0xff]
    %v732 = vld [vmem:[#allocation8 + $0x530] sm:$0xff]
    %v733 = vld [vmem:[#allocation8 + $0x538] sm:$0xff]
    %v734 = vld [vmem:[#allocation8 + $0x540] sm:$0xff]
    %v735 = vld [vmem:[#allocation8 + $0x548] sm:$0xff]
    %v736 = vld [vmem:[#allocation8 + $0x550] sm:$0xff]
    %v737 = vld [vmem:[#allocation8 + $0x558] sm:$0xff]
    %v738 = vld [vmem:[#allocation8 + $0x560] sm:$0xff]
    %v739 = vld [vmem:[#allocation8 + $0x568] sm:$0xff]
    %v740 = vld [vmem:[#allocation8 + $0x570] sm:$0xff]
    %v741 = vld [vmem:[#allocation8 + $0x578] sm:$0xff]
    %v742 = vld [vmem:[#allocation8 + $0x580] sm:$0xff]
    %v743 = vld [vmem:[#allocation8 + $0x588] sm:$0xff]
    %v744 = vld [vmem:[#allocation8 + $0x590] sm:$0xff]
    %v745 = vld [vmem:[#allocation8 + $0x598] sm:$0xff]
    %v746 = vld [vmem:[#allocation8 + $0x5a0] sm:$0xff]
    %v747 = vld [vmem:[#allocation8 + $0x5a8] sm:$0xff]
    %v748 = vld [vmem:[#allocation8 + $0x5b0] sm:$0xff]
    %v749 = vld [vmem:[#allocation8 + $0x5b8] sm:$0xff]
    %v750 = vld [vmem:[#allocation8 + $0x5c0] sm:$0xff]
    %v751 = vld [vmem:[#allocation8 + $0x5c8] sm:$0xff]
    %v752 = vld [vmem:[#allocation8 + $0x5d0] sm:$0xff]
    %v753 = vld [vmem:[#allocation8 + $0x5d8] sm:$0xff]
    %v754 = vld [vmem:[#allocation8 + $0x5e0] sm:$0xff]
    %v755 = vld [vmem:[#allocation8 + $0x5e8] sm:$0xff]
    %v756 = vld [vmem:[#allocation8 + $0x5f0] sm:$0xff]
    %v757 = vld [vmem:[#allocation8 + $0x5f8] sm:$0xff]
    %v758 = vld [vmem:[#allocation8 + $0x600] sm:$0xff]
    %v759 = vld [vmem:[#allocation8 + $0x608] sm:$0xff]
    %v760 = vld [vmem:[#allocation8 + $0x610] sm:$0xff]
    %v761 = vld [vmem:[#allocation8 + $0x618] sm:$0xff]
    %v762 = vld [vmem:[#allocation8 + $0x620] sm:$0xff]
    %v763 = vld [vmem:[#allocation8 + $0x628] sm:$0xff]
    %v764 = vld [vmem:[#allocation8 + $0x630] sm:$0xff]
    %v765 = vld [vmem:[#allocation8 + $0x638] sm:$0xff]
    %v766 = vld [vmem:[#allocation8 + $0x640] sm:$0xff]
    %v767 = vld [vmem:[#allocation8 + $0x648] sm:$0xff]
    %v768 = vld [vmem:[#allocation8 + $0x650] sm:$0xff]
    %v769 = vld [vmem:[#allocation8 + $0x658] sm:$0xff]
    %v770 = vld [vmem:[#allocation8 + $0x660] sm:$0xff]
    %v771 = vld [vmem:[#allocation8 + $0x668] sm:$0xff]
    %v772 = vld [vmem:[#allocation8 + $0x670] sm:$0xff]
    %v773 = vld [vmem:[#allocation8 + $0x678] sm:$0xff]
    %v774 = vld [vmem:[#allocation8 + $0x680] sm:$0xff]
    %v775 = vld [vmem:[#allocation8 + $0x688] sm:$0xff]
    %v776 = vld [vmem:[#allocation8 + $0x690] sm:$0xff]
    %v777 = vld [vmem:[#allocation8 + $0x698] sm:$0xff]
    %v778 = vld [vmem:[#allocation8 + $0x6a0] sm:$0xff]
    %v779 = vld [vmem:[#allocation8 + $0x6a8] sm:$0xff]
    %v780 = vld [vmem:[#allocation8 + $0x6b0] sm:$0xff]
    %v781 = vld [vmem:[#allocation8 + $0x6b8] sm:$0xff]
    %v782 = vld [vmem:[#allocation8 + $0x6c0] sm:$0xff]
    %v783 = vld [vmem:[#allocation8 + $0x6c8] sm:$0xff]
    %v784 = vld [vmem:[#allocation8 + $0x6d0] sm:$0xff]
    %v785 = vld [vmem:[#allocation8 + $0x6d8] sm:$0xff]
    %v786 = vld [vmem:[#allocation8 + $0x6e0] sm:$0xff]
    %v787 = vld [vmem:[#allocation8 + $0x6e8] sm:$0xff]
    %v788 = vld [vmem:[#allocation8 + $0x6f0] sm:$0xff]
    %v789 = vld [vmem:[#allocation8 + $0x6f8] sm:$0xff]
    %v790 = vld [vmem:[#allocation8 + $0x700] sm:$0xff]
    %v791 = vld [vmem:[#allocation8 + $0x708] sm:$0xff]
    %v792 = vld [vmem:[#allocation8 + $0x710] sm:$0xff]
    %v793 = vld [vmem:[#allocation8 + $0x718] sm:$0xff]
    %v794 = vld [vmem:[#allocation8 + $0x720] sm:$0xff]
    %v795 = vld [vmem:[#allocation8 + $0x728] sm:$0xff]
    %v796 = vld [vmem:[#allocation8 + $0x730] sm:$0xff]
    %v797 = vld [vmem:[#allocation8 + $0x738] sm:$0xff]
    %v798 = vld [vmem:[#allocation8 + $0x740] sm:$0xff]
    %v799 = vld [vmem:[#allocation8 + $0x748] sm:$0xff]
    %v800 = vld [vmem:[#allocation8 + $0x750] sm:$0xff]
    %v801 = vld [vmem:[#allocation8 + $0x758] sm:$0xff]
    %v802 = vld [vmem:[#allocation8 + $0x760] sm:$0xff]
    %v803 = vld [vmem:[#allocation8 + $0x768] sm:$0xff]
    %v804 = vld [vmem:[#allocation8 + $0x770] sm:$0xff]
    %v805 = vld [vmem:[#allocation8 + $0x778] sm:$0xff]
    %v806 = vld [vmem:[#allocation8 + $0x780] sm:$0xff]
    %v807 = vld [vmem:[#allocation8 + $0x788] sm:$0xff]
    %v808 = vld [vmem:[#allocation8 + $0x790] sm:$0xff]
    %v809 = vld [vmem:[#allocation8 + $0x798] sm:$0xff]
    %v810 = vld [vmem:[#allocation8 + $0x7a0] sm:$0xff]
    %v811 = vld [vmem:[#allocation8 + $0x7a8] sm:$0xff]
    %v812 = vld [vmem:[#allocation8 + $0x7b0] sm:$0xff]
    %v813 = vld [vmem:[#allocation8 + $0x7b8] sm:$0xff]
    %v814 = vld [vmem:[#allocation8 + $0x7c0] sm:$0xff]
    %v815 = vld [vmem:[#allocation8 + $0x7c8] sm:$0xff]
    %v816 = vld [vmem:[#allocation8 + $0x7d0] sm:$0xff]
    %v817 = vld [vmem:[#allocation8 + $0x7d8] sm:$0xff]
    %v818 = vld [vmem:[#allocation8 + $0x7e0] sm:$0xff]
    %v819 = vld [vmem:[#allocation8 + $0x7e8] sm:$0xff]
    %v820 = vld [vmem:[#allocation8 + $0x7f0] sm:$0xff]
    %v821 = vld [vmem:[#allocation8 + $0x7f8] sm:$0xff]
    %v822 = vld [vmem:[#allocation3] sm:$0xff]
    %v823 = vld [vmem:[#allocation3 + $0x8] sm:$0xff]
    %v824 = vld [vmem:[#allocation4] sm:$0xff]
    %v825 = vld [vmem:[#allocation4 + $0x8] sm:$0xff]
    %s826 = smul.u32 0, 8
    %s827 = smul.addr %s826, 8
    %s828 = scalar_lea.vmem [#allocation2], %s827
    %v829 = vld [vmem:[%s828] sm:$0xff]
    %v830 = vld [vmem:[%s828 + $0x8] sm:$0xff]
    %v831 = vld [vmem:[%s828 + $0x10] sm:$0xff]
    %v832 = vld [vmem:[%s828 + $0x18] sm:$0xff]
    %v833 = vld [vmem:[%s828 + $0x20] sm:$0xff]
    %v834 = vld [vmem:[%s828 + $0x28] sm:$0xff]
    %v835 = vld [vmem:[%s828 + $0x30] sm:$0xff]
    %v836 = vld [vmem:[%s828 + $0x38] sm:$0xff]
    %837 = vmatpush.msra.mxu0 %v686
    %838 = vmatpush.msra.mxu0 %v678
    %839 = vmatpush.msra.mxu0 %v670
    %840 = vmatpush.msra.mxu0 %v662
    %841 = vmatpush.msra.mxu0 %v654
    %842 = vmatpush.msra.mxu0 %v646
    %843 = vmatpush.msra.mxu0 %v638
    %844 = vmatpush.msra.mxu0 %v630
    %845 = vmatpush.msra.mxu0 %v622
    %846 = vmatpush.msra.mxu0 %v614
    %847 = vmatpush.msra.mxu0 %v606
    %848 = vmatpush.msra.mxu0 %v598
    %849 = vmatpush.msra.mxu0 %v590
    %850 = vmatpush.msra.mxu0 %v582
    %851 = vmatpush.msra.mxu0 %v574
    %852 = vmatpush.msra.mxu0 %v566
    %853 = vmatmul.f32.gmra.mxu0 %v822
    %v854 = vpop.f32.mrf.mxu0
    %v855 = vadd.f32 0.0, %v854
    %856 = vdwg.mxu0
    %857 = vmatpush.msra.mxu0 %v814
    %858 = vmatpush.msra.mxu0 %v806
    %859 = vmatpush.msra.mxu0 %v798
    %860 = vmatpush.msra.mxu0 %v790
    %861 = vmatpush.msra.mxu0 %v782
    %862 = vmatpush.msra.mxu0 %v774
    %863 = vmatpush.msra.mxu0 %v766
    %864 = vmatpush.msra.mxu0 %v758
    %865 = vmatpush.msra.mxu0 %v750
    %866 = vmatpush.msra.mxu0 %v742
    %867 = vmatpush.msra.mxu0 %v734
    %868 = vmatpush.msra.mxu0 %v726
    %869 = vmatpush.msra.mxu0 %v718
    %870 = vmatpush.msra.mxu0 %v710
    %871 = vmatpush.msra.mxu0 %v702
    %872 = vmatpush.msra.mxu0 %v694
    %873 = vmatmul.f32.gmra.mxu0 %v823
    %v874 = vpop.f32.mrf.mxu0
    %v875 = vadd.f32 %v855, %v874
    %876 = vdwg.mxu0
    %877 = vmatpush.msra.mxu0 %v687
    %878 = vmatpush.msra.mxu0 %v679
    %879 = vmatpush.msra.mxu0 %v671
    %880 = vmatpush.msra.mxu0 %v663
    %881 = vmatpush.msra.mxu0 %v655
    %882 = vmatpush.msra.mxu0 %v647
    %883 = vmatpush.msra.mxu0 %v639
    %884 = vmatpush.msra.mxu0 %v631
    %885 = vmatpush.msra.mxu0 %v623
    %886 = vmatpush.msra.mxu0 %v615
    %887 = vmatpush.msra.mxu0 %v607
    %888 = vmatpush.msra.mxu0 %v599
    %889 = vmatpush.msra.mxu0 %v591
    %890 = vmatpush.msra.mxu0 %v583
    %891 = vmatpush.msra.mxu0 %v575
    %892 = vmatpush.msra.mxu0 %v567
    %893 = vmatmul.f32.gmra.mxu0 %v822
    %v894 = vpop.f32.mrf.mxu0
    %v895 = vadd.f32 0.0, %v894
    %896 = vdwg.mxu0
    %897 = vmatpush.msra.mxu0 %v815
    %898 = vmatpush.msra.mxu0 %v807
    %899 = vmatpush.msra.mxu0 %v799
    %900 = vmatpush.msra.mxu0 %v791
    %901 = vmatpush.msra.mxu0 %v783
    %902 = vmatpush.msra.mxu0 %v775
    %903 = vmatpush.msra.mxu0 %v767
    %904 = vmatpush.msra.mxu0 %v759
    %905 = vmatpush.msra.mxu0 %v751
    %906 = vmatpush.msra.mxu0 %v743
    %907 = vmatpush.msra.mxu0 %v735
    %908 = vmatpush.msra.mxu0 %v727
    %909 = vmatpush.msra.mxu0 %v719
    %910 = vmatpush.msra.mxu0 %v711
    %911 = vmatpush.msra.mxu0 %v703
    %912 = vmatpush.msra.mxu0 %v695
    %913 = vmatmul.f32.gmra.mxu0 %v823
    %v914 = vpop.f32.mrf.mxu0
    %v915 = vadd.f32 %v895, %v914
    %916 = vdwg.mxu0
    %917 = vmatpush.msra.mxu0 %v688
    %918 = vmatpush.msra.mxu0 %v680
    %919 = vmatpush.msra.mxu0 %v672
    %920 = vmatpush.msra.mxu0 %v664
    %921 = vmatpush.msra.mxu0 %v656
    %922 = vmatpush.msra.mxu0 %v648
    %923 = vmatpush.msra.mxu0 %v640
    %924 = vmatpush.msra.mxu0 %v632
    %925 = vmatpush.msra.mxu0 %v624
    %926 = vmatpush.msra.mxu0 %v616
    %927 = vmatpush.msra.mxu0 %v608
    %928 = vmatpush.msra.mxu0 %v600
    %929 = vmatpush.msra.mxu0 %v592
    %930 = vmatpush.msra.mxu0 %v584
    %931 = vmatpush.msra.mxu0 %v576
    %932 = vmatpush.msra.mxu0 %v568
    %933 = vmatmul.f32.gmra.mxu0 %v822
    %v934 = vpop.f32.mrf.mxu0
    %v935 = vadd.f32 0.0, %v934
    %936 = vdwg.mxu0
    %937 = vmatpush.msra.mxu0 %v816
    %938 = vmatpush.msra.mxu0 %v808
    %939 = vmatpush.msra.mxu0 %v800
    %940 = vmatpush.msra.mxu0 %v792
    %941 = vmatpush.msra.mxu0 %v784
    %942 = vmatpush.msra.mxu0 %v776
    %943 = vmatpush.msra.mxu0 %v768
    %944 = vmatpush.msra.mxu0 %v760
    %945 = vmatpush.msra.mxu0 %v752
    %946 = vmatpush.msra.mxu0 %v744
    %947 = vmatpush.msra.mxu0 %v736
    %948 = vmatpush.msra.mxu0 %v728
    %949 = vmatpush.msra.mxu0 %v720
    %950 = vmatpush.msra.mxu0 %v712
    %951 = vmatpush.msra.mxu0 %v704
    %952 = vmatpush.msra.mxu0 %v696
    %953 = vmatmul.f32.gmra.mxu0 %v823
    %v954 = vpop.f32.mrf.mxu0
    %v955 = vadd.f32 %v935, %v954
    %956 = vdwg.mxu0
    %957 = vmatpush.msra.mxu0 %v689
    %958 = vmatpush.msra.mxu0 %v681
    %959 = vmatpush.msra.mxu0 %v673
    %960 = vmatpush.msra.mxu0 %v665
    %961 = vmatpush.msra.mxu0 %v657
    %962 = vmatpush.msra.mxu0 %v649
    %963 = vmatpush.msra.mxu0 %v641
    %964 = vmatpush.msra.mxu0 %v633
    %965 = vmatpush.msra.mxu0 %v625
    %966 = vmatpush.msra.mxu0 %v617
    %967 = vmatpush.msra.mxu0 %v609
    %968 = vmatpush.msra.mxu0 %v601
    %969 = vmatpush.msra.mxu0 %v593
    %970 = vmatpush.msra.mxu0 %v585
    %971 = vmatpush.msra.mxu0 %v577
    %972 = vmatpush.msra.mxu0 %v569
    %973 = vmatmul.f32.gmra.mxu0 %v822
    %v974 = vpop.f32.mrf.mxu0
    %v975 = vadd.f32 0.0, %v974
    %976 = vdwg.mxu0
    %977 = vmatpush.msra.mxu0 %v817
    %978 = vmatpush.msra.mxu0 %v809
    %979 = vmatpush.msra.mxu0 %v801
    %980 = vmatpush.msra.mxu0 %v793
    %981 = vmatpush.msra.mxu0 %v785
    %982 = vmatpush.msra.mxu0 %v777
    %983 = vmatpush.msra.mxu0 %v769
    %984 = vmatpush.msra.mxu0 %v761
    %985 = vmatpush.msra.mxu0 %v753
    %986 = vmatpush.msra.mxu0 %v745
    %987 = vmatpush.msra.mxu0 %v737
    %988 = vmatpush.msra.mxu0 %v729
    %989 = vmatpush.msra.mxu0 %v721
    %990 = vmatpush.msra.mxu0 %v713
    %991 = vmatpush.msra.mxu0 %v705
    %992 = vmatpush.msra.mxu0 %v697
    %993 = vmatmul.f32.gmra.mxu0 %v823
    %v994 = vpop.f32.mrf.mxu0
    %v995 = vadd.f32 %v975, %v994
    %996 = vdwg.mxu0
    %997 = vmatpush.msra.mxu0 %v690
    %998 = vmatpush.msra.mxu0 %v682
    %999 = vmatpush.msra.mxu0 %v674
    %1000 = vmatpush.msra.mxu0 %v666
    %1001 = vmatpush.msra.mxu0 %v658
    %1002 = vmatpush.msra.mxu0 %v650
    %1003 = vmatpush.msra.mxu0 %v642
    %1004 = vmatpush.msra.mxu0 %v634
    %1005 = vmatpush.msra.mxu0 %v626
    %1006 = vmatpush.msra.mxu0 %v618
    %1007 = vmatpush.msra.mxu0 %v610
    %1008 = vmatpush.msra.mxu0 %v602
    %1009 = vmatpush.msra.mxu0 %v594
    %1010 = vmatpush.msra.mxu0 %v586
    %1011 = vmatpush.msra.mxu0 %v578
    %1012 = vmatpush.msra.mxu0 %v570
    %1013 = vmatmul.f32.gmra.mxu0 %v822
    %v1014 = vpop.f32.mrf.mxu0
    %v1015 = vadd.f32 0.0, %v1014
    %1016 = vdwg.mxu0
    %1017 = vmatpush.msra.mxu0 %v818
    %1018 = vmatpush.msra.mxu0 %v810
    %1019 = vmatpush.msra.mxu0 %v802
    %1020 = vmatpush.msra.mxu0 %v794
    %1021 = vmatpush.msra.mxu0 %v786
    %1022 = vmatpush.msra.mxu0 %v778
    %1023 = vmatpush.msra.mxu0 %v770
    %1024 = vmatpush.msra.mxu0 %v762
    %1025 = vmatpush.msra.mxu0 %v754
    %1026 = vmatpush.msra.mxu0 %v746
    %1027 = vmatpush.msra.mxu0 %v738
    %1028 = vmatpush.msra.mxu0 %v730
    %1029 = vmatpush.msra.mxu0 %v722
    %1030 = vmatpush.msra.mxu0 %v714
    %1031 = vmatpush.msra.mxu0 %v706
    %1032 = vmatpush.msra.mxu0 %v698
    %1033 = vmatmul.f32.gmra.mxu0 %v823
    %v1034 = vpop.f32.mrf.mxu0
    %v1035 = vadd.f32 %v1015, %v1034
    %1036 = vdwg.mxu0
    %1037 = vmatpush.msra.mxu0 %v691
    %1038 = vmatpush.msra.mxu0 %v683
    %1039 = vmatpush.msra.mxu0 %v675
    %1040 = vmatpush.msra.mxu0 %v667
    %1041 = vmatpush.msra.mxu0 %v659
    %1042 = vmatpush.msra.mxu0 %v651
    %1043 = vmatpush.msra.mxu0 %v643
    %1044 = vmatpush.msra.mxu0 %v635
    %1045 = vmatpush.msra.mxu0 %v627
    %1046 = vmatpush.msra.mxu0 %v619
    %1047 = vmatpush.msra.mxu0 %v611
    %1048 = vmatpush.msra.mxu0 %v603
    %1049 = vmatpush.msra.mxu0 %v595
    %1050 = vmatpush.msra.mxu0 %v587
    %1051 = vmatpush.msra.mxu0 %v579
    %1052 = vmatpush.msra.mxu0 %v571
    %1053 = vmatmul.f32.gmra.mxu0 %v822
    %v1054 = vpop.f32.mrf.mxu0
    %v1055 = vadd.f32 0.0, %v1054
    %1056 = vdwg.mxu0
    %1057 = vmatpush.msra.mxu0 %v819
    %1058 = vmatpush.msra.mxu0 %v811
    %1059 = vmatpush.msra.mxu0 %v803
    %1060 = vmatpush.msra.mxu0 %v795
    %1061 = vmatpush.msra.mxu0 %v787
    %1062 = vmatpush.msra.mxu0 %v779
    %1063 = vmatpush.msra.mxu0 %v771
    %1064 = vmatpush.msra.mxu0 %v763
    %1065 = vmatpush.msra.mxu0 %v755
    %1066 = vmatpush.msra.mxu0 %v747
    %1067 = vmatpush.msra.mxu0 %v739
    %1068 = vmatpush.msra.mxu0 %v731
    %1069 = vmatpush.msra.mxu0 %v723
    %1070 = vmatpush.msra.mxu0 %v715
    %1071 = vmatpush.msra.mxu0 %v707
    %1072 = vmatpush.msra.mxu0 %v699
    %1073 = vmatmul.f32.gmra.mxu0 %v823
    %v1074 = vpop.f32.mrf.mxu0
    %v1075 = vadd.f32 %v1055, %v1074
    %1076 = vdwg.mxu0
    %1077 = vmatpush.msra.mxu0 %v692
    %1078 = vmatpush.msra.mxu0 %v684
    %1079 = vmatpush.msra.mxu0 %v676
    %1080 = vmatpush.msra.mxu0 %v668
    %1081 = vmatpush.msra.mxu0 %v660
    %1082 = vmatpush.msra.mxu0 %v652
    %1083 = vmatpush.msra.mxu0 %v644
    %1084 = vmatpush.msra.mxu0 %v636
    %1085 = vmatpush.msra.mxu0 %v628
    %1086 = vmatpush.msra.mxu0 %v620
    %1087 = vmatpush.msra.mxu0 %v612
    %1088 = vmatpush.msra.mxu0 %v604
    %1089 = vmatpush.msra.mxu0 %v596
    %1090 = vmatpush.msra.mxu0 %v588
    %1091 = vmatpush.msra.mxu0 %v580
    %1092 = vmatpush.msra.mxu0 %v572
    %1093 = vmatmul.f32.gmra.mxu0 %v822
    %v1094 = vpop.f32.mrf.mxu0
    %v1095 = vadd.f32 0.0, %v1094
    %1096 = vdwg.mxu0
    %1097 = vmatpush.msra.mxu0 %v820
    %1098 = vmatpush.msra.mxu0 %v812
    %1099 = vmatpush.msra.mxu0 %v804
    %1100 = vmatpush.msra.mxu0 %v796
    %1101 = vmatpush.msra.mxu0 %v788
    %1102 = vmatpush.msra.mxu0 %v780
    %1103 = vmatpush.msra.mxu0 %v772
    %1104 = vmatpush.msra.mxu0 %v764
    %1105 = vmatpush.msra.mxu0 %v756
    %1106 = vmatpush.msra.mxu0 %v748
    %1107 = vmatpush.msra.mxu0 %v740
    %1108 = vmatpush.msra.mxu0 %v732
    %1109 = vmatpush.msra.mxu0 %v724
    %1110 = vmatpush.msra.mxu0 %v716
    %1111 = vmatpush.msra.mxu0 %v708
    %1112 = vmatpush.msra.mxu0 %v700
    %1113 = vmatmul.f32.gmra.mxu0 %v823
    %v1114 = vpop.f32.mrf.mxu0
    %v1115 = vadd.f32 %v1095, %v1114
    %1116 = vdwg.mxu0
    %1117 = vmatpush.msra.mxu0 %v693
    %1118 = vmatpush.msra.mxu0 %v685
    %1119 = vmatpush.msra.mxu0 %v677
    %1120 = vmatpush.msra.mxu0 %v669
    %1121 = vmatpush.msra.mxu0 %v661
    %1122 = vmatpush.msra.mxu0 %v653
    %1123 = vmatpush.msra.mxu0 %v645
    %1124 = vmatpush.msra.mxu0 %v637
    %1125 = vmatpush.msra.mxu0 %v629
    %1126 = vmatpush.msra.mxu0 %v621
    %1127 = vmatpush.msra.mxu0 %v613
    %1128 = vmatpush.msra.mxu0 %v605
    %1129 = vmatpush.msra.mxu0 %v597
    %1130 = vmatpush.msra.mxu0 %v589
    %1131 = vmatpush.msra.mxu0 %v581
    %1132 = vmatpush.msra.mxu0 %v573
    %1133 = vmatmul.f32.gmra.mxu0 %v822
    %v1134 = vpop.f32.mrf.mxu0
    %v1135 = vadd.f32 0.0, %v1134
    %1136 = vdwg.mxu0
    %1137 = vmatpush.msra.mxu0 %v821
    %1138 = vmatpush.msra.mxu0 %v813
    %1139 = vmatpush.msra.mxu0 %v805
    %1140 = vmatpush.msra.mxu0 %v797
    %1141 = vmatpush.msra.mxu0 %v789
    %1142 = vmatpush.msra.mxu0 %v781
    %1143 = vmatpush.msra.mxu0 %v773
    %1144 = vmatpush.msra.mxu0 %v765
    %1145 = vmatpush.msra.mxu0 %v757
    %1146 = vmatpush.msra.mxu0 %v749
    %1147 = vmatpush.msra.mxu0 %v741
    %1148 = vmatpush.msra.mxu0 %v733
    %1149 = vmatpush.msra.mxu0 %v725
    %1150 = vmatpush.msra.mxu0 %v717
    %1151 = vmatpush.msra.mxu0 %v709
    %1152 = vmatpush.msra.mxu0 %v701
    %1153 = vmatmul.f32.gmra.mxu0 %v823
    %v1154 = vpop.f32.mrf.mxu0
    %v1155 = vadd.f32 %v1135, %v1154
    %1156 = vdwg.mxu0
    %v1157 = vadd.f32 %v829, %v875
    %v1158 = vadd.f32 %v830, %v915
    %v1159 = vadd.f32 %v831, %v955
    %v1160 = vadd.f32 %v832, %v995
    %v1161 = vadd.f32 %v833, %v1035
    %v1162 = vadd.f32 %v834, %v1075
    %v1163 = vadd.f32 %v835, %v1115
    %v1164 = vadd.f32 %v836, %v1155
    %v1165 = vxor.u32 %v1157, 2147483648
    %v1166 = vxor.u32 %v1158, 2147483648
    %v1167 = vmul.f32 %v1165, 1.442695
    %v1168 = vpow.pop %v1167
    %v1169 = vmul.f32 %v1166, 1.442695
    %v1170 = vpow.pop %v1169
    %v1171 = vadd.f32 %v1168, 1.0
    %v1172 = vadd.f32 %v1170, 1.0
    %v1173 = vrcp.pop %v1171
    %v1174 = vmul.f32 %v1171, %v1173
    %v1175 = vsub.f32 1.0, %v1174
    %v1176 = vmul.f32 %v1173, %v1175
    %v1177 = vadd.f32 %v1173, %v1176
    %vm1178 = vweird.f32 %v1171
    %vm1179 = vweird.f32 %v1173
    %vm1180 = vmor %vm1178, %vm1179
    %v1181 = vsel %vm1180, %v1173, %v1177
    %v1182 = vand.u32 2147483647, %v1171
    %vm1183 = vcmp.eq.f32.partialorder %v1182, 8.507059e+37
    %v1184 = vand.u32 %v1171, 2147483648
    %v1185 = vor.u32 1.1754944e-38, %v1184
    %v1186 = vsel %vm1183, %v1185, %v1181
    %v1187 = vmul.f32 1.0, %v1186
    %v1188 = vrcp.pop %v1172
    %v1189 = vmul.f32 %v1172, %v1188
    %v1190 = vsub.f32 1.0, %v1189
    %v1191 = vmul.f32 %v1188, %v1190
    %v1192 = vadd.f32 %v1188, %v1191
    %vm1193 = vweird.f32 %v1172
    %vm1194 = vweird.f32 %v1188
    %vm1195 = vmor %vm1193, %vm1194
    %v1196 = vsel %vm1195, %v1188, %v1192
    %v1197 = vand.u32 2147483647, %v1172
    %vm1198 = vcmp.eq.f32.partialorder %v1197, 8.507059e+37
    %v1199 = vand.u32 %v1172, 2147483648
    %v1200 = vor.u32 1.1754944e-38, %v1199
    %v1201 = vsel %vm1198, %v1200, %v1196
    %v1202 = vmul.f32 1.0, %v1201
    %v1203 = vxor.u32 %v1159, 2147483648
    %v1204 = vxor.u32 %v1160, 2147483648
    %v1205 = vmul.f32 %v1203, 1.442695
    %v1206 = vpow.pop %v1205
    %v1207 = vmul.f32 %v1204, 1.442695
    %v1208 = vpow.pop %v1207
    %v1209 = vadd.f32 %v1206, 1.0
    %v1210 = vadd.f32 %v1208, 1.0
    %v1211 = vrcp.pop %v1209
    %v1212 = vmul.f32 %v1209, %v1211
    %v1213 = vsub.f32 1.0, %v1212
    %v1214 = vmul.f32 %v1211, %v1213
    %v1215 = vadd.f32 %v1211, %v1214
    %vm1216 = vweird.f32 %v1209
    %vm1217 = vweird.f32 %v1211
    %vm1218 = vmor %vm1216, %vm1217
    %v1219 = vsel %vm1218, %v1211, %v1215
    %v1220 = vand.u32 2147483647, %v1209
    %vm1221 = vcmp.eq.f32.partialorder %v1220, 8.507059e+37
    %v1222 = vand.u32 %v1209, 2147483648
    %v1223 = vor.u32 1.1754944e-38, %v1222
    %v1224 = vsel %vm1221, %v1223, %v1219
    %v1225 = vmul.f32 1.0, %v1224
    %v1226 = vrcp.pop %v1210
    %v1227 = vmul.f32 %v1210, %v1226
    %v1228 = vsub.f32 1.0, %v1227
    %v1229 = vmul.f32 %v1226, %v1228
    %v1230 = vadd.f32 %v1226, %v1229
    %vm1231 = vweird.f32 %v1210
    %vm1232 = vweird.f32 %v1226
    %vm1233 = vmor %vm1231, %vm1232
    %v1234 = vsel %vm1233, %v1226, %v1230
    %v1235 = vand.u32 2147483647, %v1210
    %vm1236 = vcmp.eq.f32.partialorder %v1235, 8.507059e+37
    %v1237 = vand.u32 %v1210, 2147483648
    %v1238 = vor.u32 1.1754944e-38, %v1237
    %v1239 = vsel %vm1236, %v1238, %v1234
    %v1240 = vmul.f32 1.0, %v1239
    %v1241 = vtanh.pop %v1161
    %v1242 = vtanh.pop %v1162
    %v1243 = vxor.u32 %v1163, 2147483648
    %v1244 = vxor.u32 %v1164, 2147483648
    %v1245 = vmul.f32 %v1243, 1.442695
    %v1246 = vpow.pop %v1245
    %v1247 = vmul.f32 %v1244, 1.442695
    %v1248 = vpow.pop %v1247
    %v1249 = vadd.f32 %v1246, 1.0
    %v1250 = vadd.f32 %v1248, 1.0
    %v1251 = vrcp.pop %v1249
    %v1252 = vmul.f32 %v1249, %v1251
    %v1253 = vsub.f32 1.0, %v1252
    %v1254 = vmul.f32 %v1251, %v1253
    %v1255 = vadd.f32 %v1251, %v1254
    %vm1256 = vweird.f32 %v1249
    %vm1257 = vweird.f32 %v1251
    %vm1258 = vmor %vm1256, %vm1257
    %v1259 = vsel %vm1258, %v1251, %v1255
    %v1260 = vand.u32 2147483647, %v1249
    %vm1261 = vcmp.eq.f32.partialorder %v1260, 8.507059e+37
    %v1262 = vand.u32 %v1249, 2147483648
    %v1263 = vor.u32 1.1754944e-38, %v1262
    %v1264 = vsel %vm1261, %v1263, %v1259
    %v1265 = vmul.f32 1.0, %v1264
    %v1266 = vrcp.pop %v1250
    %v1267 = vmul.f32 %v1250, %v1266
    %v1268 = vsub.f32 1.0, %v1267
    %v1269 = vmul.f32 %v1266, %v1268
    %v1270 = vadd.f32 %v1266, %v1269
    %vm1271 = vweird.f32 %v1250
    %vm1272 = vweird.f32 %v1266
    %vm1273 = vmor %vm1271, %vm1272
    %v1274 = vsel %vm1273, %v1266, %v1270
    %v1275 = vand.u32 2147483647, %v1250
    %vm1276 = vcmp.eq.f32.partialorder %v1275, 8.507059e+37
    %v1277 = vand.u32 %v1250, 2147483648
    %v1278 = vor.u32 1.1754944e-38, %v1277
    %v1279 = vsel %vm1276, %v1278, %v1274
    %v1280 = vmul.f32 1.0, %v1279
    %v1281 = vmul.f32 %v1225, %v824
    %v1282 = vmul.f32 %v1240, %v825
    %v1283 = vmul.f32 %v1187, %v1241
    %v1284 = vmul.f32 %v1202, %v1242
    %v1285 = vadd.f32 %v1281, %v1283
    %v1286 = vadd.f32 %v1282, %v1284
    %v1287 = vtanh.pop %v1285
    %v1288 = vtanh.pop %v1286
    %v1289 = vmul.f32 %v1265, %v1287
    %v1290 = vmul.f32 %v1280, %v1288
    %s1291 = smul.u32 1, 8
    %s1292 = smul.addr %s1291, 8
    %s1293 = scalar_lea.vmem [#allocation2], %s1292
    %v1294 = vld [vmem:[%s1293] sm:$0xff]
    %v1295 = vld [vmem:[%s1293 + $0x8] sm:$0xff]
    %v1296 = vld [vmem:[%s1293 + $0x10] sm:$0xff]
    %v1297 = vld [vmem:[%s1293 + $0x18] sm:$0xff]
    %v1298 = vld [vmem:[%s1293 + $0x20] sm:$0xff]
    %v1299 = vld [vmem:[%s1293 + $0x28] sm:$0xff]
    %v1300 = vld [vmem:[%s1293 + $0x30] sm:$0xff]
    %v1301 = vld [vmem:[%s1293 + $0x38] sm:$0xff]
    %1302 = vmatpush.msra.mxu0 %v686
    %1303 = vmatpush.msra.mxu0 %v678
    %1304 = vmatpush.msra.mxu0 %v670
    %1305 = vmatpush.msra.mxu0 %v662
    %1306 = vmatpush.msra.mxu0 %v654
    %1307 = vmatpush.msra.mxu0 %v646
    %1308 = vmatpush.msra.mxu0 %v638
    %1309 = vmatpush.msra.mxu0 %v630
    %1310 = vmatpush.msra.mxu0 %v622
    %1311 = vmatpush.msra.mxu0 %v614
    %1312 = vmatpush.msra.mxu0 %v606
    %1313 = vmatpush.msra.mxu0 %v598
    %1314 = vmatpush.msra.mxu0 %v590
    %1315 = vmatpush.msra.mxu0 %v582
    %1316 = vmatpush.msra.mxu0 %v574
    %1317 = vmatpush.msra.mxu0 %v566
    %1318 = vmatmul.f32.gmra.mxu0 %v1289
    %v1319 = vpop.f32.mrf.mxu0
    %v1320 = vadd.f32 0.0, %v1319
    %1321 = vdwg.mxu0
    %1322 = vmatpush.msra.mxu0 %v814
    %1323 = vmatpush.msra.mxu0 %v806
    %1324 = vmatpush.msra.mxu0 %v798
    %1325 = vmatpush.msra.mxu0 %v790
    %1326 = vmatpush.msra.mxu0 %v782
    %1327 = vmatpush.msra.mxu0 %v774
    %1328 = vmatpush.msra.mxu0 %v766
    %1329 = vmatpush.msra.mxu0 %v758
    %1330 = vmatpush.msra.mxu0 %v750
    %1331 = vmatpush.msra.mxu0 %v742
    %1332 = vmatpush.msra.mxu0 %v734
    %1333 = vmatpush.msra.mxu0 %v726
    %1334 = vmatpush.msra.mxu0 %v718
    %1335 = vmatpush.msra.mxu0 %v710
    %1336 = vmatpush.msra.mxu0 %v702
    %1337 = vmatpush.msra.mxu0 %v694
    %1338 = vmatmul.f32.gmra.mxu0 %v1290
    %v1339 = vpop.f32.mrf.mxu0
    %v1340 = vadd.f32 %v1320, %v1339
    %1341 = vdwg.mxu0
    %1342 = vmatpush.msra.mxu0 %v687
    %1343 = vmatpush.msra.mxu0 %v679
    %1344 = vmatpush.msra.mxu0 %v671
    %1345 = vmatpush.msra.mxu0 %v663
    %1346 = vmatpush.msra.mxu0 %v655
    %1347 = vmatpush.msra.mxu0 %v647
    %1348 = vmatpush.msra.mxu0 %v639
    %1349 = vmatpush.msra.mxu0 %v631
    %1350 = vmatpush.msra.mxu0 %v623
    %1351 = vmatpush.msra.mxu0 %v615
    %1352 = vmatpush.msra.mxu0 %v607
    %1353 = vmatpush.msra.mxu0 %v599
    %1354 = vmatpush.msra.mxu0 %v591
    %1355 = vmatpush.msra.mxu0 %v583
    %1356 = vmatpush.msra.mxu0 %v575
    %1357 = vmatpush.msra.mxu0 %v567
    %1358 = vmatmul.f32.gmra.mxu0 %v1289
    %v1359 = vpop.f32.mrf.mxu0
    %v1360 = vadd.f32 0.0, %v1359
    %1361 = vdwg.mxu0
    %1362 = vmatpush.msra.mxu0 %v815
    %1363 = vmatpush.msra.mxu0 %v807
    %1364 = vmatpush.msra.mxu0 %v799
    %1365 = vmatpush.msra.mxu0 %v791
    %1366 = vmatpush.msra.mxu0 %v783
    %1367 = vmatpush.msra.mxu0 %v775
    %1368 = vmatpush.msra.mxu0 %v767
    %1369 = vmatpush.msra.mxu0 %v759
    %1370 = vmatpush.msra.mxu0 %v751
    %1371 = vmatpush.msra.mxu0 %v743
    %1372 = vmatpush.msra.mxu0 %v735
    %1373 = vmatpush.msra.mxu0 %v727
    %1374 = vmatpush.msra.mxu0 %v719
    %1375 = vmatpush.msra.mxu0 %v711
    %1376 = vmatpush.msra.mxu0 %v703
    %1377 = vmatpush.msra.mxu0 %v695
    %1378 = vmatmul.f32.gmra.mxu0 %v1290
    %v1379 = vpop.f32.mrf.mxu0
    %v1380 = vadd.f32 %v1360, %v1379
    %1381 = vdwg.mxu0
    %1382 = vmatpush.msra.mxu0 %v688
    %1383 = vmatpush.msra.mxu0 %v680
    %1384 = vmatpush.msra.mxu0 %v672
    %1385 = vmatpush.msra.mxu0 %v664
    %1386 = vmatpush.msra.mxu0 %v656
    %1387 = vmatpush.msra.mxu0 %v648
    %1388 = vmatpush.msra.mxu0 %v640
    %1389 = vmatpush.msra.mxu0 %v632
    %1390 = vmatpush.msra.mxu0 %v624
    %1391 = vmatpush.msra.mxu0 %v616
    %1392 = vmatpush.msra.mxu0 %v608
    %1393 = vmatpush.msra.mxu0 %v600
    %1394 = vmatpush.msra.mxu0 %v592
    %1395 = vmatpush.msra.mxu0 %v584
    %1396 = vmatpush.msra.mxu0 %v576
    %1397 = vmatpush.msra.mxu0 %v568
    %1398 = vmatmul.f32.gmra.mxu0 %v1289
    %v1399 = vpop.f32.mrf.mxu0
    %v1400 = vadd.f32 0.0, %v1399
    %1401 = vdwg.mxu0
    %1402 = vmatpush.msra.mxu0 %v816
    %1403 = vmatpush.msra.mxu0 %v808
    %1404 = vmatpush.msra.mxu0 %v800
    %1405 = vmatpush.msra.mxu0 %v792
    %1406 = vmatpush.msra.mxu0 %v784
    %1407 = vmatpush.msra.mxu0 %v776
    %1408 = vmatpush.msra.mxu0 %v768
    %1409 = vmatpush.msra.mxu0 %v760
    %1410 = vmatpush.msra.mxu0 %v752
    %1411 = vmatpush.msra.mxu0 %v744
    %1412 = vmatpush.msra.mxu0 %v736
    %1413 = vmatpush.msra.mxu0 %v728
    %1414 = vmatpush.msra.mxu0 %v720
    %1415 = vmatpush.msra.mxu0 %v712
    %1416 = vmatpush.msra.mxu0 %v704
    %1417 = vmatpush.msra.mxu0 %v696
    %1418 = vmatmul.f32.gmra.mxu0 %v1290
    %v1419 = vpop.f32.mrf.mxu0
    %v1420 = vadd.f32 %v1400, %v1419
    %1421 = vdwg.mxu0
    %1422 = vmatpush.msra.mxu0 %v689
    %1423 = vmatpush.msra.mxu0 %v681
    %1424 = vmatpush.msra.mxu0 %v673
    %1425 = vmatpush.msra.mxu0 %v665
    %1426 = vmatpush.msra.mxu0 %v657
    %1427 = vmatpush.msra.mxu0 %v649
    %1428 = vmatpush.msra.mxu0 %v641
    %1429 = vmatpush.msra.mxu0 %v633
    %1430 = vmatpush.msra.mxu0 %v625
    %1431 = vmatpush.msra.mxu0 %v617
    %1432 = vmatpush.msra.mxu0 %v609
    %1433 = vmatpush.msra.mxu0 %v601
    %1434 = vmatpush.msra.mxu0 %v593
    %1435 = vmatpush.msra.mxu0 %v585
    %1436 = vmatpush.msra.mxu0 %v577
    %1437 = vmatpush.msra.mxu0 %v569
    %1438 = vmatmul.f32.gmra.mxu0 %v1289
    %v1439 = vpop.f32.mrf.mxu0
    %v1440 = vadd.f32 0.0, %v1439
    %1441 = vdwg.mxu0
    %1442 = vmatpush.msra.mxu0 %v817
    %1443 = vmatpush.msra.mxu0 %v809
    %1444 = vmatpush.msra.mxu0 %v801
    %1445 = vmatpush.msra.mxu0 %v793
    %1446 = vmatpush.msra.mxu0 %v785
    %1447 = vmatpush.msra.mxu0 %v777
    %1448 = vmatpush.msra.mxu0 %v769
    %1449 = vmatpush.msra.mxu0 %v761
    %1450 = vmatpush.msra.mxu0 %v753
    %1451 = vmatpush.msra.mxu0 %v745
    %1452 = vmatpush.msra.mxu0 %v737
    %1453 = vmatpush.msra.mxu0 %v729
    %1454 = vmatpush.msra.mxu0 %v721
    %1455 = vmatpush.msra.mxu0 %v713
    %1456 = vmatpush.msra.mxu0 %v705
    %1457 = vmatpush.msra.mxu0 %v697
    %1458 = vmatmul.f32.gmra.mxu0 %v1290
    %v1459 = vpop.f32.mrf.mxu0
    %v1460 = vadd.f32 %v1440, %v1459
    %1461 = vdwg.mxu0
    %1462 = vmatpush.msra.mxu0 %v690
    %1463 = vmatpush.msra.mxu0 %v682
    %1464 = vmatpush.msra.mxu0 %v674
    %1465 = vmatpush.msra.mxu0 %v666
    %1466 = vmatpush.msra.mxu0 %v658
    %1467 = vmatpush.msra.mxu0 %v650
    %1468 = vmatpush.msra.mxu0 %v642
    %1469 = vmatpush.msra.mxu0 %v634
    %1470 = vmatpush.msra.mxu0 %v626
    %1471 = vmatpush.msra.mxu0 %v618
    %1472 = vmatpush.msra.mxu0 %v610
    %1473 = vmatpush.msra.mxu0 %v602
    %1474 = vmatpush.msra.mxu0 %v594
    %1475 = vmatpush.msra.mxu0 %v586
    %1476 = vmatpush.msra.mxu0 %v578
    %1477 = vmatpush.msra.mxu0 %v570
    %1478 = vmatmul.f32.gmra.mxu0 %v1289
    %v1479 = vpop.f32.mrf.mxu0
    %v1480 = vadd.f32 0.0, %v1479
    %1481 = vdwg.mxu0
    %1482 = vmatpush.msra.mxu0 %v818
    %1483 = vmatpush.msra.mxu0 %v810
    %1484 = vmatpush.msra.mxu0 %v802
    %1485 = vmatpush.msra.mxu0 %v794
    %1486 = vmatpush.msra.mxu0 %v786
    %1487 = vmatpush.msra.mxu0 %v778
    %1488 = vmatpush.msra.mxu0 %v770
    %1489 = vmatpush.msra.mxu0 %v762
    %1490 = vmatpush.msra.mxu0 %v754
    %1491 = vmatpush.msra.mxu0 %v746
    %1492 = vmatpush.msra.mxu0 %v738
    %1493 = vmatpush.msra.mxu0 %v730
    %1494 = vmatpush.msra.mxu0 %v722
    %1495 = vmatpush.msra.mxu0 %v714
    %1496 = vmatpush.msra.mxu0 %v706
    %1497 = vmatpush.msra.mxu0 %v698
    %1498 = vmatmul.f32.gmra.mxu0 %v1290
    %v1499 = vpop.f32.mrf.mxu0
    %v1500 = vadd.f32 %v1480, %v1499
    %1501 = vdwg.mxu0
    %1502 = vmatpush.msra.mxu0 %v691
    %1503 = vmatpush.msra.mxu0 %v683
    %1504 = vmatpush.msra.mxu0 %v675
    %1505 = vmatpush.msra.mxu0 %v667
    %1506 = vmatpush.msra.mxu0 %v659
    %1507 = vmatpush.msra.mxu0 %v651
    %1508 = vmatpush.msra.mxu0 %v643
    %1509 = vmatpush.msra.mxu0 %v635
    %1510 = vmatpush.msra.mxu0 %v627
    %1511 = vmatpush.msra.mxu0 %v619
    %1512 = vmatpush.msra.mxu0 %v611
    %1513 = vmatpush.msra.mxu0 %v603
    %1514 = vmatpush.msra.mxu0 %v595
    %1515 = vmatpush.msra.mxu0 %v587
    %1516 = vmatpush.msra.mxu0 %v579
    %1517 = vmatpush.msra.mxu0 %v571
    %1518 = vmatmul.f32.gmra.mxu0 %v1289
    %v1519 = vpop.f32.mrf.mxu0
    %v1520 = vadd.f32 0.0, %v1519
    %1521 = vdwg.mxu0
    %1522 = vmatpush.msra.mxu0 %v819
    %1523 = vmatpush.msra.mxu0 %v811
    %1524 = vmatpush.msra.mxu0 %v803
    %1525 = vmatpush.msra.mxu0 %v795
    %1526 = vmatpush.msra.mxu0 %v787
    %1527 = vmatpush.msra.mxu0 %v779
    %1528 = vmatpush.msra.mxu0 %v771
    %1529 = vmatpush.msra.mxu0 %v763
    %1530 = vmatpush.msra.mxu0 %v755
    %1531 = vmatpush.msra.mxu0 %v747
    %1532 = vmatpush.msra.mxu0 %v739
    %1533 = vmatpush.msra.mxu0 %v731
    %1534 = vmatpush.msra.mxu0 %v723
    %1535 = vmatpush.msra.mxu0 %v715
    %1536 = vmatpush.msra.mxu0 %v707
    %1537 = vmatpush.msra.mxu0 %v699
    %1538 = vmatmul.f32.gmra.mxu0 %v1290
    %v1539 = vpop.f32.mrf.mxu0
    %v1540 = vadd.f32 %v1520, %v1539
    %1541 = vdwg.mxu0
    %1542 = vmatpush.msra.mxu0 %v692
    %1543 = vmatpush.msra.mxu0 %v684
    %1544 = vmatpush.msra.mxu0 %v676
    %1545 = vmatpush.msra.mxu0 %v668
    %1546 = vmatpush.msra.mxu0 %v660
    %1547 = vmatpush.msra.mxu0 %v652
    %1548 = vmatpush.msra.mxu0 %v644
    %1549 = vmatpush.msra.mxu0 %v636
    %1550 = vmatpush.msra.mxu0 %v628
    %1551 = vmatpush.msra.mxu0 %v620
    %1552 = vmatpush.msra.mxu0 %v612
    %1553 = vmatpush.msra.mxu0 %v604
    %1554 = vmatpush.msra.mxu0 %v596
    %1555 = vmatpush.msra.mxu0 %v588
    %1556 = vmatpush.msra.mxu0 %v580
    %1557 = vmatpush.msra.mxu0 %v572
    %1558 = vmatmul.f32.gmra.mxu0 %v1289
    %v1559 = vpop.f32.mrf.mxu0
    %v1560 = vadd.f32 0.0, %v1559
    %1561 = vdwg.mxu0
    %1562 = vmatpush.msra.mxu0 %v820
    %1563 = vmatpush.msra.mxu0 %v812
    %1564 = vmatpush.msra.mxu0 %v804
    %1565 = vmatpush.msra.mxu0 %v796
    %1566 = vmatpush.msra.mxu0 %v788
    %1567 = vmatpush.msra.mxu0 %v780
    %1568 = vmatpush.msra.mxu0 %v772
    %1569 = vmatpush.msra.mxu0 %v764
    %1570 = vmatpush.msra.mxu0 %v756
    %1571 = vmatpush.msra.mxu0 %v748
    %1572 = vmatpush.msra.mxu0 %v740
    %1573 = vmatpush.msra.mxu0 %v732
    %1574 = vmatpush.msra.mxu0 %v724
    %1575 = vmatpush.msra.mxu0 %v716
    %1576 = vmatpush.msra.mxu0 %v708
    %1577 = vmatpush.msra.mxu0 %v700
    %1578 = vmatmul.f32.gmra.mxu0 %v1290
    %v1579 = vpop.f32.mrf.mxu0
    %v1580 = vadd.f32 %v1560, %v1579
    %1581 = vdwg.mxu0
    %1582 = vmatpush.msra.mxu0 %v693
    %1583 = vmatpush.msra.mxu0 %v685
    %1584 = vmatpush.msra.mxu0 %v677
    %1585 = vmatpush.msra.mxu0 %v669
    %1586 = vmatpush.msra.mxu0 %v661
    %1587 = vmatpush.msra.mxu0 %v653
    %1588 = vmatpush.msra.mxu0 %v645
    %1589 = vmatpush.msra.mxu0 %v637
    %1590 = vmatpush.msra.mxu0 %v629
    %1591 = vmatpush.msra.mxu0 %v621
    %1592 = vmatpush.msra.mxu0 %v613
    %1593 = vmatpush.msra.mxu0 %v605
    %1594 = vmatpush.msra.mxu0 %v597
    %1595 = vmatpush.msra.mxu0 %v589
    %1596 = vmatpush.msra.mxu0 %v581
    %1597 = vmatpush.msra.mxu0 %v573
    %1598 = vmatmul.f32.gmra.mxu0 %v1289
    %v1599 = vpop.f32.mrf.mxu0
    %v1600 = vadd.f32 0.0, %v1599
    %1601 = vdwg.mxu0
    %1602 = vmatpush.msra.mxu0 %v821
    %1603 = vmatpush.msra.mxu0 %v813
    %1604 = vmatpush.msra.mxu0 %v805
    %1605 = vmatpush.msra.mxu0 %v797
    %1606 = vmatpush.msra.mxu0 %v789
    %1607 = vmatpush.msra.mxu0 %v781
    %1608 = vmatpush.msra.mxu0 %v773
    %1609 = vmatpush.msra.mxu0 %v765
    %1610 = vmatpush.msra.mxu0 %v757
    %1611 = vmatpush.msra.mxu0 %v749
    %1612 = vmatpush.msra.mxu0 %v741
    %1613 = vmatpush.msra.mxu0 %v733
    %1614 = vmatpush.msra.mxu0 %v725
    %1615 = vmatpush.msra.mxu0 %v717
    %1616 = vmatpush.msra.mxu0 %v709
    %1617 = vmatpush.msra.mxu0 %v701
    %1618 = vmatmul.f32.gmra.mxu0 %v1290
    %v1619 = vpop.f32.mrf.mxu0
    %v1620 = vadd.f32 %v1600, %v1619
    %1621 = vdwg.mxu0
    %v1622 = vadd.f32 %v1294, %v1340
    %v1623 = vadd.f32 %v1295, %v1380
    %v1624 = vadd.f32 %v1296, %v1420
    %v1625 = vadd.f32 %v1297, %v1460
    %v1626 = vadd.f32 %v1298, %v1500
    %v1627 = vadd.f32 %v1299, %v1540
    %v1628 = vadd.f32 %v1300, %v1580
    %v1629 = vadd.f32 %v1301, %v1620
    %v1630 = vxor.u32 %v1622, 2147483648
    %v1631 = vxor.u32 %v1623, 2147483648
    %v1632 = vmul.f32 %v1630, 1.442695
    %v1633 = vpow.pop %v1632
    %v1634 = vmul.f32 %v1631, 1.442695
    %v1635 = vpow.pop %v1634
    %v1636 = vadd.f32 %v1633, 1.0
    %v1637 = vadd.f32 %v1635, 1.0
    %v1638 = vrcp.pop %v1636
    %v1639 = vmul.f32 %v1636, %v1638
    %v1640 = vsub.f32 1.0, %v1639
    %v1641 = vmul.f32 %v1638, %v1640
    %v1642 = vadd.f32 %v1638, %v1641
    %vm1643 = vweird.f32 %v1636
    %vm1644 = vweird.f32 %v1638
    %vm1645 = vmor %vm1643, %vm1644
    %v1646 = vsel %vm1645, %v1638, %v1642
    %v1647 = vand.u32 2147483647, %v1636
    %vm1648 = vcmp.eq.f32.partialorder %v1647, 8.507059e+37
    %v1649 = vand.u32 %v1636, 2147483648
    %v1650 = vor.u32 1.1754944e-38, %v1649
    %v1651 = vsel %vm1648, %v1650, %v1646
    %v1652 = vmul.f32 1.0, %v1651
    %v1653 = vrcp.pop %v1637
    %v1654 = vmul.f32 %v1637, %v1653
    %v1655 = vsub.f32 1.0, %v1654
    %v1656 = vmul.f32 %v1653, %v1655
    %v1657 = vadd.f32 %v1653, %v1656
    %vm1658 = vweird.f32 %v1637
    %vm1659 = vweird.f32 %v1653
    %vm1660 = vmor %vm1658, %vm1659
    %v1661 = vsel %vm1660, %v1653, %v1657
    %v1662 = vand.u32 2147483647, %v1637
    %vm1663 = vcmp.eq.f32.partialorder %v1662, 8.507059e+37
    %v1664 = vand.u32 %v1637, 2147483648
    %v1665 = vor.u32 1.1754944e-38, %v1664
    %v1666 = vsel %vm1663, %v1665, %v1661
    %v1667 = vmul.f32 1.0, %v1666
    %v1668 = vxor.u32 %v1624, 2147483648
    %v1669 = vxor.u32 %v1625, 2147483648
    %v1670 = vmul.f32 %v1668, 1.442695
    %v1671 = vpow.pop %v1670
    %v1672 = vmul.f32 %v1669, 1.442695
    %v1673 = vpow.pop %v1672
    %v1674 = vadd.f32 %v1671, 1.0
    %v1675 = vadd.f32 %v1673, 1.0
    %v1676 = vrcp.pop %v1674
    %v1677 = vmul.f32 %v1674, %v1676
    %v1678 = vsub.f32 1.0, %v1677
    %v1679 = vmul.f32 %v1676, %v1678
    %v1680 = vadd.f32 %v1676, %v1679
    %vm1681 = vweird.f32 %v1674
    %vm1682 = vweird.f32 %v1676
    %vm1683 = vmor %vm1681, %vm1682
    %v1684 = vsel %vm1683, %v1676, %v1680
    %v1685 = vand.u32 2147483647, %v1674
    %vm1686 = vcmp.eq.f32.partialorder %v1685, 8.507059e+37
    %v1687 = vand.u32 %v1674, 2147483648
    %v1688 = vor.u32 1.1754944e-38, %v1687
    %v1689 = vsel %vm1686, %v1688, %v1684
    %v1690 = vmul.f32 1.0, %v1689
    %v1691 = vrcp.pop %v1675
    %v1692 = vmul.f32 %v1675, %v1691
    %v1693 = vsub.f32 1.0, %v1692
    %v1694 = vmul.f32 %v1691, %v1693
    %v1695 = vadd.f32 %v1691, %v1694
    %vm1696 = vweird.f32 %v1675
    %vm1697 = vweird.f32 %v1691
    %vm1698 = vmor %vm1696, %vm1697
    %v1699 = vsel %vm1698, %v1691, %v1695
    %v1700 = vand.u32 2147483647, %v1675
    %vm1701 = vcmp.eq.f32.partialorder %v1700, 8.507059e+37
    %v1702 = vand.u32 %v1675, 2147483648
    %v1703 = vor.u32 1.1754944e-38, %v1702
    %v1704 = vsel %vm1701, %v1703, %v1699
    %v1705 = vmul.f32 1.0, %v1704
    %v1706 = vtanh.pop %v1626
    %v1707 = vtanh.pop %v1627
    %v1708 = vxor.u32 %v1628, 2147483648
    %v1709 = vxor.u32 %v1629, 2147483648
    %v1710 = vmul.f32 %v1708, 1.442695
    %v1711 = vpow.pop %v1710
    %v1712 = vmul.f32 %v1709, 1.442695
    %v1713 = vpow.pop %v1712
    %v1714 = vadd.f32 %v1711, 1.0
    %v1715 = vadd.f32 %v1713, 1.0
    %v1716 = vrcp.pop %v1714
    %v1717 = vmul.f32 %v1714, %v1716
    %v1718 = vsub.f32 1.0, %v1717
    %v1719 = vmul.f32 %v1716, %v1718
    %v1720 = vadd.f32 %v1716, %v1719
    %vm1721 = vweird.f32 %v1714
    %vm1722 = vweird.f32 %v1716
    %vm1723 = vmor %vm1721, %vm1722
    %v1724 = vsel %vm1723, %v1716, %v1720
    %v1725 = vand.u32 2147483647, %v1714
    %vm1726 = vcmp.eq.f32.partialorder %v1725, 8.507059e+37
    %v1727 = vand.u32 %v1714, 2147483648
    %v1728 = vor.u32 1.1754944e-38, %v1727
    %v1729 = vsel %vm1726, %v1728, %v1724
    %v1730 = vmul.f32 1.0, %v1729
    %v1731 = vrcp.pop %v1715
    %v1732 = vmul.f32 %v1715, %v1731
    %v1733 = vsub.f32 1.0, %v1732
    %v1734 = vmul.f32 %v1731, %v1733
    %v1735 = vadd.f32 %v1731, %v1734
    %vm1736 = vweird.f32 %v1715
    %vm1737 = vweird.f32 %v1731
    %vm1738 = vmor %vm1736, %vm1737
    %v1739 = vsel %vm1738, %v1731, %v1735
    %v1740 = vand.u32 2147483647, %v1715
    %vm1741 = vcmp.eq.f32.partialorder %v1740, 8.507059e+37
    %v1742 = vand.u32 %v1715, 2147483648
    %v1743 = vor.u32 1.1754944e-38, %v1742
    %v1744 = vsel %vm1741, %v1743, %v1739
    %v1745 = vmul.f32 1.0, %v1744
    %v1746 = vmul.f32 %v1690, %v1285
    %v1747 = vmul.f32 %v1705, %v1286
    %v1748 = vmul.f32 %v1652, %v1706
    %v1749 = vmul.f32 %v1667, %v1707
    %v1750 = vadd.f32 %v1746, %v1748
    %v1751 = vadd.f32 %v1747, %v1749
    %v1752 = vtanh.pop %v1750
    %v1753 = vtanh.pop %v1751
    %v1754 = vmul.f32 %v1730, %v1752
    %v1755 = vmul.f32 %v1745, %v1753
    %s1756 = smul.u32 2, 8
    %s1757 = smul.addr %s1756, 8
    %s1758 = scalar_lea.vmem [#allocation2], %s1757
    %v1759 = vld [vmem:[%s1758] sm:$0xff]
    %v1760 = vld [vmem:[%s1758 + $0x8] sm:$0xff]
    %v1761 = vld [vmem:[%s1758 + $0x10] sm:$0xff]
    %v1762 = vld [vmem:[%s1758 + $0x18] sm:$0xff]
    %v1763 = vld [vmem:[%s1758 + $0x20] sm:$0xff]
    %v1764 = vld [vmem:[%s1758 + $0x28] sm:$0xff]
    %v1765 = vld [vmem:[%s1758 + $0x30] sm:$0xff]
    %v1766 = vld [vmem:[%s1758 + $0x38] sm:$0xff]
    %1767 = vmatpush.msra.mxu0 %v686
    %1768 = vmatpush.msra.mxu0 %v678
    %1769 = vmatpush.msra.mxu0 %v670
    %1770 = vmatpush.msra.mxu0 %v662
    %1771 = vmatpush.msra.mxu0 %v654
    %1772 = vmatpush.msra.mxu0 %v646
    %1773 = vmatpush.msra.mxu0 %v638
    %1774 = vmatpush.msra.mxu0 %v630
    %1775 = vmatpush.msra.mxu0 %v622
    %1776 = vmatpush.msra.mxu0 %v614
    %1777 = vmatpush.msra.mxu0 %v606
    %1778 = vmatpush.msra.mxu0 %v598
    %1779 = vmatpush.msra.mxu0 %v590
    %1780 = vmatpush.msra.mxu0 %v582
    %1781 = vmatpush.msra.mxu0 %v574
    %1782 = vmatpush.msra.mxu0 %v566
    %1783 = vmatmul.f32.gmra.mxu0 %v1754
    %v1784 = vpop.f32.mrf.mxu0
    %v1785 = vadd.f32 0.0, %v1784
    %1786 = vdwg.mxu0
    %1787 = vmatpush.msra.mxu0 %v814
    %1788 = vmatpush.msra.mxu0 %v806
    %1789 = vmatpush.msra.mxu0 %v798
    %1790 = vmatpush.msra.mxu0 %v790
    %1791 = vmatpush.msra.mxu0 %v782
    %1792 = vmatpush.msra.mxu0 %v774
    %1793 = vmatpush.msra.mxu0 %v766
    %1794 = vmatpush.msra.mxu0 %v758
    %1795 = vmatpush.msra.mxu0 %v750
    %1796 = vmatpush.msra.mxu0 %v742
    %1797 = vmatpush.msra.mxu0 %v734
    %1798 = vmatpush.msra.mxu0 %v726
    %1799 = vmatpush.msra.mxu0 %v718
    %1800 = vmatpush.msra.mxu0 %v710
    %1801 = vmatpush.msra.mxu0 %v702
    %1802 = vmatpush.msra.mxu0 %v694
    %1803 = vmatmul.f32.gmra.mxu0 %v1755
    %v1804 = vpop.f32.mrf.mxu0
    %v1805 = vadd.f32 %v1785, %v1804
    %1806 = vdwg.mxu0
    %1807 = vmatpush.msra.mxu0 %v687
    %1808 = vmatpush.msra.mxu0 %v679
    %1809 = vmatpush.msra.mxu0 %v671
    %1810 = vmatpush.msra.mxu0 %v663
    %1811 = vmatpush.msra.mxu0 %v655
    %1812 = vmatpush.msra.mxu0 %v647
    %1813 = vmatpush.msra.mxu0 %v639
    %1814 = vmatpush.msra.mxu0 %v631
    %1815 = vmatpush.msra.mxu0 %v623
    %1816 = vmatpush.msra.mxu0 %v615
    %1817 = vmatpush.msra.mxu0 %v607
    %1818 = vmatpush.msra.mxu0 %v599
    %1819 = vmatpush.msra.mxu0 %v591
    %1820 = vmatpush.msra.mxu0 %v583
    %1821 = vmatpush.msra.mxu0 %v575
    %1822 = vmatpush.msra.mxu0 %v567
    %1823 = vmatmul.f32.gmra.mxu0 %v1754
    %v1824 = vpop.f32.mrf.mxu0
    %v1825 = vadd.f32 0.0, %v1824
    %1826 = vdwg.mxu0
    %1827 = vmatpush.msra.mxu0 %v815
    %1828 = vmatpush.msra.mxu0 %v807
    %1829 = vmatpush.msra.mxu0 %v799
    %1830 = vmatpush.msra.mxu0 %v791
    %1831 = vmatpush.msra.mxu0 %v783
    %1832 = vmatpush.msra.mxu0 %v775
    %1833 = vmatpush.msra.mxu0 %v767
    %1834 = vmatpush.msra.mxu0 %v759
    %1835 = vmatpush.msra.mxu0 %v751
    %1836 = vmatpush.msra.mxu0 %v743
    %1837 = vmatpush.msra.mxu0 %v735
    %1838 = vmatpush.msra.mxu0 %v727
    %1839 = vmatpush.msra.mxu0 %v719
    %1840 = vmatpush.msra.mxu0 %v711
    %1841 = vmatpush.msra.mxu0 %v703
    %1842 = vmatpush.msra.mxu0 %v695
    %1843 = vmatmul.f32.gmra.mxu0 %v1755
    %v1844 = vpop.f32.mrf.mxu0
    %v1845 = vadd.f32 %v1825, %v1844
    %1846 = vdwg.mxu0
    %1847 = vmatpush.msra.mxu0 %v688
    %1848 = vmatpush.msra.mxu0 %v680
    %1849 = vmatpush.msra.mxu0 %v672
    %1850 = vmatpush.msra.mxu0 %v664
    %1851 = vmatpush.msra.mxu0 %v656
    %1852 = vmatpush.msra.mxu0 %v648
    %1853 = vmatpush.msra.mxu0 %v640
    %1854 = vmatpush.msra.mxu0 %v632
    %1855 = vmatpush.msra.mxu0 %v624
    %1856 = vmatpush.msra.mxu0 %v616
    %1857 = vmatpush.msra.mxu0 %v608
    %1858 = vmatpush.msra.mxu0 %v600
    %1859 = vmatpush.msra.mxu0 %v592
    %1860 = vmatpush.msra.mxu0 %v584
    %1861 = vmatpush.msra.mxu0 %v576
    %1862 = vmatpush.msra.mxu0 %v568
    %1863 = vmatmul.f32.gmra.mxu0 %v1754
    %v1864 = vpop.f32.mrf.mxu0
    %v1865 = vadd.f32 0.0, %v1864
    %1866 = vdwg.mxu0
    %1867 = vmatpush.msra.mxu0 %v816
    %1868 = vmatpush.msra.mxu0 %v808
    %1869 = vmatpush.msra.mxu0 %v800
    %1870 = vmatpush.msra.mxu0 %v792
    %1871 = vmatpush.msra.mxu0 %v784
    %1872 = vmatpush.msra.mxu0 %v776
    %1873 = vmatpush.msra.mxu0 %v768
    %1874 = vmatpush.msra.mxu0 %v760
    %1875 = vmatpush.msra.mxu0 %v752
    %1876 = vmatpush.msra.mxu0 %v744
    %1877 = vmatpush.msra.mxu0 %v736
    %1878 = vmatpush.msra.mxu0 %v728
    %1879 = vmatpush.msra.mxu0 %v720
    %1880 = vmatpush.msra.mxu0 %v712
    %1881 = vmatpush.msra.mxu0 %v704
    %1882 = vmatpush.msra.mxu0 %v696
    %1883 = vmatmul.f32.gmra.mxu0 %v1755
    %v1884 = vpop.f32.mrf.mxu0
    %v1885 = vadd.f32 %v1865, %v1884
    %1886 = vdwg.mxu0
    %1887 = vmatpush.msra.mxu0 %v689
    %1888 = vmatpush.msra.mxu0 %v681
    %1889 = vmatpush.msra.mxu0 %v673
    %1890 = vmatpush.msra.mxu0 %v665
    %1891 = vmatpush.msra.mxu0 %v657
    %1892 = vmatpush.msra.mxu0 %v649
    %1893 = vmatpush.msra.mxu0 %v641
    %1894 = vmatpush.msra.mxu0 %v633
    %1895 = vmatpush.msra.mxu0 %v625
    %1896 = vmatpush.msra.mxu0 %v617
    %1897 = vmatpush.msra.mxu0 %v609
    %1898 = vmatpush.msra.mxu0 %v601
    %1899 = vmatpush.msra.mxu0 %v593
    %1900 = vmatpush.msra.mxu0 %v585
    %1901 = vmatpush.msra.mxu0 %v577
    %1902 = vmatpush.msra.mxu0 %v569
    %1903 = vmatmul.f32.gmra.mxu0 %v1754
    %v1904 = vpop.f32.mrf.mxu0
    %v1905 = vadd.f32 0.0, %v1904
    %1906 = vdwg.mxu0
    %1907 = vmatpush.msra.mxu0 %v817
    %1908 = vmatpush.msra.mxu0 %v809
    %1909 = vmatpush.msra.mxu0 %v801
    %1910 = vmatpush.msra.mxu0 %v793
    %1911 = vmatpush.msra.mxu0 %v785
    %1912 = vmatpush.msra.mxu0 %v777
    %1913 = vmatpush.msra.mxu0 %v769
    %1914 = vmatpush.msra.mxu0 %v761
    %1915 = vmatpush.msra.mxu0 %v753
    %1916 = vmatpush.msra.mxu0 %v745
    %1917 = vmatpush.msra.mxu0 %v737
    %1918 = vmatpush.msra.mxu0 %v729
    %1919 = vmatpush.msra.mxu0 %v721
    %1920 = vmatpush.msra.mxu0 %v713
    %1921 = vmatpush.msra.mxu0 %v705
    %1922 = vmatpush.msra.mxu0 %v697
    %1923 = vmatmul.f32.gmra.mxu0 %v1755
    %v1924 = vpop.f32.mrf.mxu0
    %v1925 = vadd.f32 %v1905, %v1924
    %1926 = vdwg.mxu0
    %1927 = vmatpush.msra.mxu0 %v690
    %1928 = vmatpush.msra.mxu0 %v682
    %1929 = vmatpush.msra.mxu0 %v674
    %1930 = vmatpush.msra.mxu0 %v666
    %1931 = vmatpush.msra.mxu0 %v658
    %1932 = vmatpush.msra.mxu0 %v650
    %1933 = vmatpush.msra.mxu0 %v642
    %1934 = vmatpush.msra.mxu0 %v634
    %1935 = vmatpush.msra.mxu0 %v626
    %1936 = vmatpush.msra.mxu0 %v618
    %1937 = vmatpush.msra.mxu0 %v610
    %1938 = vmatpush.msra.mxu0 %v602
    %1939 = vmatpush.msra.mxu0 %v594
    %1940 = vmatpush.msra.mxu0 %v586
    %1941 = vmatpush.msra.mxu0 %v578
    %1942 = vmatpush.msra.mxu0 %v570
    %1943 = vmatmul.f32.gmra.mxu0 %v1754
    %v1944 = vpop.f32.mrf.mxu0
    %v1945 = vadd.f32 0.0, %v1944
    %1946 = vdwg.mxu0
    %1947 = vmatpush.msra.mxu0 %v818
    %1948 = vmatpush.msra.mxu0 %v810
    %1949 = vmatpush.msra.mxu0 %v802
    %1950 = vmatpush.msra.mxu0 %v794
    %1951 = vmatpush.msra.mxu0 %v786
    %1952 = vmatpush.msra.mxu0 %v778
    %1953 = vmatpush.msra.mxu0 %v770
    %1954 = vmatpush.msra.mxu0 %v762
    %1955 = vmatpush.msra.mxu0 %v754
    %1956 = vmatpush.msra.mxu0 %v746
    %1957 = vmatpush.msra.mxu0 %v738
    %1958 = vmatpush.msra.mxu0 %v730
    %1959 = vmatpush.msra.mxu0 %v722
    %1960 = vmatpush.msra.mxu0 %v714
    %1961 = vmatpush.msra.mxu0 %v706
    %1962 = vmatpush.msra.mxu0 %v698
    %1963 = vmatmul.f32.gmra.mxu0 %v1755
    %v1964 = vpop.f32.mrf.mxu0
    %v1965 = vadd.f32 %v1945, %v1964
    %1966 = vdwg.mxu0
    %1967 = vmatpush.msra.mxu0 %v691
    %1968 = vmatpush.msra.mxu0 %v683
    %1969 = vmatpush.msra.mxu0 %v675
    %1970 = vmatpush.msra.mxu0 %v667
    %1971 = vmatpush.msra.mxu0 %v659
    %1972 = vmatpush.msra.mxu0 %v651
    %1973 = vmatpush.msra.mxu0 %v643
    %1974 = vmatpush.msra.mxu0 %v635
    %1975 = vmatpush.msra.mxu0 %v627
    %1976 = vmatpush.msra.mxu0 %v619
    %1977 = vmatpush.msra.mxu0 %v611
    %1978 = vmatpush.msra.mxu0 %v603
    %1979 = vmatpush.msra.mxu0 %v595
    %1980 = vmatpush.msra.mxu0 %v587
    %1981 = vmatpush.msra.mxu0 %v579
    %1982 = vmatpush.msra.mxu0 %v571
    %1983 = vmatmul.f32.gmra.mxu0 %v1754
    %v1984 = vpop.f32.mrf.mxu0
    %v1985 = vadd.f32 0.0, %v1984
    %1986 = vdwg.mxu0
    %1987 = vmatpush.msra.mxu0 %v819
    %1988 = vmatpush.msra.mxu0 %v811
    %1989 = vmatpush.msra.mxu0 %v803
    %1990 = vmatpush.msra.mxu0 %v795
    %1991 = vmatpush.msra.mxu0 %v787
    %1992 = vmatpush.msra.mxu0 %v779
    %1993 = vmatpush.msra.mxu0 %v771
    %1994 = vmatpush.msra.mxu0 %v763
    %1995 = vmatpush.msra.mxu0 %v755
    %1996 = vmatpush.msra.mxu0 %v747
    %1997 = vmatpush.msra.mxu0 %v739
    %1998 = vmatpush.msra.mxu0 %v731
    %1999 = vmatpush.msra.mxu0 %v723
    %2000 = vmatpush.msra.mxu0 %v715
    %2001 = vmatpush.msra.mxu0 %v707
    %2002 = vmatpush.msra.mxu0 %v699
    %2003 = vmatmul.f32.gmra.mxu0 %v1755
    %v2004 = vpop.f32.mrf.mxu0
    %v2005 = vadd.f32 %v1985, %v2004
    %2006 = vdwg.mxu0
    %2007 = vmatpush.msra.mxu0 %v692
    %2008 = vmatpush.msra.mxu0 %v684
    %2009 = vmatpush.msra.mxu0 %v676
    %2010 = vmatpush.msra.mxu0 %v668
    %2011 = vmatpush.msra.mxu0 %v660
    %2012 = vmatpush.msra.mxu0 %v652
    %2013 = vmatpush.msra.mxu0 %v644
    %2014 = vmatpush.msra.mxu0 %v636
    %2015 = vmatpush.msra.mxu0 %v628
    %2016 = vmatpush.msra.mxu0 %v620
    %2017 = vmatpush.msra.mxu0 %v612
    %2018 = vmatpush.msra.mxu0 %v604
    %2019 = vmatpush.msra.mxu0 %v596
    %2020 = vmatpush.msra.mxu0 %v588
    %2021 = vmatpush.msra.mxu0 %v580
    %2022 = vmatpush.msra.mxu0 %v572
    %2023 = vmatmul.f32.gmra.mxu0 %v1754
    %v2024 = vpop.f32.mrf.mxu0
    %v2025 = vadd.f32 0.0, %v2024
    %2026 = vdwg.mxu0
    %2027 = vmatpush.msra.mxu0 %v820
    %2028 = vmatpush.msra.mxu0 %v812
    %2029 = vmatpush.msra.mxu0 %v804
    %2030 = vmatpush.msra.mxu0 %v796
    %2031 = vmatpush.msra.mxu0 %v788
    %2032 = vmatpush.msra.mxu0 %v780
    %2033 = vmatpush.msra.mxu0 %v772
    %2034 = vmatpush.msra.mxu0 %v764
    %2035 = vmatpush.msra.mxu0 %v756
    %2036 = vmatpush.msra.mxu0 %v748
    %2037 = vmatpush.msra.mxu0 %v740
    %2038 = vmatpush.msra.mxu0 %v732
    %2039 = vmatpush.msra.mxu0 %v724
    %2040 = vmatpush.msra.mxu0 %v716
    %2041 = vmatpush.msra.mxu0 %v708
    %2042 = vmatpush.msra.mxu0 %v700
    %2043 = vmatmul.f32.gmra.mxu0 %v1755
    %v2044 = vpop.f32.mrf.mxu0
    %v2045 = vadd.f32 %v2025, %v2044
    %2046 = vdwg.mxu0
    %2047 = vmatpush.msra.mxu0 %v693
    %2048 = vmatpush.msra.mxu0 %v685
    %2049 = vmatpush.msra.mxu0 %v677
    %2050 = vmatpush.msra.mxu0 %v669
    %2051 = vmatpush.msra.mxu0 %v661
    %2052 = vmatpush.msra.mxu0 %v653
    %2053 = vmatpush.msra.mxu0 %v645
    %2054 = vmatpush.msra.mxu0 %v637
    %2055 = vmatpush.msra.mxu0 %v629
    %2056 = vmatpush.msra.mxu0 %v621
    %2057 = vmatpush.msra.mxu0 %v613
    %2058 = vmatpush.msra.mxu0 %v605
    %2059 = vmatpush.msra.mxu0 %v597
    %2060 = vmatpush.msra.mxu0 %v589
    %2061 = vmatpush.msra.mxu0 %v581
    %2062 = vmatpush.msra.mxu0 %v573
    %2063 = vmatmul.f32.gmra.mxu0 %v1754
    %v2064 = vpop.f32.mrf.mxu0
    %v2065 = vadd.f32 0.0, %v2064
    %2066 = vdwg.mxu0
    %2067 = vmatpush.msra.mxu0 %v821
    %2068 = vmatpush.msra.mxu0 %v813
    %2069 = vmatpush.msra.mxu0 %v805
    %2070 = vmatpush.msra.mxu0 %v797
    %2071 = vmatpush.msra.mxu0 %v789
    %2072 = vmatpush.msra.mxu0 %v781
    %2073 = vmatpush.msra.mxu0 %v773
    %2074 = vmatpush.msra.mxu0 %v765
    %2075 = vmatpush.msra.mxu0 %v757
    %2076 = vmatpush.msra.mxu0 %v749
    %2077 = vmatpush.msra.mxu0 %v741
    %2078 = vmatpush.msra.mxu0 %v733
    %2079 = vmatpush.msra.mxu0 %v725
    %2080 = vmatpush.msra.mxu0 %v717
    %2081 = vmatpush.msra.mxu0 %v709
    %2082 = vmatpush.msra.mxu0 %v701
    %2083 = vmatmul.f32.gmra.mxu0 %v1755
    %v2084 = vpop.f32.mrf.mxu0
    %v2085 = vadd.f32 %v2065, %v2084
    %2086 = vdwg.mxu0
    %v2087 = vadd.f32 %v1759, %v1805
    %v2088 = vadd.f32 %v1760, %v1845
    %v2089 = vadd.f32 %v1761, %v1885
    %v2090 = vadd.f32 %v1762, %v1925
    %v2091 = vadd.f32 %v1763, %v1965
    %v2092 = vadd.f32 %v1764, %v2005
    %v2093 = vadd.f32 %v1765, %v2045
    %v2094 = vadd.f32 %v1766, %v2085
    %v2095 = vxor.u32 %v2087, 2147483648
    %v2096 = vxor.u32 %v2088, 2147483648
    %v2097 = vmul.f32 %v2095, 1.442695
    %v2098 = vpow.pop %v2097
    %v2099 = vmul.f32 %v2096, 1.442695
    %v2100 = vpow.pop %v2099
    %v2101 = vadd.f32 %v2098, 1.0
    %v2102 = vadd.f32 %v2100, 1.0
    %v2103 = vrcp.pop %v2101
    %v2104 = vmul.f32 %v2101, %v2103
    %v2105 = vsub.f32 1.0, %v2104
    %v2106 = vmul.f32 %v2103, %v2105
    %v2107 = vadd.f32 %v2103, %v2106
    %vm2108 = vweird.f32 %v2101
    %vm2109 = vweird.f32 %v2103
    %vm2110 = vmor %vm2108, %vm2109
    %v2111 = vsel %vm2110, %v2103, %v2107
    %v2112 = vand.u32 2147483647, %v2101
    %vm2113 = vcmp.eq.f32.partialorder %v2112, 8.507059e+37
    %v2114 = vand.u32 %v2101, 2147483648
    %v2115 = vor.u32 1.1754944e-38, %v2114
    %v2116 = vsel %vm2113, %v2115, %v2111
    %v2117 = vmul.f32 1.0, %v2116
    %v2118 = vrcp.pop %v2102
    %v2119 = vmul.f32 %v2102, %v2118
    %v2120 = vsub.f32 1.0, %v2119
    %v2121 = vmul.f32 %v2118, %v2120
    %v2122 = vadd.f32 %v2118, %v2121
    %vm2123 = vweird.f32 %v2102
    %vm2124 = vweird.f32 %v2118
    %vm2125 = vmor %vm2123, %vm2124
    %v2126 = vsel %vm2125, %v2118, %v2122
    %v2127 = vand.u32 2147483647, %v2102
    %vm2128 = vcmp.eq.f32.partialorder %v2127, 8.507059e+37
    %v2129 = vand.u32 %v2102, 2147483648
    %v2130 = vor.u32 1.1754944e-38, %v2129
    %v2131 = vsel %vm2128, %v2130, %v2126
    %v2132 = vmul.f32 1.0, %v2131
    %v2133 = vxor.u32 %v2089, 2147483648
    %v2134 = vxor.u32 %v2090, 2147483648
    %v2135 = vmul.f32 %v2133, 1.442695
    %v2136 = vpow.pop %v2135
    %v2137 = vmul.f32 %v2134, 1.442695
    %v2138 = vpow.pop %v2137
    %v2139 = vadd.f32 %v2136, 1.0
    %v2140 = vadd.f32 %v2138, 1.0
    %v2141 = vrcp.pop %v2139
    %v2142 = vmul.f32 %v2139, %v2141
    %v2143 = vsub.f32 1.0, %v2142
    %v2144 = vmul.f32 %v2141, %v2143
    %v2145 = vadd.f32 %v2141, %v2144
    %vm2146 = vweird.f32 %v2139
    %vm2147 = vweird.f32 %v2141
    %vm2148 = vmor %vm2146, %vm2147
    %v2149 = vsel %vm2148, %v2141, %v2145
    %v2150 = vand.u32 2147483647, %v2139
    %vm2151 = vcmp.eq.f32.partialorder %v2150, 8.507059e+37
    %v2152 = vand.u32 %v2139, 2147483648
    %v2153 = vor.u32 1.1754944e-38, %v2152
    %v2154 = vsel %vm2151, %v2153, %v2149
    %v2155 = vmul.f32 1.0, %v2154
    %v2156 = vrcp.pop %v2140
    %v2157 = vmul.f32 %v2140, %v2156
    %v2158 = vsub.f32 1.0, %v2157
    %v2159 = vmul.f32 %v2156, %v2158
    %v2160 = vadd.f32 %v2156, %v2159
    %vm2161 = vweird.f32 %v2140
    %vm2162 = vweird.f32 %v2156
    %vm2163 = vmor %vm2161, %vm2162
    %v2164 = vsel %vm2163, %v2156, %v2160
    %v2165 = vand.u32 2147483647, %v2140
    %vm2166 = vcmp.eq.f32.partialorder %v2165, 8.507059e+37
    %v2167 = vand.u32 %v2140, 2147483648
    %v2168 = vor.u32 1.1754944e-38, %v2167
    %v2169 = vsel %vm2166, %v2168, %v2164
    %v2170 = vmul.f32 1.0, %v2169
    %v2171 = vtanh.pop %v2091
    %v2172 = vtanh.pop %v2092
    %v2173 = vxor.u32 %v2093, 2147483648
    %v2174 = vxor.u32 %v2094, 2147483648
    %v2175 = vmul.f32 %v2173, 1.442695
    %v2176 = vpow.pop %v2175
    %v2177 = vmul.f32 %v2174, 1.442695
    %v2178 = vpow.pop %v2177
    %v2179 = vadd.f32 %v2176, 1.0
    %v2180 = vadd.f32 %v2178, 1.0
    %v2181 = vrcp.pop %v2179
    %v2182 = vmul.f32 %v2179, %v2181
    %v2183 = vsub.f32 1.0, %v2182
    %v2184 = vmul.f32 %v2181, %v2183
    %v2185 = vadd.f32 %v2181, %v2184
    %vm2186 = vweird.f32 %v2179
    %vm2187 = vweird.f32 %v2181
    %vm2188 = vmor %vm2186, %vm2187
    %v2189 = vsel %vm2188, %v2181, %v2185
    %v2190 = vand.u32 2147483647, %v2179
    %vm2191 = vcmp.eq.f32.partialorder %v2190, 8.507059e+37
    %v2192 = vand.u32 %v2179, 2147483648
    %v2193 = vor.u32 1.1754944e-38, %v2192
    %v2194 = vsel %vm2191, %v2193, %v2189
    %v2195 = vmul.f32 1.0, %v2194
    %v2196 = vrcp.pop %v2180
    %v2197 = vmul.f32 %v2180, %v2196
    %v2198 = vsub.f32 1.0, %v2197
    %v2199 = vmul.f32 %v2196, %v2198
    %v2200 = vadd.f32 %v2196, %v2199
    %vm2201 = vweird.f32 %v2180
    %vm2202 = vweird.f32 %v2196
    %vm2203 = vmor %vm2201, %vm2202
    %v2204 = vsel %vm2203, %v2196, %v2200
    %v2205 = vand.u32 2147483647, %v2180
    %vm2206 = vcmp.eq.f32.partialorder %v2205, 8.507059e+37
    %v2207 = vand.u32 %v2180, 2147483648
    %v2208 = vor.u32 1.1754944e-38, %v2207
    %v2209 = vsel %vm2206, %v2208, %v2204
    %v2210 = vmul.f32 1.0, %v2209
    %v2211 = vmul.f32 %v2155, %v1750
    %v2212 = vmul.f32 %v2170, %v1751
    %v2213 = vmul.f32 %v2117, %v2171
    %v2214 = vmul.f32 %v2132, %v2172
    %v2215 = vadd.f32 %v2211, %v2213
    %v2216 = vadd.f32 %v2212, %v2214
    %v2217 = vtanh.pop %v2215
    %v2218 = vtanh.pop %v2216
    %v2219 = vmul.f32 %v2195, %v2217
    %v2220 = vmul.f32 %v2210, %v2218
    %s2221 = smul.u32 3, 8
    %s2222 = smul.addr %s2221, 8
    %s2223 = scalar_lea.vmem [#allocation2], %s2222
    %v2224 = vld [vmem:[%s2223] sm:$0xff]
    %v2225 = vld [vmem:[%s2223 + $0x8] sm:$0xff]
    %v2226 = vld [vmem:[%s2223 + $0x10] sm:$0xff]
    %v2227 = vld [vmem:[%s2223 + $0x18] sm:$0xff]
    %v2228 = vld [vmem:[%s2223 + $0x20] sm:$0xff]
    %v2229 = vld [vmem:[%s2223 + $0x28] sm:$0xff]
    %v2230 = vld [vmem:[%s2223 + $0x30] sm:$0xff]
    %v2231 = vld [vmem:[%s2223 + $0x38] sm:$0xff]
    %2232 = vmatpush.msra.mxu0 %v686
    %2233 = vmatpush.msra.mxu0 %v678
    %2234 = vmatpush.msra.mxu0 %v670
    %2235 = vmatpush.msra.mxu0 %v662
    %2236 = vmatpush.msra.mxu0 %v654
    %2237 = vmatpush.msra.mxu0 %v646
    %2238 = vmatpush.msra.mxu0 %v638
    %2239 = vmatpush.msra.mxu0 %v630
    %2240 = vmatpush.msra.mxu0 %v622
    %2241 = vmatpush.msra.mxu0 %v614
    %2242 = vmatpush.msra.mxu0 %v606
    %2243 = vmatpush.msra.mxu0 %v598
    %2244 = vmatpush.msra.mxu0 %v590
    %2245 = vmatpush.msra.mxu0 %v582
    %2246 = vmatpush.msra.mxu0 %v574
    %2247 = vmatpush.msra.mxu0 %v566
    %2248 = vmatmul.f32.gmra.mxu0 %v2219
    %v2249 = vpop.f32.mrf.mxu0
    %v2250 = vadd.f32 0.0, %v2249
    %2251 = vdwg.mxu0
    %2252 = vmatpush.msra.mxu0 %v814
    %2253 = vmatpush.msra.mxu0 %v806
    %2254 = vmatpush.msra.mxu0 %v798
    %2255 = vmatpush.msra.mxu0 %v790
    %2256 = vmatpush.msra.mxu0 %v782
    %2257 = vmatpush.msra.mxu0 %v774
    %2258 = vmatpush.msra.mxu0 %v766
    %2259 = vmatpush.msra.mxu0 %v758
    %2260 = vmatpush.msra.mxu0 %v750
    %2261 = vmatpush.msra.mxu0 %v742
    %2262 = vmatpush.msra.mxu0 %v734
    %2263 = vmatpush.msra.mxu0 %v726
    %2264 = vmatpush.msra.mxu0 %v718
    %2265 = vmatpush.msra.mxu0 %v710
    %2266 = vmatpush.msra.mxu0 %v702
    %2267 = vmatpush.msra.mxu0 %v694
    %2268 = vmatmul.f32.gmra.mxu0 %v2220
    %v2269 = vpop.f32.mrf.mxu0
    %v2270 = vadd.f32 %v2250, %v2269
    %2271 = vdwg.mxu0
    %2272 = vmatpush.msra.mxu0 %v687
    %2273 = vmatpush.msra.mxu0 %v679
    %2274 = vmatpush.msra.mxu0 %v671
    %2275 = vmatpush.msra.mxu0 %v663
    %2276 = vmatpush.msra.mxu0 %v655
    %2277 = vmatpush.msra.mxu0 %v647
    %2278 = vmatpush.msra.mxu0 %v639
    %2279 = vmatpush.msra.mxu0 %v631
    %2280 = vmatpush.msra.mxu0 %v623
    %2281 = vmatpush.msra.mxu0 %v615
    %2282 = vmatpush.msra.mxu0 %v607
    %2283 = vmatpush.msra.mxu0 %v599
    %2284 = vmatpush.msra.mxu0 %v591
    %2285 = vmatpush.msra.mxu0 %v583
    %2286 = vmatpush.msra.mxu0 %v575
    %2287 = vmatpush.msra.mxu0 %v567
    %2288 = vmatmul.f32.gmra.mxu0 %v2219
    %v2289 = vpop.f32.mrf.mxu0
    %v2290 = vadd.f32 0.0, %v2289
    %2291 = vdwg.mxu0
    %2292 = vmatpush.msra.mxu0 %v815
    %2293 = vmatpush.msra.mxu0 %v807
    %2294 = vmatpush.msra.mxu0 %v799
    %2295 = vmatpush.msra.mxu0 %v791
    %2296 = vmatpush.msra.mxu0 %v783
    %2297 = vmatpush.msra.mxu0 %v775
    %2298 = vmatpush.msra.mxu0 %v767
    %2299 = vmatpush.msra.mxu0 %v759
    %2300 = vmatpush.msra.mxu0 %v751
    %2301 = vmatpush.msra.mxu0 %v743
    %2302 = vmatpush.msra.mxu0 %v735
    %2303 = vmatpush.msra.mxu0 %v727
    %2304 = vmatpush.msra.mxu0 %v719
    %2305 = vmatpush.msra.mxu0 %v711
    %2306 = vmatpush.msra.mxu0 %v703
    %2307 = vmatpush.msra.mxu0 %v695
    %2308 = vmatmul.f32.gmra.mxu0 %v2220
    %v2309 = vpop.f32.mrf.mxu0
    %v2310 = vadd.f32 %v2290, %v2309
    %2311 = vdwg.mxu0
    %2312 = vmatpush.msra.mxu0 %v688
    %2313 = vmatpush.msra.mxu0 %v680
    %2314 = vmatpush.msra.mxu0 %v672
    %2315 = vmatpush.msra.mxu0 %v664
    %2316 = vmatpush.msra.mxu0 %v656
    %2317 = vmatpush.msra.mxu0 %v648
    %2318 = vmatpush.msra.mxu0 %v640
    %2319 = vmatpush.msra.mxu0 %v632
    %2320 = vmatpush.msra.mxu0 %v624
    %2321 = vmatpush.msra.mxu0 %v616
    %2322 = vmatpush.msra.mxu0 %v608
    %2323 = vmatpush.msra.mxu0 %v600
    %2324 = vmatpush.msra.mxu0 %v592
    %2325 = vmatpush.msra.mxu0 %v584
    %2326 = vmatpush.msra.mxu0 %v576
    %2327 = vmatpush.msra.mxu0 %v568
    %2328 = vmatmul.f32.gmra.mxu0 %v2219
    %v2329 = vpop.f32.mrf.mxu0
    %v2330 = vadd.f32 0.0, %v2329
    %2331 = vdwg.mxu0
    %2332 = vmatpush.msra.mxu0 %v816
    %2333 = vmatpush.msra.mxu0 %v808
    %2334 = vmatpush.msra.mxu0 %v800
    %2335 = vmatpush.msra.mxu0 %v792
    %2336 = vmatpush.msra.mxu0 %v784
    %2337 = vmatpush.msra.mxu0 %v776
    %2338 = vmatpush.msra.mxu0 %v768
    %2339 = vmatpush.msra.mxu0 %v760
    %2340 = vmatpush.msra.mxu0 %v752
    %2341 = vmatpush.msra.mxu0 %v744
    %2342 = vmatpush.msra.mxu0 %v736
    %2343 = vmatpush.msra.mxu0 %v728
    %2344 = vmatpush.msra.mxu0 %v720
    %2345 = vmatpush.msra.mxu0 %v712
    %2346 = vmatpush.msra.mxu0 %v704
    %2347 = vmatpush.msra.mxu0 %v696
    %2348 = vmatmul.f32.gmra.mxu0 %v2220
    %v2349 = vpop.f32.mrf.mxu0
    %v2350 = vadd.f32 %v2330, %v2349
    %2351 = vdwg.mxu0
    %2352 = vmatpush.msra.mxu0 %v689
    %2353 = vmatpush.msra.mxu0 %v681
    %2354 = vmatpush.msra.mxu0 %v673
    %2355 = vmatpush.msra.mxu0 %v665
    %2356 = vmatpush.msra.mxu0 %v657
    %2357 = vmatpush.msra.mxu0 %v649
    %2358 = vmatpush.msra.mxu0 %v641
    %2359 = vmatpush.msra.mxu0 %v633
    %2360 = vmatpush.msra.mxu0 %v625
    %2361 = vmatpush.msra.mxu0 %v617
    %2362 = vmatpush.msra.mxu0 %v609
    %2363 = vmatpush.msra.mxu0 %v601
    %2364 = vmatpush.msra.mxu0 %v593
    %2365 = vmatpush.msra.mxu0 %v585
    %2366 = vmatpush.msra.mxu0 %v577
    %2367 = vmatpush.msra.mxu0 %v569
    %2368 = vmatmul.f32.gmra.mxu0 %v2219
    %v2369 = vpop.f32.mrf.mxu0
    %v2370 = vadd.f32 0.0, %v2369
    %2371 = vdwg.mxu0
    %2372 = vmatpush.msra.mxu0 %v817
    %2373 = vmatpush.msra.mxu0 %v809
    %2374 = vmatpush.msra.mxu0 %v801
    %2375 = vmatpush.msra.mxu0 %v793
    %2376 = vmatpush.msra.mxu0 %v785
    %2377 = vmatpush.msra.mxu0 %v777
    %2378 = vmatpush.msra.mxu0 %v769
    %2379 = vmatpush.msra.mxu0 %v761
    %2380 = vmatpush.msra.mxu0 %v753
    %2381 = vmatpush.msra.mxu0 %v745
    %2382 = vmatpush.msra.mxu0 %v737
    %2383 = vmatpush.msra.mxu0 %v729
    %2384 = vmatpush.msra.mxu0 %v721
    %2385 = vmatpush.msra.mxu0 %v713
    %2386 = vmatpush.msra.mxu0 %v705
    %2387 = vmatpush.msra.mxu0 %v697
    %2388 = vmatmul.f32.gmra.mxu0 %v2220
    %v2389 = vpop.f32.mrf.mxu0
    %v2390 = vadd.f32 %v2370, %v2389
    %2391 = vdwg.mxu0
    %2392 = vmatpush.msra.mxu0 %v690
    %2393 = vmatpush.msra.mxu0 %v682
    %2394 = vmatpush.msra.mxu0 %v674
    %2395 = vmatpush.msra.mxu0 %v666
    %2396 = vmatpush.msra.mxu0 %v658
    %2397 = vmatpush.msra.mxu0 %v650
    %2398 = vmatpush.msra.mxu0 %v642
    %2399 = vmatpush.msra.mxu0 %v634
    %2400 = vmatpush.msra.mxu0 %v626
    %2401 = vmatpush.msra.mxu0 %v618
    %2402 = vmatpush.msra.mxu0 %v610
    %2403 = vmatpush.msra.mxu0 %v602
    %2404 = vmatpush.msra.mxu0 %v594
    %2405 = vmatpush.msra.mxu0 %v586
    %2406 = vmatpush.msra.mxu0 %v578
    %2407 = vmatpush.msra.mxu0 %v570
    %2408 = vmatmul.f32.gmra.mxu0 %v2219
    %v2409 = vpop.f32.mrf.mxu0
    %v2410 = vadd.f32 0.0, %v2409
    %2411 = vdwg.mxu0
    %2412 = vmatpush.msra.mxu0 %v818
    %2413 = vmatpush.msra.mxu0 %v810
    %2414 = vmatpush.msra.mxu0 %v802
    %2415 = vmatpush.msra.mxu0 %v794
    %2416 = vmatpush.msra.mxu0 %v786
    %2417 = vmatpush.msra.mxu0 %v778
    %2418 = vmatpush.msra.mxu0 %v770
    %2419 = vmatpush.msra.mxu0 %v762
    %2420 = vmatpush.msra.mxu0 %v754
    %2421 = vmatpush.msra.mxu0 %v746
    %2422 = vmatpush.msra.mxu0 %v738
    %2423 = vmatpush.msra.mxu0 %v730
    %2424 = vmatpush.msra.mxu0 %v722
    %2425 = vmatpush.msra.mxu0 %v714
    %2426 = vmatpush.msra.mxu0 %v706
    %2427 = vmatpush.msra.mxu0 %v698
    %2428 = vmatmul.f32.gmra.mxu0 %v2220
    %v2429 = vpop.f32.mrf.mxu0
    %v2430 = vadd.f32 %v2410, %v2429
    %2431 = vdwg.mxu0
    %2432 = vmatpush.msra.mxu0 %v691
    %2433 = vmatpush.msra.mxu0 %v683
    %2434 = vmatpush.msra.mxu0 %v675
    %2435 = vmatpush.msra.mxu0 %v667
    %2436 = vmatpush.msra.mxu0 %v659
    %2437 = vmatpush.msra.mxu0 %v651
    %2438 = vmatpush.msra.mxu0 %v643
    %2439 = vmatpush.msra.mxu0 %v635
    %2440 = vmatpush.msra.mxu0 %v627
    %2441 = vmatpush.msra.mxu0 %v619
    %2442 = vmatpush.msra.mxu0 %v611
    %2443 = vmatpush.msra.mxu0 %v603
    %2444 = vmatpush.msra.mxu0 %v595
    %2445 = vmatpush.msra.mxu0 %v587
    %2446 = vmatpush.msra.mxu0 %v579
    %2447 = vmatpush.msra.mxu0 %v571
    %2448 = vmatmul.f32.gmra.mxu0 %v2219
    %v2449 = vpop.f32.mrf.mxu0
    %v2450 = vadd.f32 0.0, %v2449
    %2451 = vdwg.mxu0
    %2452 = vmatpush.msra.mxu0 %v819
    %2453 = vmatpush.msra.mxu0 %v811
    %2454 = vmatpush.msra.mxu0 %v803
    %2455 = vmatpush.msra.mxu0 %v795
    %2456 = vmatpush.msra.mxu0 %v787
    %2457 = vmatpush.msra.mxu0 %v779
    %2458 = vmatpush.msra.mxu0 %v771
    %2459 = vmatpush.msra.mxu0 %v763
    %2460 = vmatpush.msra.mxu0 %v755
    %2461 = vmatpush.msra.mxu0 %v747
    %2462 = vmatpush.msra.mxu0 %v739
    %2463 = vmatpush.msra.mxu0 %v731
    %2464 = vmatpush.msra.mxu0 %v723
    %2465 = vmatpush.msra.mxu0 %v715
    %2466 = vmatpush.msra.mxu0 %v707
    %2467 = vmatpush.msra.mxu0 %v699
    %2468 = vmatmul.f32.gmra.mxu0 %v2220
    %v2469 = vpop.f32.mrf.mxu0
    %v2470 = vadd.f32 %v2450, %v2469
    %2471 = vdwg.mxu0
    %2472 = vmatpush.msra.mxu0 %v692
    %2473 = vmatpush.msra.mxu0 %v684
    %2474 = vmatpush.msra.mxu0 %v676
    %2475 = vmatpush.msra.mxu0 %v668
    %2476 = vmatpush.msra.mxu0 %v660
    %2477 = vmatpush.msra.mxu0 %v652
    %2478 = vmatpush.msra.mxu0 %v644
    %2479 = vmatpush.msra.mxu0 %v636
    %2480 = vmatpush.msra.mxu0 %v628
    %2481 = vmatpush.msra.mxu0 %v620
    %2482 = vmatpush.msra.mxu0 %v612
    %2483 = vmatpush.msra.mxu0 %v604
    %2484 = vmatpush.msra.mxu0 %v596
    %2485 = vmatpush.msra.mxu0 %v588
    %2486 = vmatpush.msra.mxu0 %v580
    %2487 = vmatpush.msra.mxu0 %v572
    %2488 = vmatmul.f32.gmra.mxu0 %v2219
    %v2489 = vpop.f32.mrf.mxu0
    %v2490 = vadd.f32 0.0, %v2489
    %2491 = vdwg.mxu0
    %2492 = vmatpush.msra.mxu0 %v820
    %2493 = vmatpush.msra.mxu0 %v812
    %2494 = vmatpush.msra.mxu0 %v804
    %2495 = vmatpush.msra.mxu0 %v796
    %2496 = vmatpush.msra.mxu0 %v788
    %2497 = vmatpush.msra.mxu0 %v780
    %2498 = vmatpush.msra.mxu0 %v772
    %2499 = vmatpush.msra.mxu0 %v764
    %2500 = vmatpush.msra.mxu0 %v756
    %2501 = vmatpush.msra.mxu0 %v748
    %2502 = vmatpush.msra.mxu0 %v740
    %2503 = vmatpush.msra.mxu0 %v732
    %2504 = vmatpush.msra.mxu0 %v724
    %2505 = vmatpush.msra.mxu0 %v716
    %2506 = vmatpush.msra.mxu0 %v708
    %2507 = vmatpush.msra.mxu0 %v700
    %2508 = vmatmul.f32.gmra.mxu0 %v2220
    %v2509 = vpop.f32.mrf.mxu0
    %v2510 = vadd.f32 %v2490, %v2509
    %2511 = vdwg.mxu0
    %2512 = vmatpush.msra.mxu0 %v693
    %2513 = vmatpush.msra.mxu0 %v685
    %2514 = vmatpush.msra.mxu0 %v677
    %2515 = vmatpush.msra.mxu0 %v669
    %2516 = vmatpush.msra.mxu0 %v661
    %2517 = vmatpush.msra.mxu0 %v653
    %2518 = vmatpush.msra.mxu0 %v645
    %2519 = vmatpush.msra.mxu0 %v637
    %2520 = vmatpush.msra.mxu0 %v629
    %2521 = vmatpush.msra.mxu0 %v621
    %2522 = vmatpush.msra.mxu0 %v613
    %2523 = vmatpush.msra.mxu0 %v605
    %2524 = vmatpush.msra.mxu0 %v597
    %2525 = vmatpush.msra.mxu0 %v589
    %2526 = vmatpush.msra.mxu0 %v581
    %2527 = vmatpush.msra.mxu0 %v573
    %2528 = vmatmul.f32.gmra.mxu0 %v2219
    %v2529 = vpop.f32.mrf.mxu0
    %v2530 = vadd.f32 0.0, %v2529
    %2531 = vdwg.mxu0
    %2532 = vmatpush.msra.mxu0 %v821
    %2533 = vmatpush.msra.mxu0 %v813
    %2534 = vmatpush.msra.mxu0 %v805
    %2535 = vmatpush.msra.mxu0 %v797
    %2536 = vmatpush.msra.mxu0 %v789
    %2537 = vmatpush.msra.mxu0 %v781
    %2538 = vmatpush.msra.mxu0 %v773
    %2539 = vmatpush.msra.mxu0 %v765
    %2540 = vmatpush.msra.mxu0 %v757
    %2541 = vmatpush.msra.mxu0 %v749
    %2542 = vmatpush.msra.mxu0 %v741
    %2543 = vmatpush.msra.mxu0 %v733
    %2544 = vmatpush.msra.mxu0 %v725
    %2545 = vmatpush.msra.mxu0 %v717
    %2546 = vmatpush.msra.mxu0 %v709
    %2547 = vmatpush.msra.mxu0 %v701
    %2548 = vmatmul.f32.gmra.mxu0 %v2220
    %v2549 = vpop.f32.mrf.mxu0
    %v2550 = vadd.f32 %v2530, %v2549
    %2551 = vdwg.mxu0
    %v2552 = vadd.f32 %v2224, %v2270
    %v2553 = vadd.f32 %v2225, %v2310
    %v2554 = vadd.f32 %v2226, %v2350
    %v2555 = vadd.f32 %v2227, %v2390
    %v2556 = vadd.f32 %v2228, %v2430
    %v2557 = vadd.f32 %v2229, %v2470
    %v2558 = vadd.f32 %v2230, %v2510
    %v2559 = vadd.f32 %v2231, %v2550
    %v2560 = vxor.u32 %v2552, 2147483648
    %v2561 = vxor.u32 %v2553, 2147483648
    %v2562 = vmul.f32 %v2560, 1.442695
    %v2563 = vpow.pop %v2562
    %v2564 = vmul.f32 %v2561, 1.442695
    %v2565 = vpow.pop %v2564
    %v2566 = vadd.f32 %v2563, 1.0
    %v2567 = vadd.f32 %v2565, 1.0
    %v2568 = vrcp.pop %v2566
    %v2569 = vmul.f32 %v2566, %v2568
    %v2570 = vsub.f32 1.0, %v2569
    %v2571 = vmul.f32 %v2568, %v2570
    %v2572 = vadd.f32 %v2568, %v2571
    %vm2573 = vweird.f32 %v2566
    %vm2574 = vweird.f32 %v2568
    %vm2575 = vmor %vm2573, %vm2574
    %v2576 = vsel %vm2575, %v2568, %v2572
    %v2577 = vand.u32 2147483647, %v2566
    %vm2578 = vcmp.eq.f32.partialorder %v2577, 8.507059e+37
    %v2579 = vand.u32 %v2566, 2147483648
    %v2580 = vor.u32 1.1754944e-38, %v2579
    %v2581 = vsel %vm2578, %v2580, %v2576
    %v2582 = vmul.f32 1.0, %v2581
    %v2583 = vrcp.pop %v2567
    %v2584 = vmul.f32 %v2567, %v2583
    %v2585 = vsub.f32 1.0, %v2584
    %v2586 = vmul.f32 %v2583, %v2585
    %v2587 = vadd.f32 %v2583, %v2586
    %vm2588 = vweird.f32 %v2567
    %vm2589 = vweird.f32 %v2583
    %vm2590 = vmor %vm2588, %vm2589
    %v2591 = vsel %vm2590, %v2583, %v2587
    %v2592 = vand.u32 2147483647, %v2567
    %vm2593 = vcmp.eq.f32.partialorder %v2592, 8.507059e+37
    %v2594 = vand.u32 %v2567, 2147483648
    %v2595 = vor.u32 1.1754944e-38, %v2594
    %v2596 = vsel %vm2593, %v2595, %v2591
    %v2597 = vmul.f32 1.0, %v2596
    %v2598 = vxor.u32 %v2554, 2147483648
    %v2599 = vxor.u32 %v2555, 2147483648
    %v2600 = vmul.f32 %v2598, 1.442695
    %v2601 = vpow.pop %v2600
    %v2602 = vmul.f32 %v2599, 1.442695
    %v2603 = vpow.pop %v2602
    %v2604 = vadd.f32 %v2601, 1.0
    %v2605 = vadd.f32 %v2603, 1.0
    %v2606 = vrcp.pop %v2604
    %v2607 = vmul.f32 %v2604, %v2606
    %v2608 = vsub.f32 1.0, %v2607
    %v2609 = vmul.f32 %v2606, %v2608
    %v2610 = vadd.f32 %v2606, %v2609
    %vm2611 = vweird.f32 %v2604
    %vm2612 = vweird.f32 %v2606
    %vm2613 = vmor %vm2611, %vm2612
    %v2614 = vsel %vm2613, %v2606, %v2610
    %v2615 = vand.u32 2147483647, %v2604
    %vm2616 = vcmp.eq.f32.partialorder %v2615, 8.507059e+37
    %v2617 = vand.u32 %v2604, 2147483648
    %v2618 = vor.u32 1.1754944e-38, %v2617
    %v2619 = vsel %vm2616, %v2618, %v2614
    %v2620 = vmul.f32 1.0, %v2619
    %v2621 = vrcp.pop %v2605
    %v2622 = vmul.f32 %v2605, %v2621
    %v2623 = vsub.f32 1.0, %v2622
    %v2624 = vmul.f32 %v2621, %v2623
    %v2625 = vadd.f32 %v2621, %v2624
    %vm2626 = vweird.f32 %v2605
    %vm2627 = vweird.f32 %v2621
    %vm2628 = vmor %vm2626, %vm2627
    %v2629 = vsel %vm2628, %v2621, %v2625
    %v2630 = vand.u32 2147483647, %v2605
    %vm2631 = vcmp.eq.f32.partialorder %v2630, 8.507059e+37
    %v2632 = vand.u32 %v2605, 2147483648
    %v2633 = vor.u32 1.1754944e-38, %v2632
    %v2634 = vsel %vm2631, %v2633, %v2629
    %v2635 = vmul.f32 1.0, %v2634
    %v2636 = vtanh.pop %v2556
    %v2637 = vtanh.pop %v2557
    %v2638 = vxor.u32 %v2558, 2147483648
    %v2639 = vxor.u32 %v2559, 2147483648
    %v2640 = vmul.f32 %v2638, 1.442695
    %v2641 = vpow.pop %v2640
    %v2642 = vmul.f32 %v2639, 1.442695
    %v2643 = vpow.pop %v2642
    %v2644 = vadd.f32 %v2641, 1.0
    %v2645 = vadd.f32 %v2643, 1.0
    %v2646 = vrcp.pop %v2644
    %v2647 = vmul.f32 %v2644, %v2646
    %v2648 = vsub.f32 1.0, %v2647
    %v2649 = vmul.f32 %v2646, %v2648
    %v2650 = vadd.f32 %v2646, %v2649
    %vm2651 = vweird.f32 %v2644
    %vm2652 = vweird.f32 %v2646
    %vm2653 = vmor %vm2651, %vm2652
    %v2654 = vsel %vm2653, %v2646, %v2650
    %v2655 = vand.u32 2147483647, %v2644
    %vm2656 = vcmp.eq.f32.partialorder %v2655, 8.507059e+37
    %v2657 = vand.u32 %v2644, 2147483648
    %v2658 = vor.u32 1.1754944e-38, %v2657
    %v2659 = vsel %vm2656, %v2658, %v2654
    %v2660 = vmul.f32 1.0, %v2659
    %v2661 = vrcp.pop %v2645
    %v2662 = vmul.f32 %v2645, %v2661
    %v2663 = vsub.f32 1.0, %v2662
    %v2664 = vmul.f32 %v2661, %v2663
    %v2665 = vadd.f32 %v2661, %v2664
    %vm2666 = vweird.f32 %v2645
    %vm2667 = vweird.f32 %v2661
    %vm2668 = vmor %vm2666, %vm2667
    %v2669 = vsel %vm2668, %v2661, %v2665
    %v2670 = vand.u32 2147483647, %v2645
    %vm2671 = vcmp.eq.f32.partialorder %v2670, 8.507059e+37
    %v2672 = vand.u32 %v2645, 2147483648
    %v2673 = vor.u32 1.1754944e-38, %v2672
    %v2674 = vsel %vm2671, %v2673, %v2669
    %v2675 = vmul.f32 1.0, %v2674
    %v2676 = vmul.f32 %v2620, %v2215
    %v2677 = vmul.f32 %v2635, %v2216
    %v2678 = vmul.f32 %v2582, %v2636
    %v2679 = vmul.f32 %v2597, %v2637
    %v2680 = vadd.f32 %v2676, %v2678
    %v2681 = vadd.f32 %v2677, %v2679
    %v2682 = vtanh.pop %v2680
    %v2683 = vtanh.pop %v2681
    %v2684 = vmul.f32 %v2660, %v2682
    %v2685 = vmul.f32 %v2675, %v2683
    %s2686 = smul.u32 4, 8
    %s2687 = smul.addr %s2686, 8
    %s2688 = scalar_lea.vmem [#allocation2], %s2687
    %v2689 = vld [vmem:[%s2688] sm:$0xff]
    %v2690 = vld [vmem:[%s2688 + $0x8] sm:$0xff]
    %v2691 = vld [vmem:[%s2688 + $0x10] sm:$0xff]
    %v2692 = vld [vmem:[%s2688 + $0x18] sm:$0xff]
    %v2693 = vld [vmem:[%s2688 + $0x20] sm:$0xff]
    %v2694 = vld [vmem:[%s2688 + $0x28] sm:$0xff]
    %v2695 = vld [vmem:[%s2688 + $0x30] sm:$0xff]
    %v2696 = vld [vmem:[%s2688 + $0x38] sm:$0xff]
    %2697 = vmatpush.msra.mxu0 %v686
    %2698 = vmatpush.msra.mxu0 %v678
    %2699 = vmatpush.msra.mxu0 %v670
    %2700 = vmatpush.msra.mxu0 %v662
    %2701 = vmatpush.msra.mxu0 %v654
    %2702 = vmatpush.msra.mxu0 %v646
    %2703 = vmatpush.msra.mxu0 %v638
    %2704 = vmatpush.msra.mxu0 %v630
    %2705 = vmatpush.msra.mxu0 %v622
    %2706 = vmatpush.msra.mxu0 %v614
    %2707 = vmatpush.msra.mxu0 %v606
    %2708 = vmatpush.msra.mxu0 %v598
    %2709 = vmatpush.msra.mxu0 %v590
    %2710 = vmatpush.msra.mxu0 %v582
    %2711 = vmatpush.msra.mxu0 %v574
    %2712 = vmatpush.msra.mxu0 %v566
    %2713 = vmatmul.f32.gmra.mxu0 %v2684
    %v2714 = vpop.f32.mrf.mxu0
    %v2715 = vadd.f32 0.0, %v2714
    %2716 = vdwg.mxu0
    %2717 = vmatpush.msra.mxu0 %v814
    %2718 = vmatpush.msra.mxu0 %v806
    %2719 = vmatpush.msra.mxu0 %v798
    %2720 = vmatpush.msra.mxu0 %v790
    %2721 = vmatpush.msra.mxu0 %v782
    %2722 = vmatpush.msra.mxu0 %v774
    %2723 = vmatpush.msra.mxu0 %v766
    %2724 = vmatpush.msra.mxu0 %v758
    %2725 = vmatpush.msra.mxu0 %v750
    %2726 = vmatpush.msra.mxu0 %v742
    %2727 = vmatpush.msra.mxu0 %v734
    %2728 = vmatpush.msra.mxu0 %v726
    %2729 = vmatpush.msra.mxu0 %v718
    %2730 = vmatpush.msra.mxu0 %v710
    %2731 = vmatpush.msra.mxu0 %v702
    %2732 = vmatpush.msra.mxu0 %v694
    %2733 = vmatmul.f32.gmra.mxu0 %v2685
    %v2734 = vpop.f32.mrf.mxu0
    %v2735 = vadd.f32 %v2715, %v2734
    %2736 = vdwg.mxu0
    %2737 = vmatpush.msra.mxu0 %v687
    %2738 = vmatpush.msra.mxu0 %v679
    %2739 = vmatpush.msra.mxu0 %v671
    %2740 = vmatpush.msra.mxu0 %v663
    %2741 = vmatpush.msra.mxu0 %v655
    %2742 = vmatpush.msra.mxu0 %v647
    %2743 = vmatpush.msra.mxu0 %v639
    %2744 = vmatpush.msra.mxu0 %v631
    %2745 = vmatpush.msra.mxu0 %v623
    %2746 = vmatpush.msra.mxu0 %v615
    %2747 = vmatpush.msra.mxu0 %v607
    %2748 = vmatpush.msra.mxu0 %v599
    %2749 = vmatpush.msra.mxu0 %v591
    %2750 = vmatpush.msra.mxu0 %v583
    %2751 = vmatpush.msra.mxu0 %v575
    %2752 = vmatpush.msra.mxu0 %v567
    %2753 = vmatmul.f32.gmra.mxu0 %v2684
    %v2754 = vpop.f32.mrf.mxu0
    %v2755 = vadd.f32 0.0, %v2754
    %2756 = vdwg.mxu0
    %2757 = vmatpush.msra.mxu0 %v815
    %2758 = vmatpush.msra.mxu0 %v807
    %2759 = vmatpush.msra.mxu0 %v799
    %2760 = vmatpush.msra.mxu0 %v791
    %2761 = vmatpush.msra.mxu0 %v783
    %2762 = vmatpush.msra.mxu0 %v775
    %2763 = vmatpush.msra.mxu0 %v767
    %2764 = vmatpush.msra.mxu0 %v759
    %2765 = vmatpush.msra.mxu0 %v751
    %2766 = vmatpush.msra.mxu0 %v743
    %2767 = vmatpush.msra.mxu0 %v735
    %2768 = vmatpush.msra.mxu0 %v727
    %2769 = vmatpush.msra.mxu0 %v719
    %2770 = vmatpush.msra.mxu0 %v711
    %2771 = vmatpush.msra.mxu0 %v703
    %2772 = vmatpush.msra.mxu0 %v695
    %2773 = vmatmul.f32.gmra.mxu0 %v2685
    %v2774 = vpop.f32.mrf.mxu0
    %v2775 = vadd.f32 %v2755, %v2774
    %2776 = vdwg.mxu0
    %2777 = vmatpush.msra.mxu0 %v688
    %2778 = vmatpush.msra.mxu0 %v680
    %2779 = vmatpush.msra.mxu0 %v672
    %2780 = vmatpush.msra.mxu0 %v664
    %2781 = vmatpush.msra.mxu0 %v656
    %2782 = vmatpush.msra.mxu0 %v648
    %2783 = vmatpush.msra.mxu0 %v640
    %2784 = vmatpush.msra.mxu0 %v632
    %2785 = vmatpush.msra.mxu0 %v624
    %2786 = vmatpush.msra.mxu0 %v616
    %2787 = vmatpush.msra.mxu0 %v608
    %2788 = vmatpush.msra.mxu0 %v600
    %2789 = vmatpush.msra.mxu0 %v592
    %2790 = vmatpush.msra.mxu0 %v584
    %2791 = vmatpush.msra.mxu0 %v576
    %2792 = vmatpush.msra.mxu0 %v568
    %2793 = vmatmul.f32.gmra.mxu0 %v2684
    %v2794 = vpop.f32.mrf.mxu0
    %v2795 = vadd.f32 0.0, %v2794
    %2796 = vdwg.mxu0
    %2797 = vmatpush.msra.mxu0 %v816
    %2798 = vmatpush.msra.mxu0 %v808
    %2799 = vmatpush.msra.mxu0 %v800
    %2800 = vmatpush.msra.mxu0 %v792
    %2801 = vmatpush.msra.mxu0 %v784
    %2802 = vmatpush.msra.mxu0 %v776
    %2803 = vmatpush.msra.mxu0 %v768
    %2804 = vmatpush.msra.mxu0 %v760
    %2805 = vmatpush.msra.mxu0 %v752
    %2806 = vmatpush.msra.mxu0 %v744
    %2807 = vmatpush.msra.mxu0 %v736
    %2808 = vmatpush.msra.mxu0 %v728
    %2809 = vmatpush.msra.mxu0 %v720
    %2810 = vmatpush.msra.mxu0 %v712
    %2811 = vmatpush.msra.mxu0 %v704
    %2812 = vmatpush.msra.mxu0 %v696
    %2813 = vmatmul.f32.gmra.mxu0 %v2685
    %v2814 = vpop.f32.mrf.mxu0
    %v2815 = vadd.f32 %v2795, %v2814
    %2816 = vdwg.mxu0
    %2817 = vmatpush.msra.mxu0 %v689
    %2818 = vmatpush.msra.mxu0 %v681
    %2819 = vmatpush.msra.mxu0 %v673
    %2820 = vmatpush.msra.mxu0 %v665
    %2821 = vmatpush.msra.mxu0 %v657
    %2822 = vmatpush.msra.mxu0 %v649
    %2823 = vmatpush.msra.mxu0 %v641
    %2824 = vmatpush.msra.mxu0 %v633
    %2825 = vmatpush.msra.mxu0 %v625
    %2826 = vmatpush.msra.mxu0 %v617
    %2827 = vmatpush.msra.mxu0 %v609
    %2828 = vmatpush.msra.mxu0 %v601
    %2829 = vmatpush.msra.mxu0 %v593
    %2830 = vmatpush.msra.mxu0 %v585
    %2831 = vmatpush.msra.mxu0 %v577
    %2832 = vmatpush.msra.mxu0 %v569
    %2833 = vmatmul.f32.gmra.mxu0 %v2684
    %v2834 = vpop.f32.mrf.mxu0
    %v2835 = vadd.f32 0.0, %v2834
    %2836 = vdwg.mxu0
    %2837 = vmatpush.msra.mxu0 %v817
    %2838 = vmatpush.msra.mxu0 %v809
    %2839 = vmatpush.msra.mxu0 %v801
    %2840 = vmatpush.msra.mxu0 %v793
    %2841 = vmatpush.msra.mxu0 %v785
    %2842 = vmatpush.msra.mxu0 %v777
    %2843 = vmatpush.msra.mxu0 %v769
    %2844 = vmatpush.msra.mxu0 %v761
    %2845 = vmatpush.msra.mxu0 %v753
    %2846 = vmatpush.msra.mxu0 %v745
    %2847 = vmatpush.msra.mxu0 %v737
    %2848 = vmatpush.msra.mxu0 %v729
    %2849 = vmatpush.msra.mxu0 %v721
    %2850 = vmatpush.msra.mxu0 %v713
    %2851 = vmatpush.msra.mxu0 %v705
    %2852 = vmatpush.msra.mxu0 %v697
    %2853 = vmatmul.f32.gmra.mxu0 %v2685
    %v2854 = vpop.f32.mrf.mxu0
    %v2855 = vadd.f32 %v2835, %v2854
    %2856 = vdwg.mxu0
    %2857 = vmatpush.msra.mxu0 %v690
    %2858 = vmatpush.msra.mxu0 %v682
    %2859 = vmatpush.msra.mxu0 %v674
    %2860 = vmatpush.msra.mxu0 %v666
    %2861 = vmatpush.msra.mxu0 %v658
    %2862 = vmatpush.msra.mxu0 %v650
    %2863 = vmatpush.msra.mxu0 %v642
    %2864 = vmatpush.msra.mxu0 %v634
    %2865 = vmatpush.msra.mxu0 %v626
    %2866 = vmatpush.msra.mxu0 %v618
    %2867 = vmatpush.msra.mxu0 %v610
    %2868 = vmatpush.msra.mxu0 %v602
    %2869 = vmatpush.msra.mxu0 %v594
    %2870 = vmatpush.msra.mxu0 %v586
    %2871 = vmatpush.msra.mxu0 %v578
    %2872 = vmatpush.msra.mxu0 %v570
    %2873 = vmatmul.f32.gmra.mxu0 %v2684
    %v2874 = vpop.f32.mrf.mxu0
    %v2875 = vadd.f32 0.0, %v2874
    %2876 = vdwg.mxu0
    %2877 = vmatpush.msra.mxu0 %v818
    %2878 = vmatpush.msra.mxu0 %v810
    %2879 = vmatpush.msra.mxu0 %v802
    %2880 = vmatpush.msra.mxu0 %v794
    %2881 = vmatpush.msra.mxu0 %v786
    %2882 = vmatpush.msra.mxu0 %v778
    %2883 = vmatpush.msra.mxu0 %v770
    %2884 = vmatpush.msra.mxu0 %v762
    %2885 = vmatpush.msra.mxu0 %v754
    %2886 = vmatpush.msra.mxu0 %v746
    %2887 = vmatpush.msra.mxu0 %v738
    %2888 = vmatpush.msra.mxu0 %v730
    %2889 = vmatpush.msra.mxu0 %v722
    %2890 = vmatpush.msra.mxu0 %v714
    %2891 = vmatpush.msra.mxu0 %v706
    %2892 = vmatpush.msra.mxu0 %v698
    %2893 = vmatmul.f32.gmra.mxu0 %v2685
    %v2894 = vpop.f32.mrf.mxu0
    %v2895 = vadd.f32 %v2875, %v2894
    %2896 = vdwg.mxu0
    %2897 = vmatpush.msra.mxu0 %v691
    %2898 = vmatpush.msra.mxu0 %v683
    %2899 = vmatpush.msra.mxu0 %v675
    %2900 = vmatpush.msra.mxu0 %v667
    %2901 = vmatpush.msra.mxu0 %v659
    %2902 = vmatpush.msra.mxu0 %v651
    %2903 = vmatpush.msra.mxu0 %v643
    %2904 = vmatpush.msra.mxu0 %v635
    %2905 = vmatpush.msra.mxu0 %v627
    %2906 = vmatpush.msra.mxu0 %v619
    %2907 = vmatpush.msra.mxu0 %v611
    %2908 = vmatpush.msra.mxu0 %v603
    %2909 = vmatpush.msra.mxu0 %v595
    %2910 = vmatpush.msra.mxu0 %v587
    %2911 = vmatpush.msra.mxu0 %v579
    %2912 = vmatpush.msra.mxu0 %v571
    %2913 = vmatmul.f32.gmra.mxu0 %v2684
    %v2914 = vpop.f32.mrf.mxu0
    %v2915 = vadd.f32 0.0, %v2914
    %2916 = vdwg.mxu0
    %2917 = vmatpush.msra.mxu0 %v819
    %2918 = vmatpush.msra.mxu0 %v811
    %2919 = vmatpush.msra.mxu0 %v803
    %2920 = vmatpush.msra.mxu0 %v795
    %2921 = vmatpush.msra.mxu0 %v787
    %2922 = vmatpush.msra.mxu0 %v779
    %2923 = vmatpush.msra.mxu0 %v771
    %2924 = vmatpush.msra.mxu0 %v763
    %2925 = vmatpush.msra.mxu0 %v755
    %2926 = vmatpush.msra.mxu0 %v747
    %2927 = vmatpush.msra.mxu0 %v739
    %2928 = vmatpush.msra.mxu0 %v731
    %2929 = vmatpush.msra.mxu0 %v723
    %2930 = vmatpush.msra.mxu0 %v715
    %2931 = vmatpush.msra.mxu0 %v707
    %2932 = vmatpush.msra.mxu0 %v699
    %2933 = vmatmul.f32.gmra.mxu0 %v2685
    %v2934 = vpop.f32.mrf.mxu0
    %v2935 = vadd.f32 %v2915, %v2934
    %2936 = vdwg.mxu0
    %2937 = vmatpush.msra.mxu0 %v692
    %2938 = vmatpush.msra.mxu0 %v684
    %2939 = vmatpush.msra.mxu0 %v676
    %2940 = vmatpush.msra.mxu0 %v668
    %2941 = vmatpush.msra.mxu0 %v660
    %2942 = vmatpush.msra.mxu0 %v652
    %2943 = vmatpush.msra.mxu0 %v644
    %2944 = vmatpush.msra.mxu0 %v636
    %2945 = vmatpush.msra.mxu0 %v628
    %2946 = vmatpush.msra.mxu0 %v620
    %2947 = vmatpush.msra.mxu0 %v612
    %2948 = vmatpush.msra.mxu0 %v604
    %2949 = vmatpush.msra.mxu0 %v596
    %2950 = vmatpush.msra.mxu0 %v588
    %2951 = vmatpush.msra.mxu0 %v580
    %2952 = vmatpush.msra.mxu0 %v572
    %2953 = vmatmul.f32.gmra.mxu0 %v2684
    %v2954 = vpop.f32.mrf.mxu0
    %v2955 = vadd.f32 0.0, %v2954
    %2956 = vdwg.mxu0
    %2957 = vmatpush.msra.mxu0 %v820
    %2958 = vmatpush.msra.mxu0 %v812
    %2959 = vmatpush.msra.mxu0 %v804
    %2960 = vmatpush.msra.mxu0 %v796
    %2961 = vmatpush.msra.mxu0 %v788
    %2962 = vmatpush.msra.mxu0 %v780
    %2963 = vmatpush.msra.mxu0 %v772
    %2964 = vmatpush.msra.mxu0 %v764
    %2965 = vmatpush.msra.mxu0 %v756
    %2966 = vmatpush.msra.mxu0 %v748
    %2967 = vmatpush.msra.mxu0 %v740
    %2968 = vmatpush.msra.mxu0 %v732
    %2969 = vmatpush.msra.mxu0 %v724
    %2970 = vmatpush.msra.mxu0 %v716
    %2971 = vmatpush.msra.mxu0 %v708
    %2972 = vmatpush.msra.mxu0 %v700
    %2973 = vmatmul.f32.gmra.mxu0 %v2685
    %v2974 = vpop.f32.mrf.mxu0
    %v2975 = vadd.f32 %v2955, %v2974
    %2976 = vdwg.mxu0
    %2977 = vmatpush.msra.mxu0 %v693
    %2978 = vmatpush.msra.mxu0 %v685
    %2979 = vmatpush.msra.mxu0 %v677
    %2980 = vmatpush.msra.mxu0 %v669
    %2981 = vmatpush.msra.mxu0 %v661
    %2982 = vmatpush.msra.mxu0 %v653
    %2983 = vmatpush.msra.mxu0 %v645
    %2984 = vmatpush.msra.mxu0 %v637
    %2985 = vmatpush.msra.mxu0 %v629
    %2986 = vmatpush.msra.mxu0 %v621
    %2987 = vmatpush.msra.mxu0 %v613
    %2988 = vmatpush.msra.mxu0 %v605
    %2989 = vmatpush.msra.mxu0 %v597
    %2990 = vmatpush.msra.mxu0 %v589
    %2991 = vmatpush.msra.mxu0 %v581
    %2992 = vmatpush.msra.mxu0 %v573
    %2993 = vmatmul.f32.gmra.mxu0 %v2684
    %v2994 = vpop.f32.mrf.mxu0
    %v2995 = vadd.f32 0.0, %v2994
    %2996 = vdwg.mxu0
    %2997 = vmatpush.msra.mxu0 %v821
    %2998 = vmatpush.msra.mxu0 %v813
    %2999 = vmatpush.msra.mxu0 %v805
    %3000 = vmatpush.msra.mxu0 %v797
    %3001 = vmatpush.msra.mxu0 %v789
    %3002 = vmatpush.msra.mxu0 %v781
    %3003 = vmatpush.msra.mxu0 %v773
    %3004 = vmatpush.msra.mxu0 %v765
    %3005 = vmatpush.msra.mxu0 %v757
    %3006 = vmatpush.msra.mxu0 %v749
    %3007 = vmatpush.msra.mxu0 %v741
    %3008 = vmatpush.msra.mxu0 %v733
    %3009 = vmatpush.msra.mxu0 %v725
    %3010 = vmatpush.msra.mxu0 %v717
    %3011 = vmatpush.msra.mxu0 %v709
    %3012 = vmatpush.msra.mxu0 %v701
    %3013 = vmatmul.f32.gmra.mxu0 %v2685
    %v3014 = vpop.f32.mrf.mxu0
    %v3015 = vadd.f32 %v2995, %v3014
    %3016 = vdwg.mxu0
    %v3017 = vadd.f32 %v2689, %v2735
    %v3018 = vadd.f32 %v2690, %v2775
    %v3019 = vadd.f32 %v2691, %v2815
    %v3020 = vadd.f32 %v2692, %v2855
    %v3021 = vadd.f32 %v2693, %v2895
    %v3022 = vadd.f32 %v2694, %v2935
    %v3023 = vadd.f32 %v2695, %v2975
    %v3024 = vadd.f32 %v2696, %v3015
    %v3025 = vxor.u32 %v3017, 2147483648
    %v3026 = vxor.u32 %v3018, 2147483648
    %v3027 = vmul.f32 %v3025, 1.442695
    %v3028 = vpow.pop %v3027
    %v3029 = vmul.f32 %v3026, 1.442695
    %v3030 = vpow.pop %v3029
    %v3031 = vadd.f32 %v3028, 1.0
    %v3032 = vadd.f32 %v3030, 1.0
    %v3033 = vrcp.pop %v3031
    %v3034 = vmul.f32 %v3031, %v3033
    %v3035 = vsub.f32 1.0, %v3034
    %v3036 = vmul.f32 %v3033, %v3035
    %v3037 = vadd.f32 %v3033, %v3036
    %vm3038 = vweird.f32 %v3031
    %vm3039 = vweird.f32 %v3033
    %vm3040 = vmor %vm3038, %vm3039
    %v3041 = vsel %vm3040, %v3033, %v3037
    %v3042 = vand.u32 2147483647, %v3031
    %vm3043 = vcmp.eq.f32.partialorder %v3042, 8.507059e+37
    %v3044 = vand.u32 %v3031, 2147483648
    %v3045 = vor.u32 1.1754944e-38, %v3044
    %v3046 = vsel %vm3043, %v3045, %v3041
    %v3047 = vmul.f32 1.0, %v3046
    %v3048 = vrcp.pop %v3032
    %v3049 = vmul.f32 %v3032, %v3048
    %v3050 = vsub.f32 1.0, %v3049
    %v3051 = vmul.f32 %v3048, %v3050
    %v3052 = vadd.f32 %v3048, %v3051
    %vm3053 = vweird.f32 %v3032
    %vm3054 = vweird.f32 %v3048
    %vm3055 = vmor %vm3053, %vm3054
    %v3056 = vsel %vm3055, %v3048, %v3052
    %v3057 = vand.u32 2147483647, %v3032
    %vm3058 = vcmp.eq.f32.partialorder %v3057, 8.507059e+37
    %v3059 = vand.u32 %v3032, 2147483648
    %v3060 = vor.u32 1.1754944e-38, %v3059
    %v3061 = vsel %vm3058, %v3060, %v3056
    %v3062 = vmul.f32 1.0, %v3061
    %v3063 = vxor.u32 %v3019, 2147483648
    %v3064 = vxor.u32 %v3020, 2147483648
    %v3065 = vmul.f32 %v3063, 1.442695
    %v3066 = vpow.pop %v3065
    %v3067 = vmul.f32 %v3064, 1.442695
    %v3068 = vpow.pop %v3067
    %v3069 = vadd.f32 %v3066, 1.0
    %v3070 = vadd.f32 %v3068, 1.0
    %v3071 = vrcp.pop %v3069
    %v3072 = vmul.f32 %v3069, %v3071
    %v3073 = vsub.f32 1.0, %v3072
    %v3074 = vmul.f32 %v3071, %v3073
    %v3075 = vadd.f32 %v3071, %v3074
    %vm3076 = vweird.f32 %v3069
    %vm3077 = vweird.f32 %v3071
    %vm3078 = vmor %vm3076, %vm3077
    %v3079 = vsel %vm3078, %v3071, %v3075
    %v3080 = vand.u32 2147483647, %v3069
    %vm3081 = vcmp.eq.f32.partialorder %v3080, 8.507059e+37
    %v3082 = vand.u32 %v3069, 2147483648
    %v3083 = vor.u32 1.1754944e-38, %v3082
    %v3084 = vsel %vm3081, %v3083, %v3079
    %v3085 = vmul.f32 1.0, %v3084
    %v3086 = vrcp.pop %v3070
    %v3087 = vmul.f32 %v3070, %v3086
    %v3088 = vsub.f32 1.0, %v3087
    %v3089 = vmul.f32 %v3086, %v3088
    %v3090 = vadd.f32 %v3086, %v3089
    %vm3091 = vweird.f32 %v3070
    %vm3092 = vweird.f32 %v3086
    %vm3093 = vmor %vm3091, %vm3092
    %v3094 = vsel %vm3093, %v3086, %v3090
    %v3095 = vand.u32 2147483647, %v3070
    %vm3096 = vcmp.eq.f32.partialorder %v3095, 8.507059e+37
    %v3097 = vand.u32 %v3070, 2147483648
    %v3098 = vor.u32 1.1754944e-38, %v3097
    %v3099 = vsel %vm3096, %v3098, %v3094
    %v3100 = vmul.f32 1.0, %v3099
    %v3101 = vtanh.pop %v3021
    %v3102 = vtanh.pop %v3022
    %v3103 = vxor.u32 %v3023, 2147483648
    %v3104 = vxor.u32 %v3024, 2147483648
    %v3105 = vmul.f32 %v3103, 1.442695
    %v3106 = vpow.pop %v3105
    %v3107 = vmul.f32 %v3104, 1.442695
    %v3108 = vpow.pop %v3107
    %v3109 = vadd.f32 %v3106, 1.0
    %v3110 = vadd.f32 %v3108, 1.0
    %v3111 = vrcp.pop %v3109
    %v3112 = vmul.f32 %v3109, %v3111
    %v3113 = vsub.f32 1.0, %v3112
    %v3114 = vmul.f32 %v3111, %v3113
    %v3115 = vadd.f32 %v3111, %v3114
    %vm3116 = vweird.f32 %v3109
    %vm3117 = vweird.f32 %v3111
    %vm3118 = vmor %vm3116, %vm3117
    %v3119 = vsel %vm3118, %v3111, %v3115
    %v3120 = vand.u32 2147483647, %v3109
    %vm3121 = vcmp.eq.f32.partialorder %v3120, 8.507059e+37
    %v3122 = vand.u32 %v3109, 2147483648
    %v3123 = vor.u32 1.1754944e-38, %v3122
    %v3124 = vsel %vm3121, %v3123, %v3119
    %v3125 = vmul.f32 1.0, %v3124
    %v3126 = vrcp.pop %v3110
    %v3127 = vmul.f32 %v3110, %v3126
    %v3128 = vsub.f32 1.0, %v3127
    %v3129 = vmul.f32 %v3126, %v3128
    %v3130 = vadd.f32 %v3126, %v3129
    %vm3131 = vweird.f32 %v3110
    %vm3132 = vweird.f32 %v3126
    %vm3133 = vmor %vm3131, %vm3132
    %v3134 = vsel %vm3133, %v3126, %v3130
    %v3135 = vand.u32 2147483647, %v3110
    %vm3136 = vcmp.eq.f32.partialorder %v3135, 8.507059e+37
    %v3137 = vand.u32 %v3110, 2147483648
    %v3138 = vor.u32 1.1754944e-38, %v3137
    %v3139 = vsel %vm3136, %v3138, %v3134
    %v3140 = vmul.f32 1.0, %v3139
    %v3141 = vmul.f32 %v3085, %v2680
    %v3142 = vmul.f32 %v3100, %v2681
    %v3143 = vmul.f32 %v3047, %v3101
    %v3144 = vmul.f32 %v3062, %v3102
    %v3145 = vadd.f32 %v3141, %v3143
    %v3146 = vadd.f32 %v3142, %v3144
    %v3147 = vtanh.pop %v3145
    %v3148 = vtanh.pop %v3146
    %v3149 = vmul.f32 %v3125, %v3147
    %v3150 = vmul.f32 %v3140, %v3148
    %s3151 = smul.u32 5, 8
    %s3152 = smul.addr %s3151, 8
    %s3153 = scalar_lea.vmem [#allocation2], %s3152
    %v3154 = vld [vmem:[%s3153] sm:$0xff]
    %v3155 = vld [vmem:[%s3153 + $0x8] sm:$0xff]
    %v3156 = vld [vmem:[%s3153 + $0x10] sm:$0xff]
    %v3157 = vld [vmem:[%s3153 + $0x18] sm:$0xff]
    %v3158 = vld [vmem:[%s3153 + $0x20] sm:$0xff]
    %v3159 = vld [vmem:[%s3153 + $0x28] sm:$0xff]
    %v3160 = vld [vmem:[%s3153 + $0x30] sm:$0xff]
    %v3161 = vld [vmem:[%s3153 + $0x38] sm:$0xff]
    %3162 = vmatpush.msra.mxu0 %v686
    %3163 = vmatpush.msra.mxu0 %v678
    %3164 = vmatpush.msra.mxu0 %v670
    %3165 = vmatpush.msra.mxu0 %v662
    %3166 = vmatpush.msra.mxu0 %v654
    %3167 = vmatpush.msra.mxu0 %v646
    %3168 = vmatpush.msra.mxu0 %v638
    %3169 = vmatpush.msra.mxu0 %v630
    %3170 = vmatpush.msra.mxu0 %v622
    %3171 = vmatpush.msra.mxu0 %v614
    %3172 = vmatpush.msra.mxu0 %v606
    %3173 = vmatpush.msra.mxu0 %v598
    %3174 = vmatpush.msra.mxu0 %v590
    %3175 = vmatpush.msra.mxu0 %v582
    %3176 = vmatpush.msra.mxu0 %v574
    %3177 = vmatpush.msra.mxu0 %v566
    %3178 = vmatmul.f32.gmra.mxu0 %v3149
    %v3179 = vpop.f32.mrf.mxu0
    %v3180 = vadd.f32 0.0, %v3179
    %3181 = vdwg.mxu0
    %3182 = vmatpush.msra.mxu0 %v814
    %3183 = vmatpush.msra.mxu0 %v806
    %3184 = vmatpush.msra.mxu0 %v798
    %3185 = vmatpush.msra.mxu0 %v790
    %3186 = vmatpush.msra.mxu0 %v782
    %3187 = vmatpush.msra.mxu0 %v774
    %3188 = vmatpush.msra.mxu0 %v766
    %3189 = vmatpush.msra.mxu0 %v758
    %3190 = vmatpush.msra.mxu0 %v750
    %3191 = vmatpush.msra.mxu0 %v742
    %3192 = vmatpush.msra.mxu0 %v734
    %3193 = vmatpush.msra.mxu0 %v726
    %3194 = vmatpush.msra.mxu0 %v718
    %3195 = vmatpush.msra.mxu0 %v710
    %3196 = vmatpush.msra.mxu0 %v702
    %3197 = vmatpush.msra.mxu0 %v694
    %3198 = vmatmul.f32.gmra.mxu0 %v3150
    %v3199 = vpop.f32.mrf.mxu0
    %v3200 = vadd.f32 %v3180, %v3199
    %3201 = vdwg.mxu0
    %3202 = vmatpush.msra.mxu0 %v687
    %3203 = vmatpush.msra.mxu0 %v679
    %3204 = vmatpush.msra.mxu0 %v671
    %3205 = vmatpush.msra.mxu0 %v663
    %3206 = vmatpush.msra.mxu0 %v655
    %3207 = vmatpush.msra.mxu0 %v647
    %3208 = vmatpush.msra.mxu0 %v639
    %3209 = vmatpush.msra.mxu0 %v631
    %3210 = vmatpush.msra.mxu0 %v623
    %3211 = vmatpush.msra.mxu0 %v615
    %3212 = vmatpush.msra.mxu0 %v607
    %3213 = vmatpush.msra.mxu0 %v599
    %3214 = vmatpush.msra.mxu0 %v591
    %3215 = vmatpush.msra.mxu0 %v583
    %3216 = vmatpush.msra.mxu0 %v575
    %3217 = vmatpush.msra.mxu0 %v567
    %3218 = vmatmul.f32.gmra.mxu0 %v3149
    %v3219 = vpop.f32.mrf.mxu0
    %v3220 = vadd.f32 0.0, %v3219
    %3221 = vdwg.mxu0
    %3222 = vmatpush.msra.mxu0 %v815
    %3223 = vmatpush.msra.mxu0 %v807
    %3224 = vmatpush.msra.mxu0 %v799
    %3225 = vmatpush.msra.mxu0 %v791
    %3226 = vmatpush.msra.mxu0 %v783
    %3227 = vmatpush.msra.mxu0 %v775
    %3228 = vmatpush.msra.mxu0 %v767
    %3229 = vmatpush.msra.mxu0 %v759
    %3230 = vmatpush.msra.mxu0 %v751
    %3231 = vmatpush.msra.mxu0 %v743
    %3232 = vmatpush.msra.mxu0 %v735
    %3233 = vmatpush.msra.mxu0 %v727
    %3234 = vmatpush.msra.mxu0 %v719
    %3235 = vmatpush.msra.mxu0 %v711
    %3236 = vmatpush.msra.mxu0 %v703
    %3237 = vmatpush.msra.mxu0 %v695
    %3238 = vmatmul.f32.gmra.mxu0 %v3150
    %v3239 = vpop.f32.mrf.mxu0
    %v3240 = vadd.f32 %v3220, %v3239
    %3241 = vdwg.mxu0
    %3242 = vmatpush.msra.mxu0 %v688
    %3243 = vmatpush.msra.mxu0 %v680
    %3244 = vmatpush.msra.mxu0 %v672
    %3245 = vmatpush.msra.mxu0 %v664
    %3246 = vmatpush.msra.mxu0 %v656
    %3247 = vmatpush.msra.mxu0 %v648
    %3248 = vmatpush.msra.mxu0 %v640
    %3249 = vmatpush.msra.mxu0 %v632
    %3250 = vmatpush.msra.mxu0 %v624
    %3251 = vmatpush.msra.mxu0 %v616
    %3252 = vmatpush.msra.mxu0 %v608
    %3253 = vmatpush.msra.mxu0 %v600
    %3254 = vmatpush.msra.mxu0 %v592
    %3255 = vmatpush.msra.mxu0 %v584
    %3256 = vmatpush.msra.mxu0 %v576
    %3257 = vmatpush.msra.mxu0 %v568
    %3258 = vmatmul.f32.gmra.mxu0 %v3149
    %v3259 = vpop.f32.mrf.mxu0
    %v3260 = vadd.f32 0.0, %v3259
    %3261 = vdwg.mxu0
    %3262 = vmatpush.msra.mxu0 %v816
    %3263 = vmatpush.msra.mxu0 %v808
    %3264 = vmatpush.msra.mxu0 %v800
    %3265 = vmatpush.msra.mxu0 %v792
    %3266 = vmatpush.msra.mxu0 %v784
    %3267 = vmatpush.msra.mxu0 %v776
    %3268 = vmatpush.msra.mxu0 %v768
    %3269 = vmatpush.msra.mxu0 %v760
    %3270 = vmatpush.msra.mxu0 %v752
    %3271 = vmatpush.msra.mxu0 %v744
    %3272 = vmatpush.msra.mxu0 %v736
    %3273 = vmatpush.msra.mxu0 %v728
    %3274 = vmatpush.msra.mxu0 %v720
    %3275 = vmatpush.msra.mxu0 %v712
    %3276 = vmatpush.msra.mxu0 %v704
    %3277 = vmatpush.msra.mxu0 %v696
    %3278 = vmatmul.f32.gmra.mxu0 %v3150
    %v3279 = vpop.f32.mrf.mxu0
    %v3280 = vadd.f32 %v3260, %v3279
    %3281 = vdwg.mxu0
    %3282 = vmatpush.msra.mxu0 %v689
    %3283 = vmatpush.msra.mxu0 %v681
    %3284 = vmatpush.msra.mxu0 %v673
    %3285 = vmatpush.msra.mxu0 %v665
    %3286 = vmatpush.msra.mxu0 %v657
    %3287 = vmatpush.msra.mxu0 %v649
    %3288 = vmatpush.msra.mxu0 %v641
    %3289 = vmatpush.msra.mxu0 %v633
    %3290 = vmatpush.msra.mxu0 %v625
    %3291 = vmatpush.msra.mxu0 %v617
    %3292 = vmatpush.msra.mxu0 %v609
    %3293 = vmatpush.msra.mxu0 %v601
    %3294 = vmatpush.msra.mxu0 %v593
    %3295 = vmatpush.msra.mxu0 %v585
    %3296 = vmatpush.msra.mxu0 %v577
    %3297 = vmatpush.msra.mxu0 %v569
    %3298 = vmatmul.f32.gmra.mxu0 %v3149
    %v3299 = vpop.f32.mrf.mxu0
    %v3300 = vadd.f32 0.0, %v3299
    %3301 = vdwg.mxu0
    %3302 = vmatpush.msra.mxu0 %v817
    %3303 = vmatpush.msra.mxu0 %v809
    %3304 = vmatpush.msra.mxu0 %v801
    %3305 = vmatpush.msra.mxu0 %v793
    %3306 = vmatpush.msra.mxu0 %v785
    %3307 = vmatpush.msra.mxu0 %v777
    %3308 = vmatpush.msra.mxu0 %v769
    %3309 = vmatpush.msra.mxu0 %v761
    %3310 = vmatpush.msra.mxu0 %v753
    %3311 = vmatpush.msra.mxu0 %v745
    %3312 = vmatpush.msra.mxu0 %v737
    %3313 = vmatpush.msra.mxu0 %v729
    %3314 = vmatpush.msra.mxu0 %v721
    %3315 = vmatpush.msra.mxu0 %v713
    %3316 = vmatpush.msra.mxu0 %v705
    %3317 = vmatpush.msra.mxu0 %v697
    %3318 = vmatmul.f32.gmra.mxu0 %v3150
    %v3319 = vpop.f32.mrf.mxu0
    %v3320 = vadd.f32 %v3300, %v3319
    %3321 = vdwg.mxu0
    %3322 = vmatpush.msra.mxu0 %v690
    %3323 = vmatpush.msra.mxu0 %v682
    %3324 = vmatpush.msra.mxu0 %v674
    %3325 = vmatpush.msra.mxu0 %v666
    %3326 = vmatpush.msra.mxu0 %v658
    %3327 = vmatpush.msra.mxu0 %v650
    %3328 = vmatpush.msra.mxu0 %v642
    %3329 = vmatpush.msra.mxu0 %v634
    %3330 = vmatpush.msra.mxu0 %v626
    %3331 = vmatpush.msra.mxu0 %v618
    %3332 = vmatpush.msra.mxu0 %v610
    %3333 = vmatpush.msra.mxu0 %v602
    %3334 = vmatpush.msra.mxu0 %v594
    %3335 = vmatpush.msra.mxu0 %v586
    %3336 = vmatpush.msra.mxu0 %v578
    %3337 = vmatpush.msra.mxu0 %v570
    %3338 = vmatmul.f32.gmra.mxu0 %v3149
    %v3339 = vpop.f32.mrf.mxu0
    %v3340 = vadd.f32 0.0, %v3339
    %3341 = vdwg.mxu0
    %3342 = vmatpush.msra.mxu0 %v818
    %3343 = vmatpush.msra.mxu0 %v810
    %3344 = vmatpush.msra.mxu0 %v802
    %3345 = vmatpush.msra.mxu0 %v794
    %3346 = vmatpush.msra.mxu0 %v786
    %3347 = vmatpush.msra.mxu0 %v778
    %3348 = vmatpush.msra.mxu0 %v770
    %3349 = vmatpush.msra.mxu0 %v762
    %3350 = vmatpush.msra.mxu0 %v754
    %3351 = vmatpush.msra.mxu0 %v746
    %3352 = vmatpush.msra.mxu0 %v738
    %3353 = vmatpush.msra.mxu0 %v730
    %3354 = vmatpush.msra.mxu0 %v722
    %3355 = vmatpush.msra.mxu0 %v714
    %3356 = vmatpush.msra.mxu0 %v706
    %3357 = vmatpush.msra.mxu0 %v698
    %3358 = vmatmul.f32.gmra.mxu0 %v3150
    %v3359 = vpop.f32.mrf.mxu0
    %v3360 = vadd.f32 %v3340, %v3359
    %3361 = vdwg.mxu0
    %3362 = vmatpush.msra.mxu0 %v691
    %3363 = vmatpush.msra.mxu0 %v683
    %3364 = vmatpush.msra.mxu0 %v675
    %3365 = vmatpush.msra.mxu0 %v667
    %3366 = vmatpush.msra.mxu0 %v659
    %3367 = vmatpush.msra.mxu0 %v651
    %3368 = vmatpush.msra.mxu0 %v643
    %3369 = vmatpush.msra.mxu0 %v635
    %3370 = vmatpush.msra.mxu0 %v627
    %3371 = vmatpush.msra.mxu0 %v619
    %3372 = vmatpush.msra.mxu0 %v611
    %3373 = vmatpush.msra.mxu0 %v603
    %3374 = vmatpush.msra.mxu0 %v595
    %3375 = vmatpush.msra.mxu0 %v587
    %3376 = vmatpush.msra.mxu0 %v579
    %3377 = vmatpush.msra.mxu0 %v571
    %3378 = vmatmul.f32.gmra.mxu0 %v3149
    %v3379 = vpop.f32.mrf.mxu0
    %v3380 = vadd.f32 0.0, %v3379
    %3381 = vdwg.mxu0
    %3382 = vmatpush.msra.mxu0 %v819
    %3383 = vmatpush.msra.mxu0 %v811
    %3384 = vmatpush.msra.mxu0 %v803
    %3385 = vmatpush.msra.mxu0 %v795
    %3386 = vmatpush.msra.mxu0 %v787
    %3387 = vmatpush.msra.mxu0 %v779
    %3388 = vmatpush.msra.mxu0 %v771
    %3389 = vmatpush.msra.mxu0 %v763
    %3390 = vmatpush.msra.mxu0 %v755
    %3391 = vmatpush.msra.mxu0 %v747
    %3392 = vmatpush.msra.mxu0 %v739
    %3393 = vmatpush.msra.mxu0 %v731
    %3394 = vmatpush.msra.mxu0 %v723
    %3395 = vmatpush.msra.mxu0 %v715
    %3396 = vmatpush.msra.mxu0 %v707
    %3397 = vmatpush.msra.mxu0 %v699
    %3398 = vmatmul.f32.gmra.mxu0 %v3150
    %v3399 = vpop.f32.mrf.mxu0
    %v3400 = vadd.f32 %v3380, %v3399
    %3401 = vdwg.mxu0
    %3402 = vmatpush.msra.mxu0 %v692
    %3403 = vmatpush.msra.mxu0 %v684
    %3404 = vmatpush.msra.mxu0 %v676
    %3405 = vmatpush.msra.mxu0 %v668
    %3406 = vmatpush.msra.mxu0 %v660
    %3407 = vmatpush.msra.mxu0 %v652
    %3408 = vmatpush.msra.mxu0 %v644
    %3409 = vmatpush.msra.mxu0 %v636
    %3410 = vmatpush.msra.mxu0 %v628
    %3411 = vmatpush.msra.mxu0 %v620
    %3412 = vmatpush.msra.mxu0 %v612
    %3413 = vmatpush.msra.mxu0 %v604
    %3414 = vmatpush.msra.mxu0 %v596
    %3415 = vmatpush.msra.mxu0 %v588
    %3416 = vmatpush.msra.mxu0 %v580
    %3417 = vmatpush.msra.mxu0 %v572
    %3418 = vmatmul.f32.gmra.mxu0 %v3149
    %v3419 = vpop.f32.mrf.mxu0
    %v3420 = vadd.f32 0.0, %v3419
    %3421 = vdwg.mxu0
    %3422 = vmatpush.msra.mxu0 %v820
    %3423 = vmatpush.msra.mxu0 %v812
    %3424 = vmatpush.msra.mxu0 %v804
    %3425 = vmatpush.msra.mxu0 %v796
    %3426 = vmatpush.msra.mxu0 %v788
    %3427 = vmatpush.msra.mxu0 %v780
    %3428 = vmatpush.msra.mxu0 %v772
    %3429 = vmatpush.msra.mxu0 %v764
    %3430 = vmatpush.msra.mxu0 %v756
    %3431 = vmatpush.msra.mxu0 %v748
    %3432 = vmatpush.msra.mxu0 %v740
    %3433 = vmatpush.msra.mxu0 %v732
    %3434 = vmatpush.msra.mxu0 %v724
    %3435 = vmatpush.msra.mxu0 %v716
    %3436 = vmatpush.msra.mxu0 %v708
    %3437 = vmatpush.msra.mxu0 %v700
    %3438 = vmatmul.f32.gmra.mxu0 %v3150
    %v3439 = vpop.f32.mrf.mxu0
    %v3440 = vadd.f32 %v3420, %v3439
    %3441 = vdwg.mxu0
    %3442 = vmatpush.msra.mxu0 %v693
    %3443 = vmatpush.msra.mxu0 %v685
    %3444 = vmatpush.msra.mxu0 %v677
    %3445 = vmatpush.msra.mxu0 %v669
    %3446 = vmatpush.msra.mxu0 %v661
    %3447 = vmatpush.msra.mxu0 %v653
    %3448 = vmatpush.msra.mxu0 %v645
    %3449 = vmatpush.msra.mxu0 %v637
    %3450 = vmatpush.msra.mxu0 %v629
    %3451 = vmatpush.msra.mxu0 %v621
    %3452 = vmatpush.msra.mxu0 %v613
    %3453 = vmatpush.msra.mxu0 %v605
    %3454 = vmatpush.msra.mxu0 %v597
    %3455 = vmatpush.msra.mxu0 %v589
    %3456 = vmatpush.msra.mxu0 %v581
    %3457 = vmatpush.msra.mxu0 %v573
    %3458 = vmatmul.f32.gmra.mxu0 %v3149
    %v3459 = vpop.f32.mrf.mxu0
    %v3460 = vadd.f32 0.0, %v3459
    %3461 = vdwg.mxu0
    %3462 = vmatpush.msra.mxu0 %v821
    %3463 = vmatpush.msra.mxu0 %v813
    %3464 = vmatpush.msra.mxu0 %v805
    %3465 = vmatpush.msra.mxu0 %v797
    %3466 = vmatpush.msra.mxu0 %v789
    %3467 = vmatpush.msra.mxu0 %v781
    %3468 = vmatpush.msra.mxu0 %v773
    %3469 = vmatpush.msra.mxu0 %v765
    %3470 = vmatpush.msra.mxu0 %v757
    %3471 = vmatpush.msra.mxu0 %v749
    %3472 = vmatpush.msra.mxu0 %v741
    %3473 = vmatpush.msra.mxu0 %v733
    %3474 = vmatpush.msra.mxu0 %v725
    %3475 = vmatpush.msra.mxu0 %v717
    %3476 = vmatpush.msra.mxu0 %v709
    %3477 = vmatpush.msra.mxu0 %v701
    %3478 = vmatmul.f32.gmra.mxu0 %v3150
    %v3479 = vpop.f32.mrf.mxu0
    %v3480 = vadd.f32 %v3460, %v3479
    %3481 = vdwg.mxu0
    %v3482 = vadd.f32 %v3154, %v3200
    %v3483 = vadd.f32 %v3155, %v3240
    %v3484 = vadd.f32 %v3156, %v3280
    %v3485 = vadd.f32 %v3157, %v3320
    %v3486 = vadd.f32 %v3158, %v3360
    %v3487 = vadd.f32 %v3159, %v3400
    %v3488 = vadd.f32 %v3160, %v3440
    %v3489 = vadd.f32 %v3161, %v3480
    %v3490 = vxor.u32 %v3482, 2147483648
    %v3491 = vxor.u32 %v3483, 2147483648
    %v3492 = vmul.f32 %v3490, 1.442695
    %v3493 = vpow.pop %v3492
    %v3494 = vmul.f32 %v3491, 1.442695
    %v3495 = vpow.pop %v3494
    %v3496 = vadd.f32 %v3493, 1.0
    %v3497 = vadd.f32 %v3495, 1.0
    %v3498 = vrcp.pop %v3496
    %v3499 = vmul.f32 %v3496, %v3498
    %v3500 = vsub.f32 1.0, %v3499
    %v3501 = vmul.f32 %v3498, %v3500
    %v3502 = vadd.f32 %v3498, %v3501
    %vm3503 = vweird.f32 %v3496
    %vm3504 = vweird.f32 %v3498
    %vm3505 = vmor %vm3503, %vm3504
    %v3506 = vsel %vm3505, %v3498, %v3502
    %v3507 = vand.u32 2147483647, %v3496
    %vm3508 = vcmp.eq.f32.partialorder %v3507, 8.507059e+37
    %v3509 = vand.u32 %v3496, 2147483648
    %v3510 = vor.u32 1.1754944e-38, %v3509
    %v3511 = vsel %vm3508, %v3510, %v3506
    %v3512 = vmul.f32 1.0, %v3511
    %v3513 = vrcp.pop %v3497
    %v3514 = vmul.f32 %v3497, %v3513
    %v3515 = vsub.f32 1.0, %v3514
    %v3516 = vmul.f32 %v3513, %v3515
    %v3517 = vadd.f32 %v3513, %v3516
    %vm3518 = vweird.f32 %v3497
    %vm3519 = vweird.f32 %v3513
    %vm3520 = vmor %vm3518, %vm3519
    %v3521 = vsel %vm3520, %v3513, %v3517
    %v3522 = vand.u32 2147483647, %v3497
    %vm3523 = vcmp.eq.f32.partialorder %v3522, 8.507059e+37
    %v3524 = vand.u32 %v3497, 2147483648
    %v3525 = vor.u32 1.1754944e-38, %v3524
    %v3526 = vsel %vm3523, %v3525, %v3521
    %v3527 = vmul.f32 1.0, %v3526
    %v3528 = vxor.u32 %v3484, 2147483648
    %v3529 = vxor.u32 %v3485, 2147483648
    %v3530 = vmul.f32 %v3528, 1.442695
    %v3531 = vpow.pop %v3530
    %v3532 = vmul.f32 %v3529, 1.442695
    %v3533 = vpow.pop %v3532
    %v3534 = vadd.f32 %v3531, 1.0
    %v3535 = vadd.f32 %v3533, 1.0
    %v3536 = vrcp.pop %v3534
    %v3537 = vmul.f32 %v3534, %v3536
    %v3538 = vsub.f32 1.0, %v3537
    %v3539 = vmul.f32 %v3536, %v3538
    %v3540 = vadd.f32 %v3536, %v3539
    %vm3541 = vweird.f32 %v3534
    %vm3542 = vweird.f32 %v3536
    %vm3543 = vmor %vm3541, %vm3542
    %v3544 = vsel %vm3543, %v3536, %v3540
    %v3545 = vand.u32 2147483647, %v3534
    %vm3546 = vcmp.eq.f32.partialorder %v3545, 8.507059e+37
    %v3547 = vand.u32 %v3534, 2147483648
    %v3548 = vor.u32 1.1754944e-38, %v3547
    %v3549 = vsel %vm3546, %v3548, %v3544
    %v3550 = vmul.f32 1.0, %v3549
    %v3551 = vrcp.pop %v3535
    %v3552 = vmul.f32 %v3535, %v3551
    %v3553 = vsub.f32 1.0, %v3552
    %v3554 = vmul.f32 %v3551, %v3553
    %v3555 = vadd.f32 %v3551, %v3554
    %vm3556 = vweird.f32 %v3535
    %vm3557 = vweird.f32 %v3551
    %vm3558 = vmor %vm3556, %vm3557
    %v3559 = vsel %vm3558, %v3551, %v3555
    %v3560 = vand.u32 2147483647, %v3535
    %vm3561 = vcmp.eq.f32.partialorder %v3560, 8.507059e+37
    %v3562 = vand.u32 %v3535, 2147483648
    %v3563 = vor.u32 1.1754944e-38, %v3562
    %v3564 = vsel %vm3561, %v3563, %v3559
    %v3565 = vmul.f32 1.0, %v3564
    %v3566 = vtanh.pop %v3486
    %v3567 = vtanh.pop %v3487
    %v3568 = vxor.u32 %v3488, 2147483648
    %v3569 = vxor.u32 %v3489, 2147483648
    %v3570 = vmul.f32 %v3568, 1.442695
    %v3571 = vpow.pop %v3570
    %v3572 = vmul.f32 %v3569, 1.442695
    %v3573 = vpow.pop %v3572
    %v3574 = vadd.f32 %v3571, 1.0
    %v3575 = vadd.f32 %v3573, 1.0
    %v3576 = vrcp.pop %v3574
    %v3577 = vmul.f32 %v3574, %v3576
    %v3578 = vsub.f32 1.0, %v3577
    %v3579 = vmul.f32 %v3576, %v3578
    %v3580 = vadd.f32 %v3576, %v3579
    %vm3581 = vweird.f32 %v3574
    %vm3582 = vweird.f32 %v3576
    %vm3583 = vmor %vm3581, %vm3582
    %v3584 = vsel %vm3583, %v3576, %v3580
    %v3585 = vand.u32 2147483647, %v3574
    %vm3586 = vcmp.eq.f32.partialorder %v3585, 8.507059e+37
    %v3587 = vand.u32 %v3574, 2147483648
    %v3588 = vor.u32 1.1754944e-38, %v3587
    %v3589 = vsel %vm3586, %v3588, %v3584
    %v3590 = vmul.f32 1.0, %v3589
    %v3591 = vrcp.pop %v3575
    %v3592 = vmul.f32 %v3575, %v3591
    %v3593 = vsub.f32 1.0, %v3592
    %v3594 = vmul.f32 %v3591, %v3593
    %v3595 = vadd.f32 %v3591, %v3594
    %vm3596 = vweird.f32 %v3575
    %vm3597 = vweird.f32 %v3591
    %vm3598 = vmor %vm3596, %vm3597
    %v3599 = vsel %vm3598, %v3591, %v3595
    %v3600 = vand.u32 2147483647, %v3575
    %vm3601 = vcmp.eq.f32.partialorder %v3600, 8.507059e+37
    %v3602 = vand.u32 %v3575, 2147483648
    %v3603 = vor.u32 1.1754944e-38, %v3602
    %v3604 = vsel %vm3601, %v3603, %v3599
    %v3605 = vmul.f32 1.0, %v3604
    %v3606 = vmul.f32 %v3550, %v3145
    %v3607 = vmul.f32 %v3565, %v3146
    %v3608 = vmul.f32 %v3512, %v3566
    %v3609 = vmul.f32 %v3527, %v3567
    %v3610 = vadd.f32 %v3606, %v3608
    %v3611 = vadd.f32 %v3607, %v3609
    %v3612 = vtanh.pop %v3610
    %v3613 = vtanh.pop %v3611
    %v3614 = vmul.f32 %v3590, %v3612
    %v3615 = vmul.f32 %v3605, %v3613
    %s3616 = smul.u32 6, 8
    %s3617 = smul.addr %s3616, 8
    %s3618 = scalar_lea.vmem [#allocation2], %s3617
    %v3619 = vld [vmem:[%s3618] sm:$0xff]
    %v3620 = vld [vmem:[%s3618 + $0x8] sm:$0xff]
    %v3621 = vld [vmem:[%s3618 + $0x10] sm:$0xff]
    %v3622 = vld [vmem:[%s3618 + $0x18] sm:$0xff]
    %v3623 = vld [vmem:[%s3618 + $0x20] sm:$0xff]
    %v3624 = vld [vmem:[%s3618 + $0x28] sm:$0xff]
    %v3625 = vld [vmem:[%s3618 + $0x30] sm:$0xff]
    %v3626 = vld [vmem:[%s3618 + $0x38] sm:$0xff]
    %3627 = vmatpush.msra.mxu0 %v686
    %3628 = vmatpush.msra.mxu0 %v678
    %3629 = vmatpush.msra.mxu0 %v670
    %3630 = vmatpush.msra.mxu0 %v662
    %3631 = vmatpush.msra.mxu0 %v654
    %3632 = vmatpush.msra.mxu0 %v646
    %3633 = vmatpush.msra.mxu0 %v638
    %3634 = vmatpush.msra.mxu0 %v630
    %3635 = vmatpush.msra.mxu0 %v622
    %3636 = vmatpush.msra.mxu0 %v614
    %3637 = vmatpush.msra.mxu0 %v606
    %3638 = vmatpush.msra.mxu0 %v598
    %3639 = vmatpush.msra.mxu0 %v590
    %3640 = vmatpush.msra.mxu0 %v582
    %3641 = vmatpush.msra.mxu0 %v574
    %3642 = vmatpush.msra.mxu0 %v566
    %3643 = vmatmul.f32.gmra.mxu0 %v3614
    %v3644 = vpop.f32.mrf.mxu0
    %v3645 = vadd.f32 0.0, %v3644
    %3646 = vdwg.mxu0
    %3647 = vmatpush.msra.mxu0 %v814
    %3648 = vmatpush.msra.mxu0 %v806
    %3649 = vmatpush.msra.mxu0 %v798
    %3650 = vmatpush.msra.mxu0 %v790
    %3651 = vmatpush.msra.mxu0 %v782
    %3652 = vmatpush.msra.mxu0 %v774
    %3653 = vmatpush.msra.mxu0 %v766
    %3654 = vmatpush.msra.mxu0 %v758
    %3655 = vmatpush.msra.mxu0 %v750
    %3656 = vmatpush.msra.mxu0 %v742
    %3657 = vmatpush.msra.mxu0 %v734
    %3658 = vmatpush.msra.mxu0 %v726
    %3659 = vmatpush.msra.mxu0 %v718
    %3660 = vmatpush.msra.mxu0 %v710
    %3661 = vmatpush.msra.mxu0 %v702
    %3662 = vmatpush.msra.mxu0 %v694
    %3663 = vmatmul.f32.gmra.mxu0 %v3615
    %v3664 = vpop.f32.mrf.mxu0
    %v3665 = vadd.f32 %v3645, %v3664
    %3666 = vdwg.mxu0
    %3667 = vmatpush.msra.mxu0 %v687
    %3668 = vmatpush.msra.mxu0 %v679
    %3669 = vmatpush.msra.mxu0 %v671
    %3670 = vmatpush.msra.mxu0 %v663
    %3671 = vmatpush.msra.mxu0 %v655
    %3672 = vmatpush.msra.mxu0 %v647
    %3673 = vmatpush.msra.mxu0 %v639
    %3674 = vmatpush.msra.mxu0 %v631
    %3675 = vmatpush.msra.mxu0 %v623
    %3676 = vmatpush.msra.mxu0 %v615
    %3677 = vmatpush.msra.mxu0 %v607
    %3678 = vmatpush.msra.mxu0 %v599
    %3679 = vmatpush.msra.mxu0 %v591
    %3680 = vmatpush.msra.mxu0 %v583
    %3681 = vmatpush.msra.mxu0 %v575
    %3682 = vmatpush.msra.mxu0 %v567
    %3683 = vmatmul.f32.gmra.mxu0 %v3614
    %v3684 = vpop.f32.mrf.mxu0
    %v3685 = vadd.f32 0.0, %v3684
    %3686 = vdwg.mxu0
    %3687 = vmatpush.msra.mxu0 %v815
    %3688 = vmatpush.msra.mxu0 %v807
    %3689 = vmatpush.msra.mxu0 %v799
    %3690 = vmatpush.msra.mxu0 %v791
    %3691 = vmatpush.msra.mxu0 %v783
    %3692 = vmatpush.msra.mxu0 %v775
    %3693 = vmatpush.msra.mxu0 %v767
    %3694 = vmatpush.msra.mxu0 %v759
    %3695 = vmatpush.msra.mxu0 %v751
    %3696 = vmatpush.msra.mxu0 %v743
    %3697 = vmatpush.msra.mxu0 %v735
    %3698 = vmatpush.msra.mxu0 %v727
    %3699 = vmatpush.msra.mxu0 %v719
    %3700 = vmatpush.msra.mxu0 %v711
    %3701 = vmatpush.msra.mxu0 %v703
    %3702 = vmatpush.msra.mxu0 %v695
    %3703 = vmatmul.f32.gmra.mxu0 %v3615
    %v3704 = vpop.f32.mrf.mxu0
    %v3705 = vadd.f32 %v3685, %v3704
    %3706 = vdwg.mxu0
    %3707 = vmatpush.msra.mxu0 %v688
    %3708 = vmatpush.msra.mxu0 %v680
    %3709 = vmatpush.msra.mxu0 %v672
    %3710 = vmatpush.msra.mxu0 %v664
    %3711 = vmatpush.msra.mxu0 %v656
    %3712 = vmatpush.msra.mxu0 %v648
    %3713 = vmatpush.msra.mxu0 %v640
    %3714 = vmatpush.msra.mxu0 %v632
    %3715 = vmatpush.msra.mxu0 %v624
    %3716 = vmatpush.msra.mxu0 %v616
    %3717 = vmatpush.msra.mxu0 %v608
    %3718 = vmatpush.msra.mxu0 %v600
    %3719 = vmatpush.msra.mxu0 %v592
    %3720 = vmatpush.msra.mxu0 %v584
    %3721 = vmatpush.msra.mxu0 %v576
    %3722 = vmatpush.msra.mxu0 %v568
    %3723 = vmatmul.f32.gmra.mxu0 %v3614
    %v3724 = vpop.f32.mrf.mxu0
    %v3725 = vadd.f32 0.0, %v3724
    %3726 = vdwg.mxu0
    %3727 = vmatpush.msra.mxu0 %v816
    %3728 = vmatpush.msra.mxu0 %v808
    %3729 = vmatpush.msra.mxu0 %v800
    %3730 = vmatpush.msra.mxu0 %v792
    %3731 = vmatpush.msra.mxu0 %v784
    %3732 = vmatpush.msra.mxu0 %v776
    %3733 = vmatpush.msra.mxu0 %v768
    %3734 = vmatpush.msra.mxu0 %v760
    %3735 = vmatpush.msra.mxu0 %v752
    %3736 = vmatpush.msra.mxu0 %v744
    %3737 = vmatpush.msra.mxu0 %v736
    %3738 = vmatpush.msra.mxu0 %v728
    %3739 = vmatpush.msra.mxu0 %v720
    %3740 = vmatpush.msra.mxu0 %v712
    %3741 = vmatpush.msra.mxu0 %v704
    %3742 = vmatpush.msra.mxu0 %v696
    %3743 = vmatmul.f32.gmra.mxu0 %v3615
    %v3744 = vpop.f32.mrf.mxu0
    %v3745 = vadd.f32 %v3725, %v3744
    %3746 = vdwg.mxu0
    %3747 = vmatpush.msra.mxu0 %v689
    %3748 = vmatpush.msra.mxu0 %v681
    %3749 = vmatpush.msra.mxu0 %v673
    %3750 = vmatpush.msra.mxu0 %v665
    %3751 = vmatpush.msra.mxu0 %v657
    %3752 = vmatpush.msra.mxu0 %v649
    %3753 = vmatpush.msra.mxu0 %v641
    %3754 = vmatpush.msra.mxu0 %v633
    %3755 = vmatpush.msra.mxu0 %v625
    %3756 = vmatpush.msra.mxu0 %v617
    %3757 = vmatpush.msra.mxu0 %v609
    %3758 = vmatpush.msra.mxu0 %v601
    %3759 = vmatpush.msra.mxu0 %v593
    %3760 = vmatpush.msra.mxu0 %v585
    %3761 = vmatpush.msra.mxu0 %v577
    %3762 = vmatpush.msra.mxu0 %v569
    %3763 = vmatmul.f32.gmra.mxu0 %v3614
    %v3764 = vpop.f32.mrf.mxu0
    %v3765 = vadd.f32 0.0, %v3764
    %3766 = vdwg.mxu0
    %3767 = vmatpush.msra.mxu0 %v817
    %3768 = vmatpush.msra.mxu0 %v809
    %3769 = vmatpush.msra.mxu0 %v801
    %3770 = vmatpush.msra.mxu0 %v793
    %3771 = vmatpush.msra.mxu0 %v785
    %3772 = vmatpush.msra.mxu0 %v777
    %3773 = vmatpush.msra.mxu0 %v769
    %3774 = vmatpush.msra.mxu0 %v761
    %3775 = vmatpush.msra.mxu0 %v753
    %3776 = vmatpush.msra.mxu0 %v745
    %3777 = vmatpush.msra.mxu0 %v737
    %3778 = vmatpush.msra.mxu0 %v729
    %3779 = vmatpush.msra.mxu0 %v721
    %3780 = vmatpush.msra.mxu0 %v713
    %3781 = vmatpush.msra.mxu0 %v705
    %3782 = vmatpush.msra.mxu0 %v697
    %3783 = vmatmul.f32.gmra.mxu0 %v3615
    %v3784 = vpop.f32.mrf.mxu0
    %v3785 = vadd.f32 %v3765, %v3784
    %3786 = vdwg.mxu0
    %3787 = vmatpush.msra.mxu0 %v690
    %3788 = vmatpush.msra.mxu0 %v682
    %3789 = vmatpush.msra.mxu0 %v674
    %3790 = vmatpush.msra.mxu0 %v666
    %3791 = vmatpush.msra.mxu0 %v658
    %3792 = vmatpush.msra.mxu0 %v650
    %3793 = vmatpush.msra.mxu0 %v642
    %3794 = vmatpush.msra.mxu0 %v634
    %3795 = vmatpush.msra.mxu0 %v626
    %3796 = vmatpush.msra.mxu0 %v618
    %3797 = vmatpush.msra.mxu0 %v610
    %3798 = vmatpush.msra.mxu0 %v602
    %3799 = vmatpush.msra.mxu0 %v594
    %3800 = vmatpush.msra.mxu0 %v586
    %3801 = vmatpush.msra.mxu0 %v578
    %3802 = vmatpush.msra.mxu0 %v570
    %3803 = vmatmul.f32.gmra.mxu0 %v3614
    %v3804 = vpop.f32.mrf.mxu0
    %v3805 = vadd.f32 0.0, %v3804
    %3806 = vdwg.mxu0
    %3807 = vmatpush.msra.mxu0 %v818
    %3808 = vmatpush.msra.mxu0 %v810
    %3809 = vmatpush.msra.mxu0 %v802
    %3810 = vmatpush.msra.mxu0 %v794
    %3811 = vmatpush.msra.mxu0 %v786
    %3812 = vmatpush.msra.mxu0 %v778
    %3813 = vmatpush.msra.mxu0 %v770
    %3814 = vmatpush.msra.mxu0 %v762
    %3815 = vmatpush.msra.mxu0 %v754
    %3816 = vmatpush.msra.mxu0 %v746
    %3817 = vmatpush.msra.mxu0 %v738
    %3818 = vmatpush.msra.mxu0 %v730
    %3819 = vmatpush.msra.mxu0 %v722
    %3820 = vmatpush.msra.mxu0 %v714
    %3821 = vmatpush.msra.mxu0 %v706
    %3822 = vmatpush.msra.mxu0 %v698
    %3823 = vmatmul.f32.gmra.mxu0 %v3615
    %v3824 = vpop.f32.mrf.mxu0
    %v3825 = vadd.f32 %v3805, %v3824
    %3826 = vdwg.mxu0
    %3827 = vmatpush.msra.mxu0 %v691
    %3828 = vmatpush.msra.mxu0 %v683
    %3829 = vmatpush.msra.mxu0 %v675
    %3830 = vmatpush.msra.mxu0 %v667
    %3831 = vmatpush.msra.mxu0 %v659
    %3832 = vmatpush.msra.mxu0 %v651
    %3833 = vmatpush.msra.mxu0 %v643
    %3834 = vmatpush.msra.mxu0 %v635
    %3835 = vmatpush.msra.mxu0 %v627
    %3836 = vmatpush.msra.mxu0 %v619
    %3837 = vmatpush.msra.mxu0 %v611
    %3838 = vmatpush.msra.mxu0 %v603
    %3839 = vmatpush.msra.mxu0 %v595
    %3840 = vmatpush.msra.mxu0 %v587
    %3841 = vmatpush.msra.mxu0 %v579
    %3842 = vmatpush.msra.mxu0 %v571
    %3843 = vmatmul.f32.gmra.mxu0 %v3614
    %v3844 = vpop.f32.mrf.mxu0
    %v3845 = vadd.f32 0.0, %v3844
    %3846 = vdwg.mxu0
    %3847 = vmatpush.msra.mxu0 %v819
    %3848 = vmatpush.msra.mxu0 %v811
    %3849 = vmatpush.msra.mxu0 %v803
    %3850 = vmatpush.msra.mxu0 %v795
    %3851 = vmatpush.msra.mxu0 %v787
    %3852 = vmatpush.msra.mxu0 %v779
    %3853 = vmatpush.msra.mxu0 %v771
    %3854 = vmatpush.msra.mxu0 %v763
    %3855 = vmatpush.msra.mxu0 %v755
    %3856 = vmatpush.msra.mxu0 %v747
    %3857 = vmatpush.msra.mxu0 %v739
    %3858 = vmatpush.msra.mxu0 %v731
    %3859 = vmatpush.msra.mxu0 %v723
    %3860 = vmatpush.msra.mxu0 %v715
    %3861 = vmatpush.msra.mxu0 %v707
    %3862 = vmatpush.msra.mxu0 %v699
    %3863 = vmatmul.f32.gmra.mxu0 %v3615
    %v3864 = vpop.f32.mrf.mxu0
    %v3865 = vadd.f32 %v3845, %v3864
    %3866 = vdwg.mxu0
    %3867 = vmatpush.msra.mxu0 %v692
    %3868 = vmatpush.msra.mxu0 %v684
    %3869 = vmatpush.msra.mxu0 %v676
    %3870 = vmatpush.msra.mxu0 %v668
    %3871 = vmatpush.msra.mxu0 %v660
    %3872 = vmatpush.msra.mxu0 %v652
    %3873 = vmatpush.msra.mxu0 %v644
    %3874 = vmatpush.msra.mxu0 %v636
    %3875 = vmatpush.msra.mxu0 %v628
    %3876 = vmatpush.msra.mxu0 %v620
    %3877 = vmatpush.msra.mxu0 %v612
    %3878 = vmatpush.msra.mxu0 %v604
    %3879 = vmatpush.msra.mxu0 %v596
    %3880 = vmatpush.msra.mxu0 %v588
    %3881 = vmatpush.msra.mxu0 %v580
    %3882 = vmatpush.msra.mxu0 %v572
    %3883 = vmatmul.f32.gmra.mxu0 %v3614
    %v3884 = vpop.f32.mrf.mxu0
    %v3885 = vadd.f32 0.0, %v3884
    %3886 = vdwg.mxu0
    %3887 = vmatpush.msra.mxu0 %v820
    %3888 = vmatpush.msra.mxu0 %v812
    %3889 = vmatpush.msra.mxu0 %v804
    %3890 = vmatpush.msra.mxu0 %v796
    %3891 = vmatpush.msra.mxu0 %v788
    %3892 = vmatpush.msra.mxu0 %v780
    %3893 = vmatpush.msra.mxu0 %v772
    %3894 = vmatpush.msra.mxu0 %v764
    %3895 = vmatpush.msra.mxu0 %v756
    %3896 = vmatpush.msra.mxu0 %v748
    %3897 = vmatpush.msra.mxu0 %v740
    %3898 = vmatpush.msra.mxu0 %v732
    %3899 = vmatpush.msra.mxu0 %v724
    %3900 = vmatpush.msra.mxu0 %v716
    %3901 = vmatpush.msra.mxu0 %v708
    %3902 = vmatpush.msra.mxu0 %v700
    %3903 = vmatmul.f32.gmra.mxu0 %v3615
    %v3904 = vpop.f32.mrf.mxu0
    %v3905 = vadd.f32 %v3885, %v3904
    %3906 = vdwg.mxu0
    %3907 = vmatpush.msra.mxu0 %v693
    %3908 = vmatpush.msra.mxu0 %v685
    %3909 = vmatpush.msra.mxu0 %v677
    %3910 = vmatpush.msra.mxu0 %v669
    %3911 = vmatpush.msra.mxu0 %v661
    %3912 = vmatpush.msra.mxu0 %v653
    %3913 = vmatpush.msra.mxu0 %v645
    %3914 = vmatpush.msra.mxu0 %v637
    %3915 = vmatpush.msra.mxu0 %v629
    %3916 = vmatpush.msra.mxu0 %v621
    %3917 = vmatpush.msra.mxu0 %v613
    %3918 = vmatpush.msra.mxu0 %v605
    %3919 = vmatpush.msra.mxu0 %v597
    %3920 = vmatpush.msra.mxu0 %v589
    %3921 = vmatpush.msra.mxu0 %v581
    %3922 = vmatpush.msra.mxu0 %v573
    %3923 = vmatmul.f32.gmra.mxu0 %v3614
    %v3924 = vpop.f32.mrf.mxu0
    %v3925 = vadd.f32 0.0, %v3924
    %3926 = vdwg.mxu0
    %3927 = vmatpush.msra.mxu0 %v821
    %3928 = vmatpush.msra.mxu0 %v813
    %3929 = vmatpush.msra.mxu0 %v805
    %3930 = vmatpush.msra.mxu0 %v797
    %3931 = vmatpush.msra.mxu0 %v789
    %3932 = vmatpush.msra.mxu0 %v781
    %3933 = vmatpush.msra.mxu0 %v773
    %3934 = vmatpush.msra.mxu0 %v765
    %3935 = vmatpush.msra.mxu0 %v757
    %3936 = vmatpush.msra.mxu0 %v749
    %3937 = vmatpush.msra.mxu0 %v741
    %3938 = vmatpush.msra.mxu0 %v733
    %3939 = vmatpush.msra.mxu0 %v725
    %3940 = vmatpush.msra.mxu0 %v717
    %3941 = vmatpush.msra.mxu0 %v709
    %3942 = vmatpush.msra.mxu0 %v701
    %3943 = vmatmul.f32.gmra.mxu0 %v3615
    %v3944 = vpop.f32.mrf.mxu0
    %v3945 = vadd.f32 %v3925, %v3944
    %3946 = vdwg.mxu0
    %v3947 = vadd.f32 %v3619, %v3665
    %v3948 = vadd.f32 %v3620, %v3705
    %v3949 = vadd.f32 %v3621, %v3745
    %v3950 = vadd.f32 %v3622, %v3785
    %v3951 = vadd.f32 %v3623, %v3825
    %v3952 = vadd.f32 %v3624, %v3865
    %v3953 = vadd.f32 %v3625, %v3905
    %v3954 = vadd.f32 %v3626, %v3945
    %v3955 = vxor.u32 %v3947, 2147483648
    %v3956 = vxor.u32 %v3948, 2147483648
    %v3957 = vmul.f32 %v3955, 1.442695
    %v3958 = vpow.pop %v3957
    %v3959 = vmul.f32 %v3956, 1.442695
    %v3960 = vpow.pop %v3959
    %v3961 = vadd.f32 %v3958, 1.0
    %v3962 = vadd.f32 %v3960, 1.0
    %v3963 = vrcp.pop %v3961
    %v3964 = vmul.f32 %v3961, %v3963
    %v3965 = vsub.f32 1.0, %v3964
    %v3966 = vmul.f32 %v3963, %v3965
    %v3967 = vadd.f32 %v3963, %v3966
    %vm3968 = vweird.f32 %v3961
    %vm3969 = vweird.f32 %v3963
    %vm3970 = vmor %vm3968, %vm3969
    %v3971 = vsel %vm3970, %v3963, %v3967
    %v3972 = vand.u32 2147483647, %v3961
    %vm3973 = vcmp.eq.f32.partialorder %v3972, 8.507059e+37
    %v3974 = vand.u32 %v3961, 2147483648
    %v3975 = vor.u32 1.1754944e-38, %v3974
    %v3976 = vsel %vm3973, %v3975, %v3971
    %v3977 = vmul.f32 1.0, %v3976
    %v3978 = vrcp.pop %v3962
    %v3979 = vmul.f32 %v3962, %v3978
    %v3980 = vsub.f32 1.0, %v3979
    %v3981 = vmul.f32 %v3978, %v3980
    %v3982 = vadd.f32 %v3978, %v3981
    %vm3983 = vweird.f32 %v3962
    %vm3984 = vweird.f32 %v3978
    %vm3985 = vmor %vm3983, %vm3984
    %v3986 = vsel %vm3985, %v3978, %v3982
    %v3987 = vand.u32 2147483647, %v3962
    %vm3988 = vcmp.eq.f32.partialorder %v3987, 8.507059e+37
    %v3989 = vand.u32 %v3962, 2147483648
    %v3990 = vor.u32 1.1754944e-38, %v3989
    %v3991 = vsel %vm3988, %v3990, %v3986
    %v3992 = vmul.f32 1.0, %v3991
    %v3993 = vxor.u32 %v3949, 2147483648
    %v3994 = vxor.u32 %v3950, 2147483648
    %v3995 = vmul.f32 %v3993, 1.442695
    %v3996 = vpow.pop %v3995
    %v3997 = vmul.f32 %v3994, 1.442695
    %v3998 = vpow.pop %v3997
    %v3999 = vadd.f32 %v3996, 1.0
    %v4000 = vadd.f32 %v3998, 1.0
    %v4001 = vrcp.pop %v3999
    %v4002 = vmul.f32 %v3999, %v4001
    %v4003 = vsub.f32 1.0, %v4002
    %v4004 = vmul.f32 %v4001, %v4003
    %v4005 = vadd.f32 %v4001, %v4004
    %vm4006 = vweird.f32 %v3999
    %vm4007 = vweird.f32 %v4001
    %vm4008 = vmor %vm4006, %vm4007
    %v4009 = vsel %vm4008, %v4001, %v4005
    %v4010 = vand.u32 2147483647, %v3999
    %vm4011 = vcmp.eq.f32.partialorder %v4010, 8.507059e+37
    %v4012 = vand.u32 %v3999, 2147483648
    %v4013 = vor.u32 1.1754944e-38, %v4012
    %v4014 = vsel %vm4011, %v4013, %v4009
    %v4015 = vmul.f32 1.0, %v4014
    %v4016 = vrcp.pop %v4000
    %v4017 = vmul.f32 %v4000, %v4016
    %v4018 = vsub.f32 1.0, %v4017
    %v4019 = vmul.f32 %v4016, %v4018
    %v4020 = vadd.f32 %v4016, %v4019
    %vm4021 = vweird.f32 %v4000
    %vm4022 = vweird.f32 %v4016
    %vm4023 = vmor %vm4021, %vm4022
    %v4024 = vsel %vm4023, %v4016, %v4020
    %v4025 = vand.u32 2147483647, %v4000
    %vm4026 = vcmp.eq.f32.partialorder %v4025, 8.507059e+37
    %v4027 = vand.u32 %v4000, 2147483648
    %v4028 = vor.u32 1.1754944e-38, %v4027
    %v4029 = vsel %vm4026, %v4028, %v4024
    %v4030 = vmul.f32 1.0, %v4029
    %v4031 = vtanh.pop %v3951
    %v4032 = vtanh.pop %v3952
    %v4033 = vxor.u32 %v3953, 2147483648
    %v4034 = vxor.u32 %v3954, 2147483648
    %v4035 = vmul.f32 %v4033, 1.442695
    %v4036 = vpow.pop %v4035
    %v4037 = vmul.f32 %v4034, 1.442695
    %v4038 = vpow.pop %v4037
    %v4039 = vadd.f32 %v4036, 1.0
    %v4040 = vadd.f32 %v4038, 1.0
    %v4041 = vrcp.pop %v4039
    %v4042 = vmul.f32 %v4039, %v4041
    %v4043 = vsub.f32 1.0, %v4042
    %v4044 = vmul.f32 %v4041, %v4043
    %v4045 = vadd.f32 %v4041, %v4044
    %vm4046 = vweird.f32 %v4039
    %vm4047 = vweird.f32 %v4041
    %vm4048 = vmor %vm4046, %vm4047
    %v4049 = vsel %vm4048, %v4041, %v4045
    %v4050 = vand.u32 2147483647, %v4039
    %vm4051 = vcmp.eq.f32.partialorder %v4050, 8.507059e+37
    %v4052 = vand.u32 %v4039, 2147483648
    %v4053 = vor.u32 1.1754944e-38, %v4052
    %v4054 = vsel %vm4051, %v4053, %v4049
    %v4055 = vmul.f32 1.0, %v4054
    %v4056 = vrcp.pop %v4040
    %v4057 = vmul.f32 %v4040, %v4056
    %v4058 = vsub.f32 1.0, %v4057
    %v4059 = vmul.f32 %v4056, %v4058
    %v4060 = vadd.f32 %v4056, %v4059
    %vm4061 = vweird.f32 %v4040
    %vm4062 = vweird.f32 %v4056
    %vm4063 = vmor %vm4061, %vm4062
    %v4064 = vsel %vm4063, %v4056, %v4060
    %v4065 = vand.u32 2147483647, %v4040
    %vm4066 = vcmp.eq.f32.partialorder %v4065, 8.507059e+37
    %v4067 = vand.u32 %v4040, 2147483648
    %v4068 = vor.u32 1.1754944e-38, %v4067
    %v4069 = vsel %vm4066, %v4068, %v4064
    %v4070 = vmul.f32 1.0, %v4069
    %v4071 = vmul.f32 %v4015, %v3610
    %v4072 = vmul.f32 %v4030, %v3611
    %v4073 = vmul.f32 %v3977, %v4031
    %v4074 = vmul.f32 %v3992, %v4032
    %v4075 = vadd.f32 %v4071, %v4073
    %v4076 = vadd.f32 %v4072, %v4074
    %v4077 = vtanh.pop %v4075
    %v4078 = vtanh.pop %v4076
    %v4079 = vmul.f32 %v4055, %v4077
    %v4080 = vmul.f32 %v4070, %v4078
    %s4081 = smul.u32 7, 8
    %s4082 = smul.addr %s4081, 8
    %s4083 = scalar_lea.vmem [#allocation2], %s4082
    %v4084 = vld [vmem:[%s4083] sm:$0xff]
    %v4085 = vld [vmem:[%s4083 + $0x8] sm:$0xff]
    %v4086 = vld [vmem:[%s4083 + $0x10] sm:$0xff]
    %v4087 = vld [vmem:[%s4083 + $0x18] sm:$0xff]
    %v4088 = vld [vmem:[%s4083 + $0x20] sm:$0xff]
    %v4089 = vld [vmem:[%s4083 + $0x28] sm:$0xff]
    %v4090 = vld [vmem:[%s4083 + $0x30] sm:$0xff]
    %v4091 = vld [vmem:[%s4083 + $0x38] sm:$0xff]
    %4092 = vmatpush.msra.mxu0 %v686
    %4093 = vmatpush.msra.mxu0 %v678
    %4094 = vmatpush.msra.mxu0 %v670
    %4095 = vmatpush.msra.mxu0 %v662
    %4096 = vmatpush.msra.mxu0 %v654
    %4097 = vmatpush.msra.mxu0 %v646
    %4098 = vmatpush.msra.mxu0 %v638
    %4099 = vmatpush.msra.mxu0 %v630
    %4100 = vmatpush.msra.mxu0 %v622
    %4101 = vmatpush.msra.mxu0 %v614
    %4102 = vmatpush.msra.mxu0 %v606
    %4103 = vmatpush.msra.mxu0 %v598
    %4104 = vmatpush.msra.mxu0 %v590
    %4105 = vmatpush.msra.mxu0 %v582
    %4106 = vmatpush.msra.mxu0 %v574
    %4107 = vmatpush.msra.mxu0 %v566
    %4108 = vmatmul.f32.gmra.mxu0 %v4079
    %v4109 = vpop.f32.mrf.mxu0
    %v4110 = vadd.f32 0.0, %v4109
    %4111 = vdwg.mxu0
    %4112 = vmatpush.msra.mxu0 %v814
    %4113 = vmatpush.msra.mxu0 %v806
    %4114 = vmatpush.msra.mxu0 %v798
    %4115 = vmatpush.msra.mxu0 %v790
    %4116 = vmatpush.msra.mxu0 %v782
    %4117 = vmatpush.msra.mxu0 %v774
    %4118 = vmatpush.msra.mxu0 %v766
    %4119 = vmatpush.msra.mxu0 %v758
    %4120 = vmatpush.msra.mxu0 %v750
    %4121 = vmatpush.msra.mxu0 %v742
    %4122 = vmatpush.msra.mxu0 %v734
    %4123 = vmatpush.msra.mxu0 %v726
    %4124 = vmatpush.msra.mxu0 %v718
    %4125 = vmatpush.msra.mxu0 %v710
    %4126 = vmatpush.msra.mxu0 %v702
    %4127 = vmatpush.msra.mxu0 %v694
    %4128 = vmatmul.f32.gmra.mxu0 %v4080
    %v4129 = vpop.f32.mrf.mxu0
    %v4130 = vadd.f32 %v4110, %v4129
    %4131 = vdwg.mxu0
    %4132 = vmatpush.msra.mxu0 %v687
    %4133 = vmatpush.msra.mxu0 %v679
    %4134 = vmatpush.msra.mxu0 %v671
    %4135 = vmatpush.msra.mxu0 %v663
    %4136 = vmatpush.msra.mxu0 %v655
    %4137 = vmatpush.msra.mxu0 %v647
    %4138 = vmatpush.msra.mxu0 %v639
    %4139 = vmatpush.msra.mxu0 %v631
    %4140 = vmatpush.msra.mxu0 %v623
    %4141 = vmatpush.msra.mxu0 %v615
    %4142 = vmatpush.msra.mxu0 %v607
    %4143 = vmatpush.msra.mxu0 %v599
    %4144 = vmatpush.msra.mxu0 %v591
    %4145 = vmatpush.msra.mxu0 %v583
    %4146 = vmatpush.msra.mxu0 %v575
    %4147 = vmatpush.msra.mxu0 %v567
    %4148 = vmatmul.f32.gmra.mxu0 %v4079
    %v4149 = vpop.f32.mrf.mxu0
    %v4150 = vadd.f32 0.0, %v4149
    %4151 = vdwg.mxu0
    %4152 = vmatpush.msra.mxu0 %v815
    %4153 = vmatpush.msra.mxu0 %v807
    %4154 = vmatpush.msra.mxu0 %v799
    %4155 = vmatpush.msra.mxu0 %v791
    %4156 = vmatpush.msra.mxu0 %v783
    %4157 = vmatpush.msra.mxu0 %v775
    %4158 = vmatpush.msra.mxu0 %v767
    %4159 = vmatpush.msra.mxu0 %v759
    %4160 = vmatpush.msra.mxu0 %v751
    %4161 = vmatpush.msra.mxu0 %v743
    %4162 = vmatpush.msra.mxu0 %v735
    %4163 = vmatpush.msra.mxu0 %v727
    %4164 = vmatpush.msra.mxu0 %v719
    %4165 = vmatpush.msra.mxu0 %v711
    %4166 = vmatpush.msra.mxu0 %v703
    %4167 = vmatpush.msra.mxu0 %v695
    %4168 = vmatmul.f32.gmra.mxu0 %v4080
    %v4169 = vpop.f32.mrf.mxu0
    %v4170 = vadd.f32 %v4150, %v4169
    %4171 = vdwg.mxu0
    %4172 = vmatpush.msra.mxu0 %v688
    %4173 = vmatpush.msra.mxu0 %v680
    %4174 = vmatpush.msra.mxu0 %v672
    %4175 = vmatpush.msra.mxu0 %v664
    %4176 = vmatpush.msra.mxu0 %v656
    %4177 = vmatpush.msra.mxu0 %v648
    %4178 = vmatpush.msra.mxu0 %v640
    %4179 = vmatpush.msra.mxu0 %v632
    %4180 = vmatpush.msra.mxu0 %v624
    %4181 = vmatpush.msra.mxu0 %v616
    %4182 = vmatpush.msra.mxu0 %v608
    %4183 = vmatpush.msra.mxu0 %v600
    %4184 = vmatpush.msra.mxu0 %v592
    %4185 = vmatpush.msra.mxu0 %v584
    %4186 = vmatpush.msra.mxu0 %v576
    %4187 = vmatpush.msra.mxu0 %v568
    %4188 = vmatmul.f32.gmra.mxu0 %v4079
    %v4189 = vpop.f32.mrf.mxu0
    %v4190 = vadd.f32 0.0, %v4189
    %4191 = vdwg.mxu0
    %4192 = vmatpush.msra.mxu0 %v816
    %4193 = vmatpush.msra.mxu0 %v808
    %4194 = vmatpush.msra.mxu0 %v800
    %4195 = vmatpush.msra.mxu0 %v792
    %4196 = vmatpush.msra.mxu0 %v784
    %4197 = vmatpush.msra.mxu0 %v776
    %4198 = vmatpush.msra.mxu0 %v768
    %4199 = vmatpush.msra.mxu0 %v760
    %4200 = vmatpush.msra.mxu0 %v752
    %4201 = vmatpush.msra.mxu0 %v744
    %4202 = vmatpush.msra.mxu0 %v736
    %4203 = vmatpush.msra.mxu0 %v728
    %4204 = vmatpush.msra.mxu0 %v720
    %4205 = vmatpush.msra.mxu0 %v712
    %4206 = vmatpush.msra.mxu0 %v704
    %4207 = vmatpush.msra.mxu0 %v696
    %4208 = vmatmul.f32.gmra.mxu0 %v4080
    %v4209 = vpop.f32.mrf.mxu0
    %v4210 = vadd.f32 %v4190, %v4209
    %4211 = vdwg.mxu0
    %4212 = vmatpush.msra.mxu0 %v689
    %4213 = vmatpush.msra.mxu0 %v681
    %4214 = vmatpush.msra.mxu0 %v673
    %4215 = vmatpush.msra.mxu0 %v665
    %4216 = vmatpush.msra.mxu0 %v657
    %4217 = vmatpush.msra.mxu0 %v649
    %4218 = vmatpush.msra.mxu0 %v641
    %4219 = vmatpush.msra.mxu0 %v633
    %4220 = vmatpush.msra.mxu0 %v625
    %4221 = vmatpush.msra.mxu0 %v617
    %4222 = vmatpush.msra.mxu0 %v609
    %4223 = vmatpush.msra.mxu0 %v601
    %4224 = vmatpush.msra.mxu0 %v593
    %4225 = vmatpush.msra.mxu0 %v585
    %4226 = vmatpush.msra.mxu0 %v577
    %4227 = vmatpush.msra.mxu0 %v569
    %4228 = vmatmul.f32.gmra.mxu0 %v4079
    %v4229 = vpop.f32.mrf.mxu0
    %v4230 = vadd.f32 0.0, %v4229
    %4231 = vdwg.mxu0
    %4232 = vmatpush.msra.mxu0 %v817
    %4233 = vmatpush.msra.mxu0 %v809
    %4234 = vmatpush.msra.mxu0 %v801
    %4235 = vmatpush.msra.mxu0 %v793
    %4236 = vmatpush.msra.mxu0 %v785
    %4237 = vmatpush.msra.mxu0 %v777
    %4238 = vmatpush.msra.mxu0 %v769
    %4239 = vmatpush.msra.mxu0 %v761
    %4240 = vmatpush.msra.mxu0 %v753
    %4241 = vmatpush.msra.mxu0 %v745
    %4242 = vmatpush.msra.mxu0 %v737
    %4243 = vmatpush.msra.mxu0 %v729
    %4244 = vmatpush.msra.mxu0 %v721
    %4245 = vmatpush.msra.mxu0 %v713
    %4246 = vmatpush.msra.mxu0 %v705
    %4247 = vmatpush.msra.mxu0 %v697
    %4248 = vmatmul.f32.gmra.mxu0 %v4080
    %v4249 = vpop.f32.mrf.mxu0
    %v4250 = vadd.f32 %v4230, %v4249
    %4251 = vdwg.mxu0
    %4252 = vmatpush.msra.mxu0 %v690
    %4253 = vmatpush.msra.mxu0 %v682
    %4254 = vmatpush.msra.mxu0 %v674
    %4255 = vmatpush.msra.mxu0 %v666
    %4256 = vmatpush.msra.mxu0 %v658
    %4257 = vmatpush.msra.mxu0 %v650
    %4258 = vmatpush.msra.mxu0 %v642
    %4259 = vmatpush.msra.mxu0 %v634
    %4260 = vmatpush.msra.mxu0 %v626
    %4261 = vmatpush.msra.mxu0 %v618
    %4262 = vmatpush.msra.mxu0 %v610
    %4263 = vmatpush.msra.mxu0 %v602
    %4264 = vmatpush.msra.mxu0 %v594
    %4265 = vmatpush.msra.mxu0 %v586
    %4266 = vmatpush.msra.mxu0 %v578
    %4267 = vmatpush.msra.mxu0 %v570
    %4268 = vmatmul.f32.gmra.mxu0 %v4079
    %v4269 = vpop.f32.mrf.mxu0
    %v4270 = vadd.f32 0.0, %v4269
    %4271 = vdwg.mxu0
    %4272 = vmatpush.msra.mxu0 %v818
    %4273 = vmatpush.msra.mxu0 %v810
    %4274 = vmatpush.msra.mxu0 %v802
    %4275 = vmatpush.msra.mxu0 %v794
    %4276 = vmatpush.msra.mxu0 %v786
    %4277 = vmatpush.msra.mxu0 %v778
    %4278 = vmatpush.msra.mxu0 %v770
    %4279 = vmatpush.msra.mxu0 %v762
    %4280 = vmatpush.msra.mxu0 %v754
    %4281 = vmatpush.msra.mxu0 %v746
    %4282 = vmatpush.msra.mxu0 %v738
    %4283 = vmatpush.msra.mxu0 %v730
    %4284 = vmatpush.msra.mxu0 %v722
    %4285 = vmatpush.msra.mxu0 %v714
    %4286 = vmatpush.msra.mxu0 %v706
    %4287 = vmatpush.msra.mxu0 %v698
    %4288 = vmatmul.f32.gmra.mxu0 %v4080
    %v4289 = vpop.f32.mrf.mxu0
    %v4290 = vadd.f32 %v4270, %v4289
    %4291 = vdwg.mxu0
    %4292 = vmatpush.msra.mxu0 %v691
    %4293 = vmatpush.msra.mxu0 %v683
    %4294 = vmatpush.msra.mxu0 %v675
    %4295 = vmatpush.msra.mxu0 %v667
    %4296 = vmatpush.msra.mxu0 %v659
    %4297 = vmatpush.msra.mxu0 %v651
    %4298 = vmatpush.msra.mxu0 %v643
    %4299 = vmatpush.msra.mxu0 %v635
    %4300 = vmatpush.msra.mxu0 %v627
    %4301 = vmatpush.msra.mxu0 %v619
    %4302 = vmatpush.msra.mxu0 %v611
    %4303 = vmatpush.msra.mxu0 %v603
    %4304 = vmatpush.msra.mxu0 %v595
    %4305 = vmatpush.msra.mxu0 %v587
    %4306 = vmatpush.msra.mxu0 %v579
    %4307 = vmatpush.msra.mxu0 %v571
    %4308 = vmatmul.f32.gmra.mxu0 %v4079
    %v4309 = vpop.f32.mrf.mxu0
    %v4310 = vadd.f32 0.0, %v4309
    %4311 = vdwg.mxu0
    %4312 = vmatpush.msra.mxu0 %v819
    %4313 = vmatpush.msra.mxu0 %v811
    %4314 = vmatpush.msra.mxu0 %v803
    %4315 = vmatpush.msra.mxu0 %v795
    %4316 = vmatpush.msra.mxu0 %v787
    %4317 = vmatpush.msra.mxu0 %v779
    %4318 = vmatpush.msra.mxu0 %v771
    %4319 = vmatpush.msra.mxu0 %v763
    %4320 = vmatpush.msra.mxu0 %v755
    %4321 = vmatpush.msra.mxu0 %v747
    %4322 = vmatpush.msra.mxu0 %v739
    %4323 = vmatpush.msra.mxu0 %v731
    %4324 = vmatpush.msra.mxu0 %v723
    %4325 = vmatpush.msra.mxu0 %v715
    %4326 = vmatpush.msra.mxu0 %v707
    %4327 = vmatpush.msra.mxu0 %v699
    %4328 = vmatmul.f32.gmra.mxu0 %v4080
    %v4329 = vpop.f32.mrf.mxu0
    %v4330 = vadd.f32 %v4310, %v4329
    %4331 = vdwg.mxu0
    %4332 = vmatpush.msra.mxu0 %v692
    %4333 = vmatpush.msra.mxu0 %v684
    %4334 = vmatpush.msra.mxu0 %v676
    %4335 = vmatpush.msra.mxu0 %v668
    %4336 = vmatpush.msra.mxu0 %v660
    %4337 = vmatpush.msra.mxu0 %v652
    %4338 = vmatpush.msra.mxu0 %v644
    %4339 = vmatpush.msra.mxu0 %v636
    %4340 = vmatpush.msra.mxu0 %v628
    %4341 = vmatpush.msra.mxu0 %v620
    %4342 = vmatpush.msra.mxu0 %v612
    %4343 = vmatpush.msra.mxu0 %v604
    %4344 = vmatpush.msra.mxu0 %v596
    %4345 = vmatpush.msra.mxu0 %v588
    %4346 = vmatpush.msra.mxu0 %v580
    %4347 = vmatpush.msra.mxu0 %v572
    %4348 = vmatmul.f32.gmra.mxu0 %v4079
    %v4349 = vpop.f32.mrf.mxu0
    %v4350 = vadd.f32 0.0, %v4349
    %4351 = vdwg.mxu0
    %4352 = vmatpush.msra.mxu0 %v820
    %4353 = vmatpush.msra.mxu0 %v812
    %4354 = vmatpush.msra.mxu0 %v804
    %4355 = vmatpush.msra.mxu0 %v796
    %4356 = vmatpush.msra.mxu0 %v788
    %4357 = vmatpush.msra.mxu0 %v780
    %4358 = vmatpush.msra.mxu0 %v772
    %4359 = vmatpush.msra.mxu0 %v764
    %4360 = vmatpush.msra.mxu0 %v756
    %4361 = vmatpush.msra.mxu0 %v748
    %4362 = vmatpush.msra.mxu0 %v740
    %4363 = vmatpush.msra.mxu0 %v732
    %4364 = vmatpush.msra.mxu0 %v724
    %4365 = vmatpush.msra.mxu0 %v716
    %4366 = vmatpush.msra.mxu0 %v708
    %4367 = vmatpush.msra.mxu0 %v700
    %4368 = vmatmul.f32.gmra.mxu0 %v4080
    %v4369 = vpop.f32.mrf.mxu0
    %v4370 = vadd.f32 %v4350, %v4369
    %4371 = vdwg.mxu0
    %4372 = vmatpush.msra.mxu0 %v693
    %4373 = vmatpush.msra.mxu0 %v685
    %4374 = vmatpush.msra.mxu0 %v677
    %4375 = vmatpush.msra.mxu0 %v669
    %4376 = vmatpush.msra.mxu0 %v661
    %4377 = vmatpush.msra.mxu0 %v653
    %4378 = vmatpush.msra.mxu0 %v645
    %4379 = vmatpush.msra.mxu0 %v637
    %4380 = vmatpush.msra.mxu0 %v629
    %4381 = vmatpush.msra.mxu0 %v621
    %4382 = vmatpush.msra.mxu0 %v613
    %4383 = vmatpush.msra.mxu0 %v605
    %4384 = vmatpush.msra.mxu0 %v597
    %4385 = vmatpush.msra.mxu0 %v589
    %4386 = vmatpush.msra.mxu0 %v581
    %4387 = vmatpush.msra.mxu0 %v573
    %4388 = vmatmul.f32.gmra.mxu0 %v4079
    %v4389 = vpop.f32.mrf.mxu0
    %v4390 = vadd.f32 0.0, %v4389
    %4391 = vdwg.mxu0
    %4392 = vmatpush.msra.mxu0 %v821
    %4393 = vmatpush.msra.mxu0 %v813
    %4394 = vmatpush.msra.mxu0 %v805
    %4395 = vmatpush.msra.mxu0 %v797
    %4396 = vmatpush.msra.mxu0 %v789
    %4397 = vmatpush.msra.mxu0 %v781
    %4398 = vmatpush.msra.mxu0 %v773
    %4399 = vmatpush.msra.mxu0 %v765
    %4400 = vmatpush.msra.mxu0 %v757
    %4401 = vmatpush.msra.mxu0 %v749
    %4402 = vmatpush.msra.mxu0 %v741
    %4403 = vmatpush.msra.mxu0 %v733
    %4404 = vmatpush.msra.mxu0 %v725
    %4405 = vmatpush.msra.mxu0 %v717
    %4406 = vmatpush.msra.mxu0 %v709
    %4407 = vmatpush.msra.mxu0 %v701
    %4408 = vmatmul.f32.gmra.mxu0 %v4080
    %v4409 = vpop.f32.mrf.mxu0
    %v4410 = vadd.f32 %v4390, %v4409
    %4411 = vdwg.mxu0
    %v4412 = vadd.f32 %v4084, %v4130
    %v4413 = vadd.f32 %v4085, %v4170
    %v4414 = vadd.f32 %v4086, %v4210
    %v4415 = vadd.f32 %v4087, %v4250
    %v4416 = vadd.f32 %v4088, %v4290
    %v4417 = vadd.f32 %v4089, %v4330
    %v4418 = vadd.f32 %v4090, %v4370
    %v4419 = vadd.f32 %v4091, %v4410
    %v4420 = vxor.u32 %v4412, 2147483648
    %v4421 = vxor.u32 %v4413, 2147483648
    %v4422 = vmul.f32 %v4420, 1.442695
    %v4423 = vpow.pop %v4422
    %v4424 = vmul.f32 %v4421, 1.442695
    %v4425 = vpow.pop %v4424
    %v4426 = vadd.f32 %v4423, 1.0
    %v4427 = vadd.f32 %v4425, 1.0
    %v4428 = vrcp.pop %v4426
    %v4429 = vmul.f32 %v4426, %v4428
    %v4430 = vsub.f32 1.0, %v4429
    %v4431 = vmul.f32 %v4428, %v4430
    %v4432 = vadd.f32 %v4428, %v4431
    %vm4433 = vweird.f32 %v4426
    %vm4434 = vweird.f32 %v4428
    %vm4435 = vmor %vm4433, %vm4434
    %v4436 = vsel %vm4435, %v4428, %v4432
    %v4437 = vand.u32 2147483647, %v4426
    %vm4438 = vcmp.eq.f32.partialorder %v4437, 8.507059e+37
    %v4439 = vand.u32 %v4426, 2147483648
    %v4440 = vor.u32 1.1754944e-38, %v4439
    %v4441 = vsel %vm4438, %v4440, %v4436
    %v4442 = vmul.f32 1.0, %v4441
    %v4443 = vrcp.pop %v4427
    %v4444 = vmul.f32 %v4427, %v4443
    %v4445 = vsub.f32 1.0, %v4444
    %v4446 = vmul.f32 %v4443, %v4445
    %v4447 = vadd.f32 %v4443, %v4446
    %vm4448 = vweird.f32 %v4427
    %vm4449 = vweird.f32 %v4443
    %vm4450 = vmor %vm4448, %vm4449
    %v4451 = vsel %vm4450, %v4443, %v4447
    %v4452 = vand.u32 2147483647, %v4427
    %vm4453 = vcmp.eq.f32.partialorder %v4452, 8.507059e+37
    %v4454 = vand.u32 %v4427, 2147483648
    %v4455 = vor.u32 1.1754944e-38, %v4454
    %v4456 = vsel %vm4453, %v4455, %v4451
    %v4457 = vmul.f32 1.0, %v4456
    %v4458 = vxor.u32 %v4414, 2147483648
    %v4459 = vxor.u32 %v4415, 2147483648
    %v4460 = vmul.f32 %v4458, 1.442695
    %v4461 = vpow.pop %v4460
    %v4462 = vmul.f32 %v4459, 1.442695
    %v4463 = vpow.pop %v4462
    %v4464 = vadd.f32 %v4461, 1.0
    %v4465 = vadd.f32 %v4463, 1.0
    %v4466 = vrcp.pop %v4464
    %v4467 = vmul.f32 %v4464, %v4466
    %v4468 = vsub.f32 1.0, %v4467
    %v4469 = vmul.f32 %v4466, %v4468
    %v4470 = vadd.f32 %v4466, %v4469
    %vm4471 = vweird.f32 %v4464
    %vm4472 = vweird.f32 %v4466
    %vm4473 = vmor %vm4471, %vm4472
    %v4474 = vsel %vm4473, %v4466, %v4470
    %v4475 = vand.u32 2147483647, %v4464
    %vm4476 = vcmp.eq.f32.partialorder %v4475, 8.507059e+37
    %v4477 = vand.u32 %v4464, 2147483648
    %v4478 = vor.u32 1.1754944e-38, %v4477
    %v4479 = vsel %vm4476, %v4478, %v4474
    %v4480 = vmul.f32 1.0, %v4479
    %v4481 = vrcp.pop %v4465
    %v4482 = vmul.f32 %v4465, %v4481
    %v4483 = vsub.f32 1.0, %v4482
    %v4484 = vmul.f32 %v4481, %v4483
    %v4485 = vadd.f32 %v4481, %v4484
    %vm4486 = vweird.f32 %v4465
    %vm4487 = vweird.f32 %v4481
    %vm4488 = vmor %vm4486, %vm4487
    %v4489 = vsel %vm4488, %v4481, %v4485
    %v4490 = vand.u32 2147483647, %v4465
    %vm4491 = vcmp.eq.f32.partialorder %v4490, 8.507059e+37
    %v4492 = vand.u32 %v4465, 2147483648
    %v4493 = vor.u32 1.1754944e-38, %v4492
    %v4494 = vsel %vm4491, %v4493, %v4489
    %v4495 = vmul.f32 1.0, %v4494
    %v4496 = vtanh.pop %v4416
    %v4497 = vtanh.pop %v4417
    %v4498 = vxor.u32 %v4418, 2147483648
    %v4499 = vxor.u32 %v4419, 2147483648
    %v4500 = vmul.f32 %v4498, 1.442695
    %v4501 = vpow.pop %v4500
    %v4502 = vmul.f32 %v4499, 1.442695
    %v4503 = vpow.pop %v4502
    %v4504 = vadd.f32 %v4501, 1.0
    %v4505 = vadd.f32 %v4503, 1.0
    %v4506 = vrcp.pop %v4504
    %v4507 = vmul.f32 %v4504, %v4506
    %v4508 = vsub.f32 1.0, %v4507
    %v4509 = vmul.f32 %v4506, %v4508
    %v4510 = vadd.f32 %v4506, %v4509
    %vm4511 = vweird.f32 %v4504
    %vm4512 = vweird.f32 %v4506
    %vm4513 = vmor %vm4511, %vm4512
    %v4514 = vsel %vm4513, %v4506, %v4510
    %v4515 = vand.u32 2147483647, %v4504
    %vm4516 = vcmp.eq.f32.partialorder %v4515, 8.507059e+37
    %v4517 = vand.u32 %v4504, 2147483648
    %v4518 = vor.u32 1.1754944e-38, %v4517
    %v4519 = vsel %vm4516, %v4518, %v4514
    %v4520 = vmul.f32 1.0, %v4519
    %v4521 = vrcp.pop %v4505
    %v4522 = vmul.f32 %v4505, %v4521
    %v4523 = vsub.f32 1.0, %v4522
    %v4524 = vmul.f32 %v4521, %v4523
    %v4525 = vadd.f32 %v4521, %v4524
    %vm4526 = vweird.f32 %v4505
    %vm4527 = vweird.f32 %v4521
    %vm4528 = vmor %vm4526, %vm4527
    %v4529 = vsel %vm4528, %v4521, %v4525
    %v4530 = vand.u32 2147483647, %v4505
    %vm4531 = vcmp.eq.f32.partialorder %v4530, 8.507059e+37
    %v4532 = vand.u32 %v4505, 2147483648
    %v4533 = vor.u32 1.1754944e-38, %v4532
    %v4534 = vsel %vm4531, %v4533, %v4529
    %v4535 = vmul.f32 1.0, %v4534
    %v4536 = vmul.f32 %v4480, %v4075
    %v4537 = vmul.f32 %v4495, %v4076
    %v4538 = vmul.f32 %v4442, %v4496
    %v4539 = vmul.f32 %v4457, %v4497
    %v4540 = vadd.f32 %v4536, %v4538
    %v4541 = vadd.f32 %v4537, %v4539
    %v4542 = vtanh.pop %v4540
    %v4543 = vtanh.pop %v4541
    %v4544 = vmul.f32 %v4520, %v4542
    %v4545 = vmul.f32 %v4535, %v4543
    %4546 = vst [vmem:[#allocation3] sm:$0xff] %v4544
    %4547 = vst [vmem:[#allocation3 + $0x8] sm:$0xff] %v4545
    %4548 = vst [vmem:[#allocation4] sm:$0xff] %v4540
    %4549 = vst [vmem:[#allocation4 + $0x8] sm:$0xff] %v4541
    // Predicated region
    $region38: #{tpu_custom_call.1} parent=1 // pred_check
      %p4550 = pneg %p68
    $region39: #{tpu_custom_call.1} parent=1 // pred_check_branch
      %4552 = sbr.rel (%p4550) target = $region41
    $region40: #{tpu_custom_call.1} parent=1 // pred_region
      %v4553 = vld [vmem:[#allocation10] sm:$0xff]
      %v4554 = vld [vmem:[#allocation10 + $0x8] sm:$0xff]
      %v4555 = vld [vmem:[#allocation10 + $0x10] sm:$0xff]
      %v4556 = vld [vmem:[#allocation10 + $0x18] sm:$0xff]
      %v4557 = vld [vmem:[#allocation10 + $0x20] sm:$0xff]
      %v4558 = vld [vmem:[#allocation10 + $0x28] sm:$0xff]
      %v4559 = vld [vmem:[#allocation10 + $0x30] sm:$0xff]
      %v4560 = vld [vmem:[#allocation10 + $0x38] sm:$0xff]
      %v4561 = vld [vmem:[#allocation10 + $0x40] sm:$0xff]
      %v4562 = vld [vmem:[#allocation10 + $0x48] sm:$0xff]
      %v4563 = vld [vmem:[#allocation10 + $0x50] sm:$0xff]
      %v4564 = vld [vmem:[#allocation10 + $0x58] sm:$0xff]
      %v4565 = vld [vmem:[#allocation10 + $0x60] sm:$0xff]
      %v4566 = vld [vmem:[#allocation10 + $0x68] sm:$0xff]
      %v4567 = vld [vmem:[#allocation10 + $0x70] sm:$0xff]
      %v4568 = vld [vmem:[#allocation10 + $0x78] sm:$0xff]
      %v4569 = vld [vmem:[#allocation10 + $0x80] sm:$0xff]
      %v4570 = vld [vmem:[#allocation10 + $0x88] sm:$0xff]
      %v4571 = vld [vmem:[#allocation10 + $0x90] sm:$0xff]
      %v4572 = vld [vmem:[#allocation10 + $0x98] sm:$0xff]
      %v4573 = vld [vmem:[#allocation10 + $0xa0] sm:$0xff]
      %v4574 = vld [vmem:[#allocation10 + $0xa8] sm:$0xff]
      %v4575 = vld [vmem:[#allocation10 + $0xb0] sm:$0xff]
      %v4576 = vld [vmem:[#allocation10 + $0xb8] sm:$0xff]
      %v4577 = vld [vmem:[#allocation10 + $0xc0] sm:$0xff]
      %v4578 = vld [vmem:[#allocation10 + $0xc8] sm:$0xff]
      %v4579 = vld [vmem:[#allocation10 + $0xd0] sm:$0xff]
      %v4580 = vld [vmem:[#allocation10 + $0xd8] sm:$0xff]
      %v4581 = vld [vmem:[#allocation10 + $0xe0] sm:$0xff]
      %v4582 = vld [vmem:[#allocation10 + $0xe8] sm:$0xff]
      %v4583 = vld [vmem:[#allocation10 + $0xf0] sm:$0xff]
      %v4584 = vld [vmem:[#allocation10 + $0xf8] sm:$0xff]
      %v4585 = vld [vmem:[%s4] sm:$0x1]
      %v4587 = vperm.slane %v4585, 0
      %4589 = vmatpush.msra.mxu0 %v4568
      %4590 = vmatpush.msra.mxu0 %v4567
      %4591 = vmatpush.msra.mxu0 %v4566
      %4592 = vmatpush.msra.mxu0 %v4565
      %4593 = vmatpush.msra.mxu0 %v4564
      %4594 = vmatpush.msra.mxu0 %v4563
      %4595 = vmatpush.msra.mxu0 %v4562
      %4596 = vmatpush.msra.mxu0 %v4561
      %4597 = vmatpush.msra.mxu0 %v4560
      %4598 = vmatpush.msra.mxu0 %v4559
      %4599 = vmatpush.msra.mxu0 %v4558
      %4600 = vmatpush.msra.mxu0 %v4557
      %4601 = vmatpush.msra.mxu0 %v4556
      %4602 = vmatpush.msra.mxu0 %v4555
      %4603 = vmatpush.msra.mxu0 %v4554
      %4604 = vmatpush.msra.mxu0 %v4553
      %4605 = vmatmul.f32.gmra.mxu0 %v4544
      %v4606 = vpop.f32.mrf.mxu0
      %v4607 = vadd.f32 %v4587, %v4606
      %4608 = vdwg.mxu0
      %4609 = vmatpush.msra.mxu0 %v4584
      %4610 = vmatpush.msra.mxu0 %v4583
      %4611 = vmatpush.msra.mxu0 %v4582
      %4612 = vmatpush.msra.mxu0 %v4581
      %4613 = vmatpush.msra.mxu0 %v4580
      %4614 = vmatpush.msra.mxu0 %v4579
      %4615 = vmatpush.msra.mxu0 %v4578
      %4616 = vmatpush.msra.mxu0 %v4577
      %4617 = vmatpush.msra.mxu0 %v4576
      %4618 = vmatpush.msra.mxu0 %v4575
      %4619 = vmatpush.msra.mxu0 %v4574
      %4620 = vmatpush.msra.mxu0 %v4573
      %4621 = vmatpush.msra.mxu0 %v4572
      %4622 = vmatpush.msra.mxu0 %v4571
      %4623 = vmatpush.msra.mxu0 %v4570
      %4624 = vmatpush.msra.mxu0 %v4569
      %4625 = vmatmul.f32.gmra.mxu0 %v4545
      %v4626 = vpop.f32.mrf.mxu0
      %v4627 = vadd.f32 %v4607, %v4626
      %4628 = vdwg.mxu0
      %4629 = vst [vmem:[#allocation11] sm:$0xff] %v4627
    $region41: #{tpu_custom_call.1} parent=1 // pred_fallthru
      _
    // Predicated region
    $region42: #{tpu_custom_call.1} parent=1 // pred_check
      _
    $region43: #{tpu_custom_call.1} parent=1 // pred_check_branch
      %4631 = sbr.rel (0) target = $region45
    $region44: #{tpu_custom_call.1} parent=1 // pred_region
      %4633 = vsyncadd [#allocation7], 0
      %s4635 = sshll.u32 [#allocation11], 4
      %s4636 = int_to_ptr.vmem [resolvable:$true] %s4635
      %s4637 = sshll.u32 %s5, 4
      %s4638 = int_to_ptr.hbm [resolvable:$true] %s4637
      %4640 = dma.vmem_to_hbm [thread:$0]  %s4636, 128, %s4638, [#allocation7]
    $region45: #{tpu_custom_call.1} parent=1 // pred_fallthru
      _
    // Predicated region
    $region46: #{tpu_custom_call.1} parent=1 // pred_check
      _
    $region47: #{tpu_custom_call.1} parent=1 // pred_check_branch
      %4642 = sbr.rel (0) target = $region49
    $region48: #{tpu_custom_call.1} parent=1 // pred_region
      %4644 = dma.done [#allocation7], 128
    $region49: #{tpu_custom_call.1} parent=1 // pred_fallthru
      _
    %4645 = vsyncpa [#allocation6], 1
    %4646 = vsyncpa [#allocation9], 1
    %4647 = vsyncpa [#allocation7], 1

</llo_original>
